<compile_context>
chip_gen: v5e
topology: v5e:2x2
jax: 0.10.0
libtpu: 0.0.40
codegen_flags: <defaults>
</compile_context>

<pallas_src>
import jax
import jax.numpy as jnp
from jax import lax
from jax.experimental import pallas as pl
from jax.experimental.pallas import tpu as pltpu


def resblock_kernel(xcol_ref, w1_ref, w2_ref, so_ref, out_ref, t1pad_ref):
    # xcol_ref : (B, H, W, 9*Cin)    bf16  im2col patches of the padded input
    # w1_ref   : (9*Cin, Cp)         bf16  conv1 weights, im2col layout
    # w2_ref   : (9*Cp, Cp)          bf16  conv2 weights, im2col layout
    # so_ref   : (8, Cp)             f32   rows = [s1, o1, s2, o2, s3, o3, 0, 0]
    # out_ref  : (B, H, W, Cp)       bf16
    # t1pad_ref: (B, H+2, W+2, Cp)   bf16  scratch, zero border, t1 interior
    B, H, W, K1 = xcol_ref.shape
    Cp = out_ref.shape[3]
    M = B * H * W

    # Folded BN scale/offset rows (single packed (8, Cp) tile).
    s1 = so_ref[0:1, :]
    o1 = so_ref[1:2, :]
    s2 = so_ref[2:3, :]
    o2 = so_ref[3:4, :]
    s3 = so_ref[4:5, :]
    o3 = so_ref[5:6, :]

    # Zero only the 1-pixel border of the bf16 scratch.  Done every grid step
    # so it stays correct when the batch axis is split across TensorCores.
    t1pad_ref[:, 0:1, :, :] = jnp.zeros((B, 1, W + 2, Cp), jnp.bfloat16)
    t1pad_ref[:, H + 1:H + 2, :, :] = jnp.zeros((B, 1, W + 2, Cp), jnp.bfloat16)
    t1pad_ref[:, :, 0:1, :] = jnp.zeros((B, H + 2, 1, Cp), jnp.bfloat16)
    t1pad_ref[:, :, W + 1:W + 2, :] = jnp.zeros((B, H + 2, 1, Cp), jnp.bfloat16)

    # ---- conv1: single im2col matmul (bias folded into the BN offsets) ----
    p1 = xcol_ref[...].reshape(M, K1)                       # bf16 (M, 9*Cin)
    acc1 = jnp.dot(p1, w1_ref[...],
                   preferred_element_type=jnp.float32)      # f32 (M, Cp)

    # Residual branch first so the raw conv1 accumulator dies before conv2.
    resid = acc1 * s3 + o3                                  # bn3(conv1(x))

    # bn1 + ReLU (Dropout(p=0.3) is the identity in eval mode).
    t1 = jnp.maximum(acc1 * s1 + o1, 0.0)

    # Store t1 once into the zero-bordered padded scratch, as bf16 (single
    # cast here; all 9 tap reads below are already MXU-ready bf16).
    t1pad_ref[:, 1:H + 1, 1:W + 1, :] = (
        t1.reshape(B, H, W, Cp).astype(jnp.bfloat16))

    # ---- conv2: 9 accumulating matmuls, one per (kh, kw) tap ----
    acc2 = None
    for kh in range(3):
        for kw in range(3):
            k = 3 * kh + kw
            tap = t1pad_ref[:, kh:kh + H, kw:kw + W, :].reshape(M, Cp)  # bf16
            part = jnp.dot(tap, w2_ref[k * Cp:(k + 1) * Cp, :],
                           preferred_element_type=jnp.float32)
            acc2 = part if acc2 is None else acc2 + part

    # bn2(main) + bn3(residual), add, ReLU; store lane-dense bf16 output.
    out = jnp.maximum(acc2 * s2 + o2 + resid, 0.0)
    out_ref[...] = out.reshape(B, H, W, Cp).astype(out_ref.dtype)


def _fold_bn_bias(gamma, beta, mean, var, bias, eps=1e-5):
    """Fold BN running stats AND the preceding conv bias into (scale, offset)."""
    scale = gamma / jnp.sqrt(var + eps)
    offset = beta - mean * scale + bias * scale
    return scale, offset


def _choose_batch_block(N, H, W, Cin, Cp, vmem_budget_bytes=24 * 1024 * 1024):
    """Images per grid step: as many as a v7x-safe VMEM budget allows, while
    keeping >= 2 grid steps (megacore) and dividing N evenly."""
    per_img = (2 * H * W * 9 * Cin * 2        # xcol block, double-buffered bf16
               + 2 * H * W * Cp * 2           # out block, double-buffered bf16
               + (H + 2) * (W + 2) * Cp * 2)  # t1 scratch, bf16
    fixed = (9 * Cin * Cp + 9 * Cp * Cp) * 2 * 2 + 8 * Cp * 4 * 2  # weights + BN
    bmax = max(1, (vmem_budget_bytes - fixed) // per_img)
    bmax = min(bmax, 16)                      # M = 16*H*W already amortizes step overhead
    target = int(min(bmax, max(1, N // 2)))   # keep >= 2 grid steps when N >= 2
    b = max(1, target)
    while N % b != 0:
        b -= 1
    return b


def residual_block(x_nchw, params):
    """x_nchw: (N, Cin, H, W) float32. Returns (N, Cout, H, W) float32."""
    N, Cin, H, W = x_nchw.shape
    Cout = params["w1"].shape[-1]
    Cp = max(((Cout + 127) // 128) * 128, 128)   # lane-dense channel padding

    # NCHW -> NHWC, zero-pad spatially, build conv1 im2col patches in XLA.
    x_nhwc = jnp.transpose(x_nchw, (0, 2, 3, 1))
    x_pad = jnp.pad(x_nhwc, ((0, 0), (1, 1), (1, 1), (0, 0)))
    patches = [x_pad[:, kh:kh + H, kw:kw + W, :]
               for kh in range(3) for kw in range(3)]
    xcol = jnp.concatenate(patches, axis=-1).astype(jnp.bfloat16)  # (N,H,W,9*Cin)

    # Fold BN running stats and conv biases into per-channel scale/offset.
    s1, o1 = _fold_bn_bias(params["g1"], params["be1"], params["m1"], params["v1"], params["b1"])
    s2, o2 = _fold_bn_bias(params["g2"], params["be2"], params["m2"], params["v2"], params["b2"])
    s3, o3 = _fold_bn_bias(params["g3"], params["be3"], params["m3"], params["v3"], params["b1"])

    def pad_last(a):
        return jnp.pad(a, [(0, 0)] * (a.ndim - 1) + [(0, Cp - Cout)])

    # Pack the six per-channel vectors into one aligned (8, Cp) f32 tile.
    so_rows = jnp.stack([s1, o1, s2, o2, s3, o3], axis=0)            # (6, Cout)
    so_packed = jnp.pad(so_rows, ((0, 2), (0, Cp - Cout))).astype(jnp.float32)

    # Weights: HWIO -> im2col layout, pad channels to Cp, cast to bf16.
    w1col = pad_last(params["w1"].reshape(9 * Cin, Cout)).astype(jnp.bfloat16)  # (9*Cin, Cp)
    w2p = jnp.pad(params["w2"],
                  ((0, 0), (0, 0), (0, Cp - Cout), (0, Cp - Cout)))             # (3,3,Cp,Cp)
    w2col = w2p.reshape(9 * Cp, Cp).astype(jnp.bfloat16)                        # (9*Cp, Cp)

    B_blk = _choose_batch_block(N, H, W, Cin, Cp)

    grid_spec = pltpu.PrefetchScalarGridSpec(
        num_scalar_prefetch=0,
        grid=(N // B_blk,),
        in_specs=[
            pl.BlockSpec((B_blk, H, W, 9 * Cin), lambda n: (n, 0, 0, 0)),
            pl.BlockSpec((9 * Cin, Cp), lambda n: (0, 0)),
            pl.BlockSpec((9 * Cp, Cp), lambda n: (0, 0)),
            pl.BlockSpec((8, Cp), lambda n: (0, 0)),
        ],
        out_specs=pl.BlockSpec((B_blk, H, W, Cp), lambda n: (n, 0, 0, 0)),
        scratch_shapes=[pltpu.VMEM((B_blk, H + 2, W + 2, Cp), jnp.bfloat16)],
    )

    out = pl.pallas_call(
        resblock_kernel,
        out_shape=jax.ShapeDtypeStruct((N, H, W, Cp), jnp.bfloat16),
        grid_spec=grid_spec,
        compiler_params=pltpu.CompilerParams(
            # v7x: one image block per TensorCore; B_blk sizing keeps us well
            # under v7x's 64 MiB VMEM.  On v5e/v6e (128 MiB) this limit and the
            # budget in _choose_batch_block can both be raised.
            dimension_semantics=("parallel",),
            vmem_limit_bytes=32 * 1024 * 1024,
        ),
    )(xcol, w1col, w2col, so_packed)

    # Drop channel padding, cast bf16 -> f32, back to NCHW to match the module.
    y = out[..., :Cout].astype(jnp.float32)
    return jnp.transpose(y, (0, 3, 1, 2))


def residual_block_ref(x_nchw, params):
    """Pure-JAX (f32) reference with identical inference semantics."""
    def conv(x, w, b):  # x NCHW, w HWIO
        y = lax.conv_general_dilated(
            x, w, window_strides=(1, 1), padding="SAME",
            dimension_numbers=("NCHW", "HWIO", "NCHW"))
        return y + b.reshape(1, -1, 1, 1)

    def bn(x, g, be, m, v, eps=1e-5):
        s = g / jnp.sqrt(v + eps)
        o = be - m * s
        return x * s.reshape(1, -1, 1, 1) + o.reshape(1, -1, 1, 1)

    c1 = conv(x_nchw, params["w1"], params["b1"])
    out = jnp.maximum(bn(c1, params["g1"], params["be1"], params["m1"], params["v1"]), 0.0)
    out = conv(out, params["w2"], params["b2"])
    out = bn(out, params["g2"], params["be2"], params["m2"], params["v2"])
    resid = bn(c1, params["g3"], params["be3"], params["m3"], params["v3"])
    return jnp.maximum(out + resid, 0.0)


if __name__ == "__main__":
    key = jax.random.PRNGKey(0)
    N, Cin, Cout, H, W = 2, 4, 8, 16, 16

    keys = jax.random.split(key, 12)
    params = {
        "w1": jax.random.normal(keys[0], (3, 3, Cin, Cout), jnp.float32) * 0.1,
        "b1": jax.random.normal(keys[1], (Cout,), jnp.float32) * 0.05,
        "w2": jax.random.normal(keys[2], (3, 3, Cout, Cout), jnp.float32) * 0.1,
        "b2": jax.random.normal(keys[3], (Cout,), jnp.float32) * 0.05,
        # BN params (deterministic, non-trivial running stats)
        "g1": 1.0 + 0.1 * jax.random.normal(keys[4], (Cout,), jnp.float32),
        "be1": 0.05 * jax.random.normal(keys[5], (Cout,), jnp.float32),
        "m1": 0.1 * jax.random.normal(keys[6], (Cout,), jnp.float32),
        "v1": 1.0 + 0.1 * jax.nn.sigmoid(jax.random.normal(keys[7], (Cout,), jnp.float32)),
        "g2": 1.0 + 0.1 * jax.random.normal(keys[8], (Cout,), jnp.float32),
        "be2": 0.05 * jax.random.normal(keys[9], (Cout,), jnp.float32),
        "m2": 0.1 * jax.random.normal(keys[10], (Cout,), jnp.float32),
        "v2": jnp.ones((Cout,), jnp.float32) * 1.2,
        "g3": jnp.ones((Cout,), jnp.float32) * 0.9,
        "be3": jnp.ones((Cout,), jnp.float32) * 0.02,
        "m3": jnp.zeros((Cout,), jnp.float32),
        "v3": jnp.ones((Cout,), jnp.float32),
    }

    x = jax.random.normal(keys[11], (N, Cin, H, W), jnp.float32)

    y = jax.block_until_ready(residual_block(x, params))
    y_ref = jax.block_until_ready(residual_block_ref(x, params))

    assert y.shape == (N, Cout, H, W)
    # bf16 MXU inputs and bf16 output store -> loosened tolerance vs f32 ref.
    max_err = jnp.max(jnp.abs(y - y_ref))
    assert jnp.allclose(y, y_ref, rtol=2e-2, atol=5e-2), f"max abs err {max_err}"
    print("KERNEL_OK")
</pallas_src>

<mosaic_0001>
module attributes {stable_mosaic.version = 11 : i64} {
  func.func @resblock_kernel(%arg0: i32, %arg1: memref<1x16x16x36xbf16, #tpu.memory_space<vmem>>, %arg2: memref<36x128xbf16, #tpu.memory_space<vmem>>, %arg3: memref<1152x128xbf16, #tpu.memory_space<vmem>>, %arg4: memref<8x128xf32, #tpu.memory_space<vmem>>, %arg5: memref<1x16x16x128xbf16, #tpu.memory_space<vmem>>, %arg6: memref<1x18x18x128xbf16, #tpu.memory_space<vmem>>) attributes {dimension_semantics = [#tpu.dimension_semantics<parallel>], iteration_bounds = array<i64: 2>, scalar_prefetch = 0 : i64, scratch_operands = 1 : i64, tpu.core_type = #tpu.core_type<tc>, window_params = [{transform_indices = @transform_0, window_bounds = array<i64: 1, 16, 16, 36>}, {pipeline_mode = #tpu.pipeline_mode<synchronous>, transform_indices = @transform_1, window_bounds = array<i64: 36, 128>}, {pipeline_mode = #tpu.pipeline_mode<synchronous>, transform_indices = @transform_2, window_bounds = array<i64: 1152, 128>}, {pipeline_mode = #tpu.pipeline_mode<synchronous>, transform_indices = @transform_3, window_bounds = array<i64: 8, 128>}, {transform_indices = @transform_4, window_bounds = array<i64: 1, 16, 16, 128>}]} {
    %c0 = arith.constant 0 : index
    %c0_0 = arith.constant 0 : index
    %0 = vector.load %arg4[%c0, %c0_0] : memref<8x128xf32, #tpu.memory_space<vmem>>, vector<1x128xf32>
    %c1 = arith.constant 1 : index
    %c0_1 = arith.constant 0 : index
    %1 = vector.load %arg4[%c1, %c0_1] : memref<8x128xf32, #tpu.memory_space<vmem>>, vector<1x128xf32>
    %c2 = arith.constant 2 : index
    %c0_2 = arith.constant 0 : index
    %2 = vector.load %arg4[%c2, %c0_2] : memref<8x128xf32, #tpu.memory_space<vmem>>, vector<1x128xf32>
    %c3 = arith.constant 3 : index
    %c0_3 = arith.constant 0 : index
    %3 = vector.load %arg4[%c3, %c0_3] : memref<8x128xf32, #tpu.memory_space<vmem>>, vector<1x128xf32>
    %c4 = arith.constant 4 : index
    %c0_4 = arith.constant 0 : index
    %4 = vector.load %arg4[%c4, %c0_4] : memref<8x128xf32, #tpu.memory_space<vmem>>, vector<1x128xf32>
    %c5 = arith.constant 5 : index
    %c0_5 = arith.constant 0 : index
    %5 = vector.load %arg4[%c5, %c0_5] : memref<8x128xf32, #tpu.memory_space<vmem>>, vector<1x128xf32>
    %cst = arith.constant 0.000000e+00 : bf16
    %6 = vector.broadcast %cst : bf16 to vector<1x1x18x128xbf16>
    %c0_6 = arith.constant 0 : index
    %c0_7 = arith.constant 0 : index
    %c0_8 = arith.constant 0 : index
    %c0_9 = arith.constant 0 : index
    %7 = vector.load %arg6[%c0_6, %c0_7, %c0_8, %c0_9] : memref<1x18x18x128xbf16, #tpu.memory_space<vmem>>, vector<1x1x18x128xbf16>
    tpu.vector_store %arg6[%c0_6, %c0_7, %c0_8, %c0_9], %6 {strides = array<i32>} : memref<1x18x18x128xbf16, #tpu.memory_space<vmem>>, vector<1x1x18x128xbf16>,
    %cst_10 = arith.constant 0.000000e+00 : bf16
    %8 = vector.broadcast %cst_10 : bf16 to vector<1x1x18x128xbf16>
    %c0_11 = arith.constant 0 : index
    %c17 = arith.constant 17 : index
    %c0_12 = arith.constant 0 : index
    %c0_13 = arith.constant 0 : index
    %9 = vector.load %arg6[%c0_11, %c17, %c0_12, %c0_13] : memref<1x18x18x128xbf16, #tpu.memory_space<vmem>>, vector<1x1x18x128xbf16>
    tpu.vector_store %arg6[%c0_11, %c17, %c0_12, %c0_13], %8 {strides = array<i32>} : memref<1x18x18x128xbf16, #tpu.memory_space<vmem>>, vector<1x1x18x128xbf16>,
    %cst_14 = arith.constant 0.000000e+00 : bf16
    %10 = vector.broadcast %cst_14 : bf16 to vector<1x18x1x128xbf16>
    %c0_15 = arith.constant 0 : index
    %c0_16 = arith.constant 0 : index
    %c0_17 = arith.constant 0 : index
    %c0_18 = arith.constant 0 : index
    %11 = vector.load %arg6[%c0_15, %c0_16, %c0_17, %c0_18] : memref<1x18x18x128xbf16, #tpu.memory_space<vmem>>, vector<1x18x1x128xbf16>
    tpu.vector_store %arg6[%c0_15, %c0_16, %c0_17, %c0_18], %10 {strides = array<i32>} : memref<1x18x18x128xbf16, #tpu.memory_space<vmem>>, vector<1x18x1x128xbf16>,
    %cst_19 = arith.constant 0.000000e+00 : bf16
    %12 = vector.broadcast %cst_19 : bf16 to vector<1x18x1x128xbf16>
    %c0_20 = arith.constant 0 : index
    %c0_21 = arith.constant 0 : index
    %c17_22 = arith.constant 17 : index
    %c0_23 = arith.constant 0 : index
    %13 = vector.load %arg6[%c0_20, %c0_21, %c17_22, %c0_23] : memref<1x18x18x128xbf16, #tpu.memory_space<vmem>>, vector<1x18x1x128xbf16>
    tpu.vector_store %arg6[%c0_20, %c0_21, %c17_22, %c0_23], %12 {strides = array<i32>} : memref<1x18x18x128xbf16, #tpu.memory_space<vmem>>, vector<1x18x1x128xbf16>,
    %c0_24 = arith.constant 0 : index
    %c0_25 = arith.constant 0 : index
    %c0_26 = arith.constant 0 : index
    %c0_27 = arith.constant 0 : index
    %14 = vector.load %arg1[%c0_24, %c0_25, %c0_26, %c0_27] : memref<1x16x16x36xbf16, #tpu.memory_space<vmem>>, vector<1x16x16x36xbf16>
    %15 = vector.shape_cast %14 : vector<1x16x16x36xbf16> to vector<256x36xbf16>
    %c0_28 = arith.constant 0 : index
    %c0_29 = arith.constant 0 : index
    %16 = vector.load %arg2[%c0_28, %c0_29] : memref<36x128xbf16, #tpu.memory_space<vmem>>, vector<36x128xbf16>
    %cst_30 = arith.constant dense<0.000000e+00> : vector<256x128xf32>
    %17 = tpu.matmul %15, %16, %cst_30 {dimension_numbers = #tpu.dot_dimension_numbers<[1], [0], [0], [1], [0, 0, 1, 1], [], []>} : vector<256x36xbf16>, vector<36x128xbf16>, vector<256x128xf32> -> vector<256x128xf32>
    %18 = vector.broadcast %4 : vector<1x128xf32> to vector<256x128xf32>
    %19 = arith.mulf %17, %18 : vector<256x128xf32>
    %20 = vector.broadcast %5 : vector<1x128xf32> to vector<256x128xf32>
    %21 = arith.addf %19, %20 : vector<256x128xf32>
    %22 = vector.broadcast %0 : vector<1x128xf32> to vector<256x128xf32>
    %23 = arith.mulf %17, %22 : vector<256x128xf32>
    %24 = vector.broadcast %1 : vector<1x128xf32> to vector<256x128xf32>
    %25 = arith.addf %23, %24 : vector<256x128xf32>
    %cst_31 = arith.constant 0.000000e+00 : f32
    %26 = vector.broadcast %cst_31 : f32 to vector<256x128xf32>
    %27 = arith.maximumf %25, %26 : vector<256x128xf32>
    %28 = vector.shape_cast %27 : vector<256x128xf32> to vector<1x16x16x128xf32>
    %29 = arith.truncf %28 : vector<1x16x16x128xf32> to vector<1x16x16x128xbf16>
    %c0_32 = arith.constant 0 : index
    %c1_33 = arith.constant 1 : index
    %c1_34 = arith.constant 1 : index
    %c0_35 = arith.constant 0 : index
    %30 = vector.load %arg6[%c0_32, %c1_33, %c1_34, %c0_35] : memref<1x18x18x128xbf16, #tpu.memory_space<vmem>>, vector<1x16x16x128xbf16>
    tpu.vector_store %arg6[%c0_32, %c1_33, %c1_34, %c0_35], %29 {strides = array<i32>} : memref<1x18x18x128xbf16, #tpu.memory_space<vmem>>, vector<1x16x16x128xbf16>,
    %c0_36 = arith.constant 0 : index
    %c0_37 = arith.constant 0 : index
    %c0_38 = arith.constant 0 : index
    %c0_39 = arith.constant 0 : index
    %31 = vector.load %arg6[%c0_36, %c0_37, %c0_38, %c0_39] : memref<1x18x18x128xbf16, #tpu.memory_space<vmem>>, vector<1x16x16x128xbf16>
    %32 = vector.shape_cast %31 : vector<1x16x16x128xbf16> to vector<256x128xbf16>
    %c0_40 = arith.constant 0 : index
    %c0_41 = arith.constant 0 : index
    %33 = vector.load %arg3[%c0_40, %c0_41] : memref<1152x128xbf16, #tpu.memory_space<vmem>>, vector<128x128xbf16>
    %cst_42 = arith.constant dense<0.000000e+00> : vector<256x128xf32>
    %34 = tpu.matmul %32, %33, %cst_42 {dimension_numbers = #tpu.dot_dimension_numbers<[1], [0], [0], [1], [0, 0, 1, 1], [], []>} : vector<256x128xbf16>, vector<128x128xbf16>, vector<256x128xf32> -> vector<256x128xf32>
    %c0_43 = arith.constant 0 : index
    %c0_44 = arith.constant 0 : index
    %c1_45 = arith.constant 1 : index
    %c0_46 = arith.constant 0 : index
    %35 = vector.load %arg6[%c0_43, %c0_44, %c1_45, %c0_46] : memref<1x18x18x128xbf16, #tpu.memory_space<vmem>>, vector<1x16x16x128xbf16>
    %36 = vector.shape_cast %35 : vector<1x16x16x128xbf16> to vector<256x128xbf16>
    %c128 = arith.constant 128 : index
    %c0_47 = arith.constant 0 : index
    %37 = vector.load %arg3[%c128, %c0_47] : memref<1152x128xbf16, #tpu.memory_space<vmem>>, vector<128x128xbf16>
    %cst_48 = arith.constant dense<0.000000e+00> : vector<256x128xf32>
    %38 = tpu.matmul %36, %37, %cst_48 {dimension_numbers = #tpu.dot_dimension_numbers<[1], [0], [0], [1], [0, 0, 1, 1], [], []>} : vector<256x128xbf16>, vector<128x128xbf16>, vector<256x128xf32> -> vector<256x128xf32>
    %39 = arith.addf %34, %38 : vector<256x128xf32>
    %c0_49 = arith.constant 0 : index
    %c0_50 = arith.constant 0 : index
    %c2_51 = arith.constant 2 : index
    %c0_52 = arith.constant 0 : index
    %40 = vector.load %arg6[%c0_49, %c0_50, %c2_51, %c0_52] : memref<1x18x18x128xbf16, #tpu.memory_space<vmem>>, vector<1x16x16x128xbf16>
    %41 = vector.shape_cast %40 : vector<1x16x16x128xbf16> to vector<256x128xbf16>
    %c256 = arith.constant 256 : index
    %c0_53 = arith.constant 0 : index
    %42 = vector.load %arg3[%c256, %c0_53] : memref<1152x128xbf16, #tpu.memory_space<vmem>>, vector<128x128xbf16>
    %cst_54 = arith.constant dense<0.000000e+00> : vector<256x128xf32>
    %43 = tpu.matmul %41, %42, %cst_54 {dimension_numbers = #tpu.dot_dimension_numbers<[1], [0], [0], [1], [0, 0, 1, 1], [], []>} : vector<256x128xbf16>, vector<128x128xbf16>, vector<256x128xf32> -> vector<256x128xf32>
    %44 = arith.addf %39, %43 : vector<256x128xf32>
    %c0_55 = arith.constant 0 : index
    %c1_56 = arith.constant 1 : index
    %c0_57 = arith.constant 0 : index
    %c0_58 = arith.constant 0 : index
    %45 = vector.load %arg6[%c0_55, %c1_56, %c0_57, %c0_58] : memref<1x18x18x128xbf16, #tpu.memory_space<vmem>>, vector<1x16x16x128xbf16>
    %46 = vector.shape_cast %45 : vector<1x16x16x128xbf16> to vector<256x128xbf16>
    %c384 = arith.constant 384 : index
    %c0_59 = arith.constant 0 : index
    %47 = vector.load %arg3[%c384, %c0_59] : memref<1152x128xbf16, #tpu.memory_space<vmem>>, vector<128x128xbf16>
    %cst_60 = arith.constant dense<0.000000e+00> : vector<256x128xf32>
    %48 = tpu.matmul %46, %47, %cst_60 {dimension_numbers = #tpu.dot_dimension_numbers<[1], [0], [0], [1], [0, 0, 1, 1], [], []>} : vector<256x128xbf16>, vector<128x128xbf16>, vector<256x128xf32> -> vector<256x128xf32>
    %49 = arith.addf %44, %48 : vector<256x128xf32>
    %c0_61 = arith.constant 0 : index
    %c1_62 = arith.constant 1 : index
    %c1_63 = arith.constant 1 : index
    %c0_64 = arith.constant 0 : index
    %50 = vector.load %arg6[%c0_61, %c1_62, %c1_63, %c0_64] : memref<1x18x18x128xbf16, #tpu.memory_space<vmem>>, vector<1x16x16x128xbf16>
    %51 = vector.shape_cast %50 : vector<1x16x16x128xbf16> to vector<256x128xbf16>
    %c512 = arith.constant 512 : index
    %c0_65 = arith.constant 0 : index
    %52 = vector.load %arg3[%c512, %c0_65] : memref<1152x128xbf16, #tpu.memory_space<vmem>>, vector<128x128xbf16>
    %cst_66 = arith.constant dense<0.000000e+00> : vector<256x128xf32>
    %53 = tpu.matmul %51, %52, %cst_66 {dimension_numbers = #tpu.dot_dimension_numbers<[1], [0], [0], [1], [0, 0, 1, 1], [], []>} : vector<256x128xbf16>, vector<128x128xbf16>, vector<256x128xf32> -> vector<256x128xf32>
    %54 = arith.addf %49, %53 : vector<256x128xf32>
    %c0_67 = arith.constant 0 : index
    %c1_68 = arith.constant 1 : index
    %c2_69 = arith.constant 2 : index
    %c0_70 = arith.constant 0 : index
    %55 = vector.load %arg6[%c0_67, %c1_68, %c2_69, %c0_70] : memref<1x18x18x128xbf16, #tpu.memory_space<vmem>>, vector<1x16x16x128xbf16>
    %56 = vector.shape_cast %55 : vector<1x16x16x128xbf16> to vector<256x128xbf16>
    %c640 = arith.constant 640 : index
    %c0_71 = arith.constant 0 : index
    %57 = vector.load %arg3[%c640, %c0_71] : memref<1152x128xbf16, #tpu.memory_space<vmem>>, vector<128x128xbf16>
    %cst_72 = arith.constant dense<0.000000e+00> : vector<256x128xf32>
    %58 = tpu.matmul %56, %57, %cst_72 {dimension_numbers = #tpu.dot_dimension_numbers<[1], [0], [0], [1], [0, 0, 1, 1], [], []>} : vector<256x128xbf16>, vector<128x128xbf16>, vector<256x128xf32> -> vector<256x128xf32>
    %59 = arith.addf %54, %58 : vector<256x128xf32>
    %c0_73 = arith.constant 0 : index
    %c2_74 = arith.constant 2 : index
    %c0_75 = arith.constant 0 : index
    %c0_76 = arith.constant 0 : index
    %60 = vector.load %arg6[%c0_73, %c2_74, %c0_75, %c0_76] : memref<1x18x18x128xbf16, #tpu.memory_space<vmem>>, vector<1x16x16x128xbf16>
    %61 = vector.shape_cast %60 : vector<1x16x16x128xbf16> to vector<256x128xbf16>
    %c768 = arith.constant 768 : index
    %c0_77 = arith.constant 0 : index
    %62 = vector.load %arg3[%c768, %c0_77] : memref<1152x128xbf16, #tpu.memory_space<vmem>>, vector<128x128xbf16>
    %cst_78 = arith.constant dense<0.000000e+00> : vector<256x128xf32>
    %63 = tpu.matmul %61, %62, %cst_78 {dimension_numbers = #tpu.dot_dimension_numbers<[1], [0], [0], [1], [0, 0, 1, 1], [], []>} : vector<256x128xbf16>, vector<128x128xbf16>, vector<256x128xf32> -> vector<256x128xf32>
    %64 = arith.addf %59, %63 : vector<256x128xf32>
    %c0_79 = arith.constant 0 : index
    %c2_80 = arith.constant 2 : index
    %c1_81 = arith.constant 1 : index
    %c0_82 = arith.constant 0 : index
    %65 = vector.load %arg6[%c0_79, %c2_80, %c1_81, %c0_82] : memref<1x18x18x128xbf16, #tpu.memory_space<vmem>>, vector<1x16x16x128xbf16>
    %66 = vector.shape_cast %65 : vector<1x16x16x128xbf16> to vector<256x128xbf16>
    %c896 = arith.constant 896 : index
    %c0_83 = arith.constant 0 : index
    %67 = vector.load %arg3[%c896, %c0_83] : memref<1152x128xbf16, #tpu.memory_space<vmem>>, vector<128x128xbf16>
    %cst_84 = arith.constant dense<0.000000e+00> : vector<256x128xf32>
    %68 = tpu.matmul %66, %67, %cst_84 {dimension_numbers = #tpu.dot_dimension_numbers<[1], [0], [0], [1], [0, 0, 1, 1], [], []>} : vector<256x128xbf16>, vector<128x128xbf16>, vector<256x128xf32> -> vector<256x128xf32>
    %69 = arith.addf %64, %68 : vector<256x128xf32>
    %c0_85 = arith.constant 0 : index
    %c2_86 = arith.constant 2 : index
    %c2_87 = arith.constant 2 : index
    %c0_88 = arith.constant 0 : index
    %70 = vector.load %arg6[%c0_85, %c2_86, %c2_87, %c0_88] : memref<1x18x18x128xbf16, #tpu.memory_space<vmem>>, vector<1x16x16x128xbf16>
    %71 = vector.shape_cast %70 : vector<1x16x16x128xbf16> to vector<256x128xbf16>
    %c1024 = arith.constant 1024 : index
    %c0_89 = arith.constant 0 : index
    %72 = vector.load %arg3[%c1024, %c0_89] : memref<1152x128xbf16, #tpu.memory_space<vmem>>, vector<128x128xbf16>
    %cst_90 = arith.constant dense<0.000000e+00> : vector<256x128xf32>
    %73 = tpu.matmul %71, %72, %cst_90 {dimension_numbers = #tpu.dot_dimension_numbers<[1], [0], [0], [1], [0, 0, 1, 1], [], []>} : vector<256x128xbf16>, vector<128x128xbf16>, vector<256x128xf32> -> vector<256x128xf32>
    %74 = arith.addf %69, %73 : vector<256x128xf32>
    %75 = vector.broadcast %2 : vector<1x128xf32> to vector<256x128xf32>
    %76 = arith.mulf %74, %75 : vector<256x128xf32>
    %77 = vector.broadcast %3 : vector<1x128xf32> to vector<256x128xf32>
    %78 = arith.addf %76, %77 : vector<256x128xf32>
    %79 = arith.addf %78, %21 : vector<256x128xf32>
    %cst_91 = arith.constant 0.000000e+00 : f32
    %80 = vector.broadcast %cst_91 : f32 to vector<256x128xf32>
    %81 = arith.maximumf %79, %80 : vector<256x128xf32>
    %82 = vector.shape_cast %81 : vector<256x128xf32> to vector<1x16x16x128xf32>
    %83 = arith.truncf %82 : vector<1x16x16x128xf32> to vector<1x16x16x128xbf16>
    %c0_92 = arith.constant 0 : index
    %c0_93 = arith.constant 0 : index
    %c0_94 = arith.constant 0 : index
    %c0_95 = arith.constant 0 : index
    %84 = vector.load %arg5[%c0_92, %c0_93, %c0_94, %c0_95] : memref<1x16x16x128xbf16, #tpu.memory_space<vmem>>, vector<1x16x16x128xbf16>
    tpu.vector_store %arg5[%c0_92, %c0_93, %c0_94, %c0_95], %83 {strides = array<i32>} : memref<1x16x16x128xbf16, #tpu.memory_space<vmem>>, vector<1x16x16x128xbf16>,
    return
  }
  func.func @transform_0(%arg0: i32) -> (i32, i32, i32, i32) {
    %c0_i32 = arith.constant 0 : i32
    %c0_i32_0 = arith.constant 0 : i32
    %c0_i32_1 = arith.constant 0 : i32
    %c0_i32_2 = arith.constant 0 : i32
    return %arg0, %c0_i32, %c0_i32_0, %c0_i32_1 : i32, i32, i32, i32
  }
  func.func @transform_1(%arg0: i32) -> (i32, i32) {
    %c0_i32 = arith.constant 0 : i32
    %c0_i32_0 = arith.constant 0 : i32
    %c0_i32_1 = arith.constant 0 : i32
    return %c0_i32, %c0_i32_0 : i32, i32
  }
  func.func @transform_2(%arg0: i32) -> (i32, i32) {
    %c0_i32 = arith.constant 0 : i32
    %c0_i32_0 = arith.constant 0 : i32
    %c0_i32_1 = arith.constant 0 : i32
    return %c0_i32, %c0_i32_0 : i32, i32
  }
  func.func @transform_3(%arg0: i32) -> (i32, i32) {
    %c0_i32 = arith.constant 0 : i32
    %c0_i32_0 = arith.constant 0 : i32
    %c0_i32_1 = arith.constant 0 : i32
    return %c0_i32, %c0_i32_0 : i32, i32
  }
  func.func @transform_4(%arg0: i32) -> (i32, i32, i32, i32) {
    %c0_i32 = arith.constant 0 : i32
    %c0_i32_0 = arith.constant 0 : i32
    %c0_i32_1 = arith.constant 0 : i32
    %c0_i32_2 = arith.constant 0 : i32
    return %arg0, %c0_i32, %c0_i32_0, %c0_i32_1 : i32, i32, i32, i32
  }
}

</mosaic_0001>

<llo_original>
// kernel: tpu_custom_call.1
$region0: #{tpu_custom_call.1}
  #allocation0 [shape = 'u32[]', space=smem, size = 0x4, offset = 0x4, fixed_abs, tag = 'smem constant byte address 0x4 - core index']
  #allocation1 [shape = 'u32[72,128]{1,0:T(1,128)}', space=vmem, size = 0x9000, scoped, tag = 'internal scratch']
  #allocation2 [shape = 'bf16[1,18,18,128]{3,2,1,0:T(8,128)(2,1)}', space=vmem, size = 0x1b000, scoped, tag = 'scratch operand']
  %s0 = inlined_call_operand.hbm [shape: bf16[2,16,16,36], index: 0, kind: input, shape index: {}]
  %s1 = inlined_call_operand.hbm [shape: bf16[36,128], index: 1, kind: input, shape index: {}]
  %s2 = inlined_call_operand.hbm [shape: bf16[1152,128], index: 2, kind: input, shape index: {}]
  %s3 = inlined_call_operand.hbm [shape: f32[8,128], index: 3, kind: input, shape index: {}]
  %s4 = inlined_call_operand.hbm [shape: bf16[2,16,16,128], index: 4, kind: output, shape index: {}]
  %s5 = sld [smem:[#allocation0]]
  $region65: #{tpu_custom_call.1} parent=0
    _
  %s7 = ssub.s32 1, %s5
  %s8 = scalar_select 0, %s7, %s5
  $region1: #{tpu_custom_call.1} parent=0
    #allocation3 [shape = 'u8[131072]{0}', space=vmem, size = 0x20000, scoped, tag = 'input window, operand 0']
    #allocation4 [shape = 's32[2]{0}', space=sflag, size = 0x8, scoped, tag = 'scoped memory for tpu_custom_call.1']
    #allocation5 [shape = 's32[2]{0}', space=sflag, size = 0x8, scoped, tag = 'scoped memory for tpu_custom_call.1']
    #allocation6 [shape = 'u8[10240]{0}', space=vmem, size = 0x2800, scoped, tag = 'input window, operand 1, single buffered']
    #allocation7 [shape = 's32[1]{0}', space=sflag, size = 0x4, scoped, tag = 'scoped memory for tpu_custom_call.1']
    #allocation8 [shape = 'u8[294912]{0}', space=vmem, size = 0x48000, scoped, tag = 'input window, operand 2, single buffered']
    #allocation9 [shape = 'u8[4096]{0}', space=vmem, size = 0x1000, scoped, tag = 'input window, operand 3, single buffered']
    #allocation10 [shape = 's32[1]{0}', space=sflag, size = 0x4, scoped, tag = 'scoped memory for tpu_custom_call.1']
    #allocation11 [shape = 'u8[131072]{0}', space=vmem, size = 0x20000, scoped, tag = 'output window, operand 0']
    %9 = vsyncpa [#allocation4], 0
    %s10 = scalar_lea.sflag [#allocation4], 1
    %11 = vsyncpa %s10, 0
    %12 = vsyncpa [#allocation7], 0
    %13 = vsyncpa [#allocation10], 0
    %14 = vsyncpa [#allocation5], 0
    %s15 = scalar_lea.sflag [#allocation5], 1
    %16 = vsyncpa %s15, 0
    loop: start=0, step=1, limit=4
    $region2: #{tpu_custom_call.1} parent=1 // loop_pre_header
      _
    $region3: #{tpu_custom_call.1} parent=1 // loop_header
      %s18 = sphi 0, %s22
      %p19 = scmp.ge.s32.totalorder %s18, 4
      %s28 = sphi 0, %s30
      %s31 = sphi 0, %s28
      %s32 = sphi 0, %s31
      %s48 = sphi 0, %s32
      %s52 = sphi 0, %s52
      %s54 = sphi 0, %s52
      %s55 = sphi 0, %s54
      %s69 = sphi 0, %s55
      %s73 = sphi 0, %s73
      %s75 = sphi 0, %s73
      %s76 = sphi 0, %s75
      %s90 = sphi 0, %s76
      %s94 = sphi 0, %s94
      %s96 = sphi 0, %s94
      %s97 = sphi 0, %s96
      %s111 = sphi 0, %s97
      %s117 = sphi 0, %s119
      %s120 = sphi 0, %s117
      %s121 = sphi 0, %s120
      %s137 = sphi 0, %s121
    $region4: #{tpu_custom_call.1} parent=1 // loop_header_branch
      %21 = sbr.rel (%p19) target = $region8
    $region5: #{tpu_custom_call.1} parent=1 // loop_body
      %s23 = ssub.s32 %s18, 1
      %s24 = ssub.s32 %s18, 2
      %s25 = sadd.s32 %s18, 1
      %s26 = ssub.s32 %s18, %s25
      %p27 = scmp.eq.s32.totalorder %s26, 0
      %s29 = sadd.s32 %s28, 1
      %s30 = scalar_select %p27, %s28, %s29
      %p33 = pneg %p27
      %p34 = scmp.eq.s32.totalorder %s18, 1
      %p35 = por %p33, %p34
      %p36 = scmp.ne.s32.totalorder %s28, %s31
      %p37 = scmp.eq.s32.totalorder %s18, 0
      %p38 = por %p36, %p37
      %p39 = scmp.ne.s32.totalorder %s28, %s31
      %p40 = scmp.eq.s32.totalorder %s23, 1
      %p41 = por %p39, %p40
      %p42 = scmp.ne.s32.totalorder %s31, %s32
      %p43 = scmp.eq.s32.totalorder %s23, 0
      %p44 = por %p42, %p43
      %p45 = scmp.ne.s32.totalorder %s31, %s32
      %p46 = scmp.eq.s32.totalorder %s24, 1
      %p47 = por %p45, %p46
      %p49 = scmp.ne.s32.totalorder %s32, %s48
      %p50 = scmp.eq.s32.totalorder %s24, 0
      %p51 = por %p49, %p50
      %s53 = sadd.s32 %s52, 1
      %p56 = scmp.eq.s32.totalorder %s18, 1
      %p57 = scmp.ne.s32.totalorder %s52, %s54
      %p58 = scmp.eq.s32.totalorder %s18, 0
      %p59 = por %p57, %p58
      %p60 = scmp.ne.s32.totalorder %s52, %s54
      %p61 = scmp.eq.s32.totalorder %s23, 1
      %p62 = por %p60, %p61
      %p63 = scmp.ne.s32.totalorder %s54, %s55
      %p64 = scmp.eq.s32.totalorder %s23, 0
      %p65 = por %p63, %p64
      %p66 = scmp.ne.s32.totalorder %s54, %s55
      %p67 = scmp.eq.s32.totalorder %s24, 1
      %p68 = por %p66, %p67
      %p70 = scmp.ne.s32.totalorder %s55, %s69
      %p71 = scmp.eq.s32.totalorder %s24, 0
      %p72 = por %p70, %p71
      %s74 = sadd.s32 %s73, 1
      %p77 = scmp.eq.s32.totalorder %s18, 1
      %p78 = scmp.ne.s32.totalorder %s73, %s75
      %p79 = scmp.eq.s32.totalorder %s18, 0
      %p80 = por %p78, %p79
      %p81 = scmp.ne.s32.totalorder %s73, %s75
      %p82 = scmp.eq.s32.totalorder %s23, 1
      %p83 = por %p81, %p82
      %p84 = scmp.ne.s32.totalorder %s75, %s76
      %p85 = scmp.eq.s32.totalorder %s23, 0
      %p86 = por %p84, %p85
      %p87 = scmp.ne.s32.totalorder %s75, %s76
      %p88 = scmp.eq.s32.totalorder %s24, 1
      %p89 = por %p87, %p88
      %p91 = scmp.ne.s32.totalorder %s76, %s90
      %p92 = scmp.eq.s32.totalorder %s24, 0
      %p93 = por %p91, %p92
      %s95 = sadd.s32 %s94, 1
      %p98 = scmp.eq.s32.totalorder %s18, 1
      %p99 = scmp.ne.s32.totalorder %s94, %s96
      %p100 = scmp.eq.s32.totalorder %s18, 0
      %p101 = por %p99, %p100
      %p102 = scmp.ne.s32.totalorder %s94, %s96
      %p103 = scmp.eq.s32.totalorder %s23, 1
      %p104 = por %p102, %p103
      %p105 = scmp.ne.s32.totalorder %s96, %s97
      %p106 = scmp.eq.s32.totalorder %s23, 0
      %p107 = por %p105, %p106
      %p108 = scmp.ne.s32.totalorder %s96, %s97
      %p109 = scmp.eq.s32.totalorder %s24, 1
      %p110 = por %p108, %p109
      %p112 = scmp.ne.s32.totalorder %s97, %s111
      %p113 = scmp.eq.s32.totalorder %s24, 0
      %p114 = por %p112, %p113
      %s115 = ssub.s32 %s18, %s25
      %p116 = scmp.eq.s32.totalorder %s115, 0
      %s118 = sadd.s32 %s117, 1
      %s119 = scalar_select %p116, %s117, %s118
      %p122 = pneg %p116
      %p123 = scmp.eq.s32.totalorder %s18, 1
      %p124 = por %p122, %p123
      %p125 = scmp.ne.s32.totalorder %s117, %s120
      %p126 = scmp.eq.s32.totalorder %s18, 0
      %p127 = por %p125, %p126
      %p128 = scmp.ne.s32.totalorder %s117, %s120
      %p129 = scmp.eq.s32.totalorder %s23, 1
      %p130 = por %p128, %p129
      %p131 = scmp.ne.s32.totalorder %s120, %s121
      %p132 = scmp.eq.s32.totalorder %s23, 0
      %p133 = por %p131, %p132
      %p134 = scmp.ne.s32.totalorder %s120, %s121
      %p135 = scmp.eq.s32.totalorder %s24, 1
      %p136 = por %p134, %p135
      %p138 = scmp.ne.s32.totalorder %s121, %s137
      %p139 = scmp.eq.s32.totalorder %s24, 0
      %p140 = por %p138, %p139
      %p141 = scmp.le.s32.totalorder 1, %s18
      %p142 = scmp.lt.s32.totalorder %s18, 3
      %p143 = pnand %p141, %p142
      %p144 = pneg %p143
      // Predicated region
      $region9: #{tpu_custom_call.1} parent=5 // pred_check
        _
      $region10: #{tpu_custom_call.1} parent=5 // pred_check_branch
        %146 = sbr.rel (%p143) target = $region12
      $region11: #{tpu_custom_call.1} parent=5 // pred_region
        %s147 = ssub.s32 %s18, 1
        // Predicated region
        $region13: #{tpu_custom_call.1} parent=11 // pred_check
          %p148 = pneg %p65
        $region14: #{tpu_custom_call.1} parent=11 // pred_check_branch
          %150 = sbr.rel (%p148) target = $region16
        $region15: #{tpu_custom_call.1} parent=11 // pred_region
          %152 = vsyncadd [#allocation7], 0
          %s153 = sshll.u32 %s1, 4
          %s154 = int_to_ptr.hbm [resolvable:$true] %s153
          %s155 = sshll.u32 [#allocation6], 4
          %s156 = int_to_ptr.vmem [resolvable:$true] %s155
          %161 = dma.hbm_to_vmem [thread:$0]  %s154, 320, %s156, [#allocation7], 64, 64, 4
        $region16: #{tpu_custom_call.1} parent=11 // pred_fallthru
          _
        // Predicated region
        $region17: #{tpu_custom_call.1} parent=11 // pred_check
          %p162 = pneg %p86
        $region18: #{tpu_custom_call.1} parent=11 // pred_check_branch
          %164 = sbr.rel (%p162) target = $region20
        $region19: #{tpu_custom_call.1} parent=11 // pred_region
          %166 = vsyncadd [#allocation7], 0
          %s167 = sshll.u32 %s2, 4
          %s168 = int_to_ptr.hbm [resolvable:$true] %s167
          %s169 = sshll.u32 [#allocation8], 4
          %s170 = int_to_ptr.vmem [resolvable:$true] %s169
          %175 = dma.hbm_to_vmem [thread:$0]  %s168, 9216, %s170, [#allocation7], 64, 64, 4
        $region20: #{tpu_custom_call.1} parent=11 // pred_fallthru
          _
        // Predicated region
        $region21: #{tpu_custom_call.1} parent=11 // pred_check
          %p176 = pneg %p107
        $region22: #{tpu_custom_call.1} parent=11 // pred_check_branch
          %178 = sbr.rel (%p176) target = $region24
        $region23: #{tpu_custom_call.1} parent=11 // pred_region
          %180 = vsyncadd [#allocation10], 0
          %s182 = sshll.u32 %s3, 4
          %s183 = int_to_ptr.hbm [resolvable:$true] %s182
          %s184 = sshll.u32 [#allocation9], 4
          %s185 = int_to_ptr.vmem [resolvable:$true] %s184
          %187 = dma.hbm_to_vmem [thread:$0]  %s183, 128, %s185, [#allocation10]
        $region24: #{tpu_custom_call.1} parent=11 // pred_fallthru
          _
      $region12: #{tpu_custom_call.1} parent=5 // pred_fallthru
        _
      %p188 = scmp.lt.s32.totalorder %s18, 2
      // Predicated region
      $region25: #{tpu_custom_call.1} parent=5 // pred_check
        %p189 = pneg %p188
      $region26: #{tpu_custom_call.1} parent=5 // pred_check_branch
        %191 = sbr.rel (%p189) target = $region28
      $region27: #{tpu_custom_call.1} parent=5 // pred_region
        // Predicated region
        $region29: #{tpu_custom_call.1} parent=27 // pred_check
          %p192 = pneg %p38
        $region30: #{tpu_custom_call.1} parent=27 // pred_check_branch
          %194 = sbr.rel (%p192) target = $region32
        $region31: #{tpu_custom_call.1} parent=27 // pred_region
          %s195 = sand.u32 %s28, 1
          %s196 = scalar_lea.sflag [#allocation4], %s195
          %s197 = sand.u32 %s28, 1
          %s198 = smul.addr %s197, 128
          %s199 = scalar_lea.vmem [#allocation3], %s198
          %201 = vsyncadd %s196, 0
          %s202 = smul.addr %s18, 32
          %s203 = smul.addr %s202, 4
          %s204 = scalar_lea.hbm %s0, %s203
          %s205 = sshll.u32 %s204, 4
          %s206 = int_to_ptr.hbm [resolvable:$true] %s205
          %s207 = sshll.u32 %s199, 4
          %s208 = int_to_ptr.vmem [resolvable:$true] %s207
          %213 = dma.hbm_to_vmem [thread:$0]  %s206, 2048, %s208, %s196, 64, 64, 4
        $region32: #{tpu_custom_call.1} parent=27 // pred_fallthru
          _
      $region28: #{tpu_custom_call.1} parent=5 // pred_fallthru
        _
      %p214 = scmp.le.s32.totalorder 1, %s18
      %p215 = scmp.lt.s32.totalorder %s18, 3
      %p216 = pnand %p214, %p215
      %p217 = pneg %p216
      // Predicated region
      $region33: #{tpu_custom_call.1} parent=5 // pred_check
        _
      $region34: #{tpu_custom_call.1} parent=5 // pred_check_branch
        %219 = sbr.rel (%p216) target = $region36
      $region35: #{tpu_custom_call.1} parent=5 // pred_region
        %s220 = ssub.s32 %s18, 1
        %s221 = sand.u32 %s31, 1
        %s222 = scalar_lea.sflag [#allocation4], %s221
        %s223 = sand.u32 %s31, 1
        %s224 = smul.addr %s223, 128
        %s225 = scalar_lea.vmem [#allocation3], %s224
        // Predicated region
        $region37: #{tpu_custom_call.1} parent=35 // pred_check
          %p226 = pneg %p44
        $region38: #{tpu_custom_call.1} parent=35 // pred_check_branch
          %228 = sbr.rel (%p226) target = $region40
        $region39: #{tpu_custom_call.1} parent=35 // pred_region
          %230 = dma.done %s222, 2048
        $region40: #{tpu_custom_call.1} parent=35 // pred_fallthru
          _
        // Predicated region
        $region41: #{tpu_custom_call.1} parent=35 // pred_check
          %p231 = pneg %p65
        $region42: #{tpu_custom_call.1} parent=35 // pred_check_branch
          %233 = sbr.rel (%p231) target = $region44
        $region43: #{tpu_custom_call.1} parent=35 // pred_region
          %235 = dma.done [#allocation7], 320
        $region44: #{tpu_custom_call.1} parent=35 // pred_fallthru
          _
        // Predicated region
        $region45: #{tpu_custom_call.1} parent=35 // pred_check
          %p236 = pneg %p86
        $region46: #{tpu_custom_call.1} parent=35 // pred_check_branch
          %238 = sbr.rel (%p236) target = $region48
        $region47: #{tpu_custom_call.1} parent=35 // pred_region
          %240 = dma.done [#allocation7], 9216
        $region48: #{tpu_custom_call.1} parent=35 // pred_fallthru
          _
        // Predicated region
        $region49: #{tpu_custom_call.1} parent=35 // pred_check
          %p241 = pneg %p107
        $region50: #{tpu_custom_call.1} parent=35 // pred_check_branch
          %243 = sbr.rel (%p241) target = $region52
        $region51: #{tpu_custom_call.1} parent=35 // pred_region
          %245 = dma.done [#allocation10], 128
        $region52: #{tpu_custom_call.1} parent=35 // pred_fallthru
          _
        %s246 = sand.u32 %s31, 1
        %s247 = scalar_lea.sflag [#allocation4], %s246
        %s248 = sand.u32 %s31, 1
        %s249 = smul.addr %s248, 128
        %s250 = scalar_lea.vmem [#allocation3], %s249
        %p251 = pneg %p44
        %p252 = pneg %p41
        %p253 = pneg %p65
        %p254 = pneg %p62
        %p255 = pneg %p86
        %p256 = pneg %p83
        %p257 = pneg %p107
        %p258 = pneg %p104
        %p259 = pneg %p133
        %p260 = pneg %p130
        %s261 = sand.u32 %s120, 1
        %s262 = scalar_lea.sflag [#allocation5], %s261
        %s263 = sand.u32 %s120, 1
        %s264 = smul.addr %s263, 128
        %s265 = scalar_lea.vmem [#allocation11], %s264
        %v267 = vld [vmem:[#allocation9] sm:$0x1]
        %v268 = vld [vmem:[#allocation9 + $0x1] sm:$0x1]
        %v269 = vld [vmem:[#allocation9 + $0x2] sm:$0x1]
        %v270 = vld [vmem:[#allocation9 + $0x3] sm:$0x1]
        %v271 = vld [vmem:[#allocation9 + $0x4] sm:$0x1]
        %v272 = vld [vmem:[#allocation9 + $0x5] sm:$0x1]
        %273 = vst [vmem:[#allocation2] sm:$0xf] 0
        %274 = vst [vmem:[#allocation2 + $0x4] sm:$0xf] 0
        %275 = vst [vmem:[#allocation2 + $0x8] sm:$0x1] 0
        %s276 = scalar_lea.vmem [#allocation2], 204
        %277 = vst [vmem:[%s276] sm:$0xf] 0
        %278 = vst [vmem:[%s276 + $0x4] sm:$0xf] 0
        %279 = vst [vmem:[%s276 + $0x8] sm:$0x1] 0
        %vm280 = vcmask 1040384
        %vm281 = vsmask.f32 256
        %vm282 = vmand %vm280, %vm281
        %v283 = vld [vmem:[#allocation2] sm:$0x1]
        %v284 = vsel %vm282, 0, %v283
        %285 = vst [vmem:[#allocation2] sm:$0x1] %v284
        %v286 = vld [vmem:[#allocation2 + $0xc] sm:$0x1]
        %v287 = vsel %vm282, 0, %v286
        %288 = vst [vmem:[#allocation2 + $0xc] sm:$0x1] %v287
        %v289 = vld [vmem:[#allocation2 + $0x18] sm:$0x1]
        %v290 = vsel %vm282, 0, %v289
        %291 = vst [vmem:[#allocation2 + $0x18] sm:$0x1] %v290
        %v292 = vld [vmem:[#allocation2 + $0x24] sm:$0x1]
        %v293 = vsel %vm282, 0, %v292
        %294 = vst [vmem:[#allocation2 + $0x24] sm:$0x1] %v293
        %v295 = vld [vmem:[#allocation2 + $0x30] sm:$0x1]
        %v296 = vsel %vm282, 0, %v295
        %297 = vst [vmem:[#allocation2 + $0x30] sm:$0x1] %v296
        %v298 = vld [vmem:[#allocation2 + $0x3c] sm:$0x1]
        %v299 = vsel %vm282, 0, %v298
        %300 = vst [vmem:[#allocation2 + $0x3c] sm:$0x1] %v299
        %v301 = vld [vmem:[#allocation2 + $0x48] sm:$0x1]
        %v302 = vsel %vm282, 0, %v301
        %303 = vst [vmem:[#allocation2 + $0x48] sm:$0x1] %v302
        %v304 = vld [vmem:[#allocation2 + $0x54] sm:$0x1]
        %v305 = vsel %vm282, 0, %v304
        %306 = vst [vmem:[#allocation2 + $0x54] sm:$0x1] %v305
        %v307 = vld [vmem:[#allocation2 + $0x60] sm:$0x1]
        %v308 = vsel %vm282, 0, %v307
        %309 = vst [vmem:[#allocation2 + $0x60] sm:$0x1] %v308
        %v310 = vld [vmem:[#allocation2 + $0x6c] sm:$0x1]
        %v311 = vsel %vm282, 0, %v310
        %312 = vst [vmem:[#allocation2 + $0x6c] sm:$0x1] %v311
        %v313 = vld [vmem:[#allocation2 + $0x78] sm:$0x1]
        %v314 = vsel %vm282, 0, %v313
        %315 = vst [vmem:[#allocation2 + $0x78] sm:$0x1] %v314
        %v316 = vld [vmem:[#allocation2 + $0x84] sm:$0x1]
        %v317 = vsel %vm282, 0, %v316
        %318 = vst [vmem:[#allocation2 + $0x84] sm:$0x1] %v317
        %v319 = vld [vmem:[#allocation2 + $0x90] sm:$0x1]
        %v320 = vsel %vm282, 0, %v319
        %321 = vst [vmem:[#allocation2 + $0x90] sm:$0x1] %v320
        %v322 = vld [vmem:[#allocation2 + $0x9c] sm:$0x1]
        %v323 = vsel %vm282, 0, %v322
        %324 = vst [vmem:[#allocation2 + $0x9c] sm:$0x1] %v323
        %v325 = vld [vmem:[#allocation2 + $0xa8] sm:$0x1]
        %v326 = vsel %vm282, 0, %v325
        %327 = vst [vmem:[#allocation2 + $0xa8] sm:$0x1] %v326
        %v328 = vld [vmem:[#allocation2 + $0xb4] sm:$0x1]
        %v329 = vsel %vm282, 0, %v328
        %330 = vst [vmem:[#allocation2 + $0xb4] sm:$0x1] %v329
        %v331 = vld [vmem:[#allocation2 + $0xc0] sm:$0x1]
        %v332 = vsel %vm282, 0, %v331
        %333 = vst [vmem:[#allocation2 + $0xc0] sm:$0x1] %v332
        %v334 = vld [vmem:[#allocation2 + $0xcc] sm:$0x1]
        %v335 = vsel %vm282, 0, %v334
        %336 = vst [vmem:[#allocation2 + $0xcc] sm:$0x1] %v335
        %vm337 = vsmask.f32 7938
        %vm338 = vmand %vm280, %vm337
        %v339 = vld [vmem:[#allocation2 + $0x8] sm:$0x1]
        %v340 = vsel %vm338, 0, %v339
        %341 = vst [vmem:[#allocation2 + $0x8] sm:$0x1] %v340
        %v342 = vld [vmem:[#allocation2 + $0x14] sm:$0x1]
        %v343 = vsel %vm338, 0, %v342
        %344 = vst [vmem:[#allocation2 + $0x14] sm:$0x1] %v343
        %v345 = vld [vmem:[#allocation2 + $0x20] sm:$0x1]
        %v346 = vsel %vm338, 0, %v345
        %347 = vst [vmem:[#allocation2 + $0x20] sm:$0x1] %v346
        %v348 = vld [vmem:[#allocation2 + $0x2c] sm:$0x1]
        %v349 = vsel %vm338, 0, %v348
        %350 = vst [vmem:[#allocation2 + $0x2c] sm:$0x1] %v349
        %v351 = vld [vmem:[#allocation2 + $0x38] sm:$0x1]
        %v352 = vsel %vm338, 0, %v351
        %353 = vst [vmem:[#allocation2 + $0x38] sm:$0x1] %v352
        %v354 = vld [vmem:[#allocation2 + $0x44] sm:$0x1]
        %v355 = vsel %vm338, 0, %v354
        %356 = vst [vmem:[#allocation2 + $0x44] sm:$0x1] %v355
        %v357 = vld [vmem:[#allocation2 + $0x50] sm:$0x1]
        %v358 = vsel %vm338, 0, %v357
        %359 = vst [vmem:[#allocation2 + $0x50] sm:$0x1] %v358
        %v360 = vld [vmem:[#allocation2 + $0x5c] sm:$0x1]
        %v361 = vsel %vm338, 0, %v360
        %362 = vst [vmem:[#allocation2 + $0x5c] sm:$0x1] %v361
        %v363 = vld [vmem:[#allocation2 + $0x68] sm:$0x1]
        %v364 = vsel %vm338, 0, %v363
        %365 = vst [vmem:[#allocation2 + $0x68] sm:$0x1] %v364
        %v366 = vld [vmem:[#allocation2 + $0x74] sm:$0x1]
        %v367 = vsel %vm338, 0, %v366
        %368 = vst [vmem:[#allocation2 + $0x74] sm:$0x1] %v367
        %v369 = vld [vmem:[#allocation2 + $0x80] sm:$0x1]
        %v370 = vsel %vm338, 0, %v369
        %371 = vst [vmem:[#allocation2 + $0x80] sm:$0x1] %v370
        %v372 = vld [vmem:[#allocation2 + $0x8c] sm:$0x1]
        %v373 = vsel %vm338, 0, %v372
        %374 = vst [vmem:[#allocation2 + $0x8c] sm:$0x1] %v373
        %v375 = vld [vmem:[#allocation2 + $0x98] sm:$0x1]
        %v376 = vsel %vm338, 0, %v375
        %377 = vst [vmem:[#allocation2 + $0x98] sm:$0x1] %v376
        %v378 = vld [vmem:[#allocation2 + $0xa4] sm:$0x1]
        %v379 = vsel %vm338, 0, %v378
        %380 = vst [vmem:[#allocation2 + $0xa4] sm:$0x1] %v379
        %v381 = vld [vmem:[#allocation2 + $0xb0] sm:$0x1]
        %v382 = vsel %vm338, 0, %v381
        %383 = vst [vmem:[#allocation2 + $0xb0] sm:$0x1] %v382
        %v384 = vld [vmem:[#allocation2 + $0xbc] sm:$0x1]
        %v385 = vsel %vm338, 0, %v384
        %386 = vst [vmem:[#allocation2 + $0xbc] sm:$0x1] %v385
        %v387 = vld [vmem:[#allocation2 + $0xc8] sm:$0x1]
        %v388 = vsel %vm338, 0, %v387
        %389 = vst [vmem:[#allocation2 + $0xc8] sm:$0x1] %v388
        %v390 = vld [vmem:[#allocation2 + $0xd4] sm:$0x1]
        %v391 = vsel %vm338, 0, %v390
        %392 = vst [vmem:[#allocation2 + $0xd4] sm:$0x1] %v391
        %v393 = vld [vmem:[%s225] sm:$0xf]
        %v394 = vld [vmem:[%s225 + $0x4] sm:$0xf]
        %v395 = vld [vmem:[%s225 + $0x8] sm:$0xf]
        %v396 = vld [vmem:[%s225 + $0xc] sm:$0xf]
        %v397 = vld [vmem:[%s225 + $0x10] sm:$0xf]
        %v398 = vld [vmem:[%s225 + $0x14] sm:$0xf]
        %v399 = vld [vmem:[%s225 + $0x18] sm:$0xf]
        %v400 = vld [vmem:[%s225 + $0x1c] sm:$0xf]
        %v401 = vld [vmem:[%s225 + $0x20] sm:$0xf]
        %v402 = vld [vmem:[%s225 + $0x24] sm:$0xf]
        %v403 = vld [vmem:[%s225 + $0x28] sm:$0xf]
        %v404 = vld [vmem:[%s225 + $0x2c] sm:$0xf]
        %v405 = vld [vmem:[%s225 + $0x30] sm:$0xf]
        %v406 = vld [vmem:[%s225 + $0x34] sm:$0xf]
        %v407 = vld [vmem:[%s225 + $0x38] sm:$0xf]
        %v408 = vld [vmem:[%s225 + $0x3c] sm:$0xf]
        %v409 = vld [vmem:[%s225 + $0x40] sm:$0xf]
        %v410 = vld [vmem:[%s225 + $0x44] sm:$0xf]
        %v411 = vld [vmem:[%s225 + $0x48] sm:$0xf]
        %v412 = vld [vmem:[%s225 + $0x4c] sm:$0xf]
        %v413 = vld [vmem:[%s225 + $0x50] sm:$0xf]
        %v414 = vld [vmem:[%s225 + $0x54] sm:$0xf]
        %v415 = vld [vmem:[%s225 + $0x58] sm:$0xf]
        %v416 = vld [vmem:[%s225 + $0x5c] sm:$0xf]
        %v417 = vld [vmem:[%s225 + $0x60] sm:$0xf]
        %v418 = vld [vmem:[%s225 + $0x64] sm:$0xf]
        %v419 = vld [vmem:[%s225 + $0x68] sm:$0xf]
        %v420 = vld [vmem:[%s225 + $0x6c] sm:$0xf]
        %v421 = vld [vmem:[%s225 + $0x70] sm:$0xf]
        %v422 = vld [vmem:[%s225 + $0x74] sm:$0xf]
        %v423 = vld [vmem:[%s225 + $0x78] sm:$0xf]
        %v424 = vld [vmem:[%s225 + $0x7c] sm:$0xf]
        %v425 = vld [vmem:[#allocation6] sm:$0xf]
        %v426 = vld [vmem:[#allocation6 + $0x4] sm:$0xf]
        %v427 = vld [vmem:[#allocation6 + $0x8] sm:$0xf]
        %v428 = vld [vmem:[#allocation6 + $0xc] sm:$0xf]
        %v429 = vld [vmem:[#allocation6 + $0x10] sm:$0x3]
        %v462 = vunpack.c.l.b16 %v393
        %v463 = vunpack.c.l.b16 %v394
        %v464 = vunpack.c.l.b16 %v395
        %v465 = vunpack.c.l.b16 %v396
        %v466 = vunpack.c.l.b16 %v397
        %v467 = vunpack.c.l.b16 %v398
        %v468 = vunpack.c.l.b16 %v399
        %v469 = vunpack.c.l.b16 %v400
        %v470 = vunpack.c.l.b16 %v401
        %v471 = vunpack.c.l.b16 %v402
        %v472 = vunpack.c.l.b16 %v403
        %v473 = vunpack.c.l.b16 %v404
        %v474 = vunpack.c.l.b16 %v405
        %v475 = vunpack.c.l.b16 %v406
        %v476 = vunpack.c.l.b16 %v407
        %v477 = vunpack.c.l.b16 %v408
        %v478 = vunpack.c.l.b16 %v409
        %v479 = vunpack.c.l.b16 %v410
        %v480 = vunpack.c.l.b16 %v411
        %v481 = vunpack.c.l.b16 %v412
        %v482 = vunpack.c.l.b16 %v413
        %v483 = vunpack.c.l.b16 %v414
        %v484 = vunpack.c.l.b16 %v415
        %v485 = vunpack.c.l.b16 %v416
        %v486 = vunpack.c.l.b16 %v417
        %v487 = vunpack.c.l.b16 %v418
        %v488 = vunpack.c.l.b16 %v419
        %v489 = vunpack.c.l.b16 %v420
        %v490 = vunpack.c.l.b16 %v421
        %v491 = vunpack.c.l.b16 %v422
        %v492 = vunpack.c.l.b16 %v423
        %v493 = vunpack.c.l.b16 %v424
        %v494 = vpack.c.b16 %v463, %v462
        %v495 = vpack.c.b16 %v465, %v464
        %v496 = vpack.c.b16 %v467, %v466
        %v497 = vpack.c.b16 %v469, %v468
        %v498 = vpack.c.b16 %v471, %v470
        %v499 = vpack.c.b16 %v473, %v472
        %v500 = vpack.c.b16 %v475, %v474
        %v501 = vpack.c.b16 %v477, %v476
        %v502 = vpack.c.b16 %v479, %v478
        %v503 = vpack.c.b16 %v481, %v480
        %v504 = vpack.c.b16 %v483, %v482
        %v505 = vpack.c.b16 %v485, %v484
        %v506 = vpack.c.b16 %v487, %v486
        %v507 = vpack.c.b16 %v489, %v488
        %v508 = vpack.c.b16 %v491, %v490
        %v509 = vpack.c.b16 %v493, %v492
        %v515 = vunpack.c.l.b16 %v425
        %v516 = vunpack.c.l.b16 %v426
        %v517 = vunpack.c.l.b16 %v427
        %v518 = vunpack.c.l.b16 %v428
        %v519 = vunpack.c.l.b16 %v429
        %v520 = vpack.c.b16 %v516, %v515
        %v521 = vpack.c.b16 %v518, %v517
        %v522 = vpack.c.b16 %v519, %v519
        %vm525 = vcmask 293888
        %v527 = vsel %vm525, %v494, 0
        %v530 = vsel %vm525, %v495, 0
        %v533 = vsel %vm525, %v496, 0
        %v536 = vsel %vm525, %v497, 0
        %v539 = vsel %vm525, %v498, 0
        %v542 = vsel %vm525, %v499, 0
        %v545 = vsel %vm525, %v500, 0
        %v548 = vsel %vm525, %v501, 0
        %v551 = vsel %vm525, %v502, 0
        %v554 = vsel %vm525, %v503, 0
        %v557 = vsel %vm525, %v504, 0
        %v560 = vsel %vm525, %v505, 0
        %v563 = vsel %vm525, %v506, 0
        %v566 = vsel %vm525, %v507, 0
        %v569 = vsel %vm525, %v508, 0
        %v572 = vsel %vm525, %v509, 0
        %vm574 = vcmask 1041408
        %v576 = vsel %vm574, %v522, 0
        %578 = vmatpush.bf16.msra.mxu0 0
        %579 = vmatpush.bf16.msra.mxu0 0
        %580 = vmatpush.bf16.msra.mxu0 0
        %581 = vmatpush.bf16.msra.mxu0 0
        %582 = vmatpush.bf16.msra.mxu0 0
        %583 = vmatpush.bf16.msra.mxu0 %v576
        %584 = vmatpush.bf16.msra.mxu0 %v521
        %585 = vmatpush.bf16.msra.mxu0 %v520
        %586 = vmatmul.bf16.gmra.mxu0 %v527
        %v587 = vpop.f32.mrf.mxu0
        %v588 = vadd.f32 0.0, %v587
        %v589 = vpop.f32.mrf.mxu0
        %v590 = vadd.f32 0.0, %v589
        %591 = vmatmul.bf16.gmra.mxu0 %v530
        %v592 = vpop.f32.mrf.mxu0
        %v593 = vadd.f32 0.0, %v592
        %v594 = vpop.f32.mrf.mxu0
        %v595 = vadd.f32 0.0, %v594
        %596 = vmatmul.bf16.gmra.mxu0 %v533
        %v597 = vpop.f32.mrf.mxu0
        %v598 = vadd.f32 0.0, %v597
        %v599 = vpop.f32.mrf.mxu0
        %v600 = vadd.f32 0.0, %v599
        %601 = vmatmul.bf16.gmra.mxu0 %v536
        %v602 = vpop.f32.mrf.mxu0
        %v603 = vadd.f32 0.0, %v602
        %v604 = vpop.f32.mrf.mxu0
        %v605 = vadd.f32 0.0, %v604
        %606 = vmatmul.bf16.gmra.mxu0 %v539
        %v607 = vpop.f32.mrf.mxu0
        %v608 = vadd.f32 0.0, %v607
        %v609 = vpop.f32.mrf.mxu0
        %v610 = vadd.f32 0.0, %v609
        %611 = vmatmul.bf16.gmra.mxu0 %v542
        %v612 = vpop.f32.mrf.mxu0
        %v613 = vadd.f32 0.0, %v612
        %v614 = vpop.f32.mrf.mxu0
        %v615 = vadd.f32 0.0, %v614
        %616 = vmatmul.bf16.gmra.mxu0 %v545
        %v617 = vpop.f32.mrf.mxu0
        %v618 = vadd.f32 0.0, %v617
        %v619 = vpop.f32.mrf.mxu0
        %v620 = vadd.f32 0.0, %v619
        %621 = vmatmul.bf16.gmra.mxu0 %v548
        %v622 = vpop.f32.mrf.mxu0
        %v623 = vadd.f32 0.0, %v622
        %v624 = vpop.f32.mrf.mxu0
        %v625 = vadd.f32 0.0, %v624
        %626 = vmatmul.bf16.gmra.mxu0 %v551
        %v627 = vpop.f32.mrf.mxu0
        %v628 = vadd.f32 0.0, %v627
        %v629 = vpop.f32.mrf.mxu0
        %v630 = vadd.f32 0.0, %v629
        %631 = vmatmul.bf16.gmra.mxu0 %v554
        %v632 = vpop.f32.mrf.mxu0
        %v633 = vadd.f32 0.0, %v632
        %v634 = vpop.f32.mrf.mxu0
        %v635 = vadd.f32 0.0, %v634
        %636 = vmatmul.bf16.gmra.mxu0 %v557
        %v637 = vpop.f32.mrf.mxu0
        %v638 = vadd.f32 0.0, %v637
        %v639 = vpop.f32.mrf.mxu0
        %v640 = vadd.f32 0.0, %v639
        %641 = vmatmul.bf16.gmra.mxu0 %v560
        %v642 = vpop.f32.mrf.mxu0
        %v643 = vadd.f32 0.0, %v642
        %v644 = vpop.f32.mrf.mxu0
        %v645 = vadd.f32 0.0, %v644
        %646 = vmatmul.bf16.gmra.mxu0 %v563
        %v647 = vpop.f32.mrf.mxu0
        %v648 = vadd.f32 0.0, %v647
        %v649 = vpop.f32.mrf.mxu0
        %v650 = vadd.f32 0.0, %v649
        %651 = vmatmul.bf16.gmra.mxu0 %v566
        %v652 = vpop.f32.mrf.mxu0
        %v653 = vadd.f32 0.0, %v652
        %v654 = vpop.f32.mrf.mxu0
        %v655 = vadd.f32 0.0, %v654
        %656 = vmatmul.bf16.gmra.mxu0 %v569
        %v657 = vpop.f32.mrf.mxu0
        %v658 = vadd.f32 0.0, %v657
        %v659 = vpop.f32.mrf.mxu0
        %v660 = vadd.f32 0.0, %v659
        %661 = vmatmul.bf16.gmra.mxu0 %v572
        %v662 = vpop.f32.mrf.mxu0
        %v663 = vadd.f32 0.0, %v662
        %v664 = vpop.f32.mrf.mxu0
        %v665 = vadd.f32 0.0, %v664
        %666 = vdwg.mxu0
        %v667 = vperm.slane %v271, 0
        %v668 = vmul.f32 %v588, %v667
        %v669 = vmul.f32 %v590, %v667
        %v670 = vmul.f32 %v593, %v667
        %v671 = vmul.f32 %v595, %v667
        %v672 = vmul.f32 %v598, %v667
        %v673 = vmul.f32 %v600, %v667
        %v674 = vmul.f32 %v603, %v667
        %v675 = vmul.f32 %v605, %v667
        %v676 = vmul.f32 %v608, %v667
        %v677 = vmul.f32 %v610, %v667
        %v678 = vmul.f32 %v613, %v667
        %v679 = vmul.f32 %v615, %v667
        %v680 = vmul.f32 %v618, %v667
        %v681 = vmul.f32 %v620, %v667
        %v682 = vmul.f32 %v623, %v667
        %v683 = vmul.f32 %v625, %v667
        %v684 = vmul.f32 %v628, %v667
        %v685 = vmul.f32 %v630, %v667
        %v686 = vmul.f32 %v633, %v667
        %v687 = vmul.f32 %v635, %v667
        %v688 = vmul.f32 %v638, %v667
        %v689 = vmul.f32 %v640, %v667
        %v690 = vmul.f32 %v643, %v667
        %v691 = vmul.f32 %v645, %v667
        %v692 = vmul.f32 %v648, %v667
        %v693 = vmul.f32 %v650, %v667
        %v694 = vmul.f32 %v653, %v667
        %v695 = vmul.f32 %v655, %v667
        %v696 = vmul.f32 %v658, %v667
        %v697 = vmul.f32 %v660, %v667
        %v698 = vmul.f32 %v663, %v667
        %v699 = vmul.f32 %v665, %v667
        %v700 = vperm.slane %v272, 0
        %v701 = vadd.f32 %v668, %v700
        %v702 = vadd.f32 %v669, %v700
        %v703 = vadd.f32 %v670, %v700
        %v704 = vadd.f32 %v671, %v700
        %v705 = vadd.f32 %v672, %v700
        %v706 = vadd.f32 %v673, %v700
        %v707 = vadd.f32 %v674, %v700
        %v708 = vadd.f32 %v675, %v700
        %v709 = vadd.f32 %v676, %v700
        %v710 = vadd.f32 %v677, %v700
        %v711 = vadd.f32 %v678, %v700
        %v712 = vadd.f32 %v679, %v700
        %v713 = vadd.f32 %v680, %v700
        %v714 = vadd.f32 %v681, %v700
        %v715 = vadd.f32 %v682, %v700
        %v716 = vadd.f32 %v683, %v700
        %v717 = vadd.f32 %v684, %v700
        %v718 = vadd.f32 %v685, %v700
        %v719 = vadd.f32 %v686, %v700
        %v720 = vadd.f32 %v687, %v700
        %v721 = vadd.f32 %v688, %v700
        %v722 = vadd.f32 %v689, %v700
        %v723 = vadd.f32 %v690, %v700
        %v724 = vadd.f32 %v691, %v700
        %v725 = vadd.f32 %v692, %v700
        %v726 = vadd.f32 %v693, %v700
        %v727 = vadd.f32 %v694, %v700
        %v728 = vadd.f32 %v695, %v700
        %v729 = vadd.f32 %v696, %v700
        %v730 = vadd.f32 %v697, %v700
        %v731 = vadd.f32 %v698, %v700
        %v732 = vadd.f32 %v699, %v700
        %v733 = vperm.slane %v267, 0
        %v734 = vmul.f32 %v588, %v733
        %v735 = vmul.f32 %v590, %v733
        %v736 = vmul.f32 %v593, %v733
        %v737 = vmul.f32 %v595, %v733
        %v738 = vmul.f32 %v598, %v733
        %v739 = vmul.f32 %v600, %v733
        %v740 = vmul.f32 %v603, %v733
        %v741 = vmul.f32 %v605, %v733
        %v742 = vmul.f32 %v608, %v733
        %v743 = vmul.f32 %v610, %v733
        %v744 = vmul.f32 %v613, %v733
        %v745 = vmul.f32 %v615, %v733
        %v746 = vmul.f32 %v618, %v733
        %v747 = vmul.f32 %v620, %v733
        %v748 = vmul.f32 %v623, %v733
        %v749 = vmul.f32 %v625, %v733
        %v750 = vmul.f32 %v628, %v733
        %v751 = vmul.f32 %v630, %v733
        %v752 = vmul.f32 %v633, %v733
        %v753 = vmul.f32 %v635, %v733
        %v754 = vmul.f32 %v638, %v733
        %v755 = vmul.f32 %v640, %v733
        %v756 = vmul.f32 %v643, %v733
        %v757 = vmul.f32 %v645, %v733
        %v758 = vmul.f32 %v648, %v733
        %v759 = vmul.f32 %v650, %v733
        %v760 = vmul.f32 %v653, %v733
        %v761 = vmul.f32 %v655, %v733
        %v762 = vmul.f32 %v658, %v733
        %v763 = vmul.f32 %v660, %v733
        %v764 = vmul.f32 %v663, %v733
        %v765 = vmul.f32 %v665, %v733
        %v766 = vperm.slane %v268, 0
        %v767 = vadd.f32 %v734, %v766
        %v768 = vadd.f32 %v735, %v766
        %v769 = vadd.f32 %v736, %v766
        %v770 = vadd.f32 %v737, %v766
        %v771 = vadd.f32 %v738, %v766
        %v772 = vadd.f32 %v739, %v766
        %v773 = vadd.f32 %v740, %v766
        %v774 = vadd.f32 %v741, %v766
        %v775 = vadd.f32 %v742, %v766
        %v776 = vadd.f32 %v743, %v766
        %v777 = vadd.f32 %v744, %v766
        %v778 = vadd.f32 %v745, %v766
        %v779 = vadd.f32 %v746, %v766
        %v780 = vadd.f32 %v747, %v766
        %v781 = vadd.f32 %v748, %v766
        %v782 = vadd.f32 %v749, %v766
        %v783 = vadd.f32 %v750, %v766
        %v784 = vadd.f32 %v751, %v766
        %v785 = vadd.f32 %v752, %v766
        %v786 = vadd.f32 %v753, %v766
        %v787 = vadd.f32 %v754, %v766
        %v788 = vadd.f32 %v755, %v766
        %v789 = vadd.f32 %v756, %v766
        %v790 = vadd.f32 %v757, %v766
        %v791 = vadd.f32 %v758, %v766
        %v792 = vadd.f32 %v759, %v766
        %v793 = vadd.f32 %v760, %v766
        %v794 = vadd.f32 %v761, %v766
        %v795 = vadd.f32 %v762, %v766
        %v796 = vadd.f32 %v763, %v766
        %v797 = vadd.f32 %v764, %v766
        %v798 = vadd.f32 %v765, %v766
        %v799 = vmax.f32 %v767, 0.0
        %v800 = vmax.f32 %v768, 0.0
        %v801 = vmax.f32 %v769, 0.0
        %v802 = vmax.f32 %v770, 0.0
        %v803 = vmax.f32 %v771, 0.0
        %v804 = vmax.f32 %v772, 0.0
        %v805 = vmax.f32 %v773, 0.0
        %v806 = vmax.f32 %v774, 0.0
        %v807 = vmax.f32 %v775, 0.0
        %v808 = vmax.f32 %v776, 0.0
        %v809 = vmax.f32 %v777, 0.0
        %v810 = vmax.f32 %v778, 0.0
        %v811 = vmax.f32 %v779, 0.0
        %v812 = vmax.f32 %v780, 0.0
        %v813 = vmax.f32 %v781, 0.0
        %v814 = vmax.f32 %v782, 0.0
        %v815 = vmax.f32 %v783, 0.0
        %v816 = vmax.f32 %v784, 0.0
        %v817 = vmax.f32 %v785, 0.0
        %v818 = vmax.f32 %v786, 0.0
        %v819 = vmax.f32 %v787, 0.0
        %v820 = vmax.f32 %v788, 0.0
        %v821 = vmax.f32 %v789, 0.0
        %v822 = vmax.f32 %v790, 0.0
        %v823 = vmax.f32 %v791, 0.0
        %v824 = vmax.f32 %v792, 0.0
        %v825 = vmax.f32 %v793, 0.0
        %v826 = vmax.f32 %v794, 0.0
        %v827 = vmax.f32 %v795, 0.0
        %v828 = vmax.f32 %v796, 0.0
        %v829 = vmax.f32 %v797, 0.0
        %v830 = vmax.f32 %v798, 0.0
        %v831 = vpack.c.bf16 %v799, %v799
        %v832 = vpack.c.bf16 %v800, %v800
        %v833 = vpack.c.bf16 %v801, %v801
        %v834 = vpack.c.bf16 %v802, %v802
        %v835 = vpack.c.bf16 %v803, %v803
        %v836 = vpack.c.bf16 %v804, %v804
        %v837 = vpack.c.bf16 %v805, %v805
        %v838 = vpack.c.bf16 %v806, %v806
        %v839 = vpack.c.bf16 %v807, %v807
        %v840 = vpack.c.bf16 %v808, %v808
        %v841 = vpack.c.bf16 %v809, %v809
        %v842 = vpack.c.bf16 %v810, %v810
        %v843 = vpack.c.bf16 %v811, %v811
        %v844 = vpack.c.bf16 %v812, %v812
        %v845 = vpack.c.bf16 %v813, %v813
        %v846 = vpack.c.bf16 %v814, %v814
        %v847 = vpack.c.bf16 %v815, %v815
        %v848 = vpack.c.bf16 %v816, %v816
        %v849 = vpack.c.bf16 %v817, %v817
        %v850 = vpack.c.bf16 %v818, %v818
        %v851 = vpack.c.bf16 %v819, %v819
        %v852 = vpack.c.bf16 %v820, %v820
        %v853 = vpack.c.bf16 %v821, %v821
        %v854 = vpack.c.bf16 %v822, %v822
        %v855 = vpack.c.bf16 %v823, %v823
        %v856 = vpack.c.bf16 %v824, %v824
        %v857 = vpack.c.bf16 %v825, %v825
        %v858 = vpack.c.bf16 %v826, %v826
        %v859 = vpack.c.bf16 %v827, %v827
        %v860 = vpack.c.bf16 %v828, %v828
        %v861 = vpack.c.bf16 %v829, %v829
        %v862 = vpack.c.bf16 %v830, %v830
        %vm863 = vsmask.f32 4368
        %vm864 = vmor %vm281, %vm863
        %v866 = vshrl.u32 %v831, 16
        %v868 = vrot.slane %v866, 7
        %v869 = vshll.u32 %v831, 16
        %v871 = vor.u32 %v868, %v869
        %v872 = vrot.slane %v868, 4
        %v874 = vshrl.u32 %v832, 16
        %v876 = vrot.slane %v874, 7
        %v877 = vshll.u32 %v832, 16
        %v879 = vor.u32 %v876, %v877
        %v880 = vsel %vm864, %v872, %v879
        %v881 = vrot.slane %v876, 4
        %v883 = vshrl.u32 %v833, 16
        %v885 = vrot.slane %v883, 7
        %v886 = vshll.u32 %v833, 16
        %v888 = vor.u32 %v885, %v886
        %v889 = vrot.slane %v885, 4
        %v891 = vshrl.u32 %v834, 16
        %v893 = vrot.slane %v891, 7
        %v894 = vshll.u32 %v834, 16
        %v896 = vor.u32 %v893, %v894
        %v897 = vsel %vm864, %v889, %v896
        %v898 = vrot.slane %v893, 4
        %v900 = vshrl.u32 %v835, 16
        %v902 = vrot.slane %v900, 7
        %v903 = vshll.u32 %v835, 16
        %v905 = vor.u32 %v902, %v903
        %v906 = vrot.slane %v902, 4
        %v908 = vshrl.u32 %v836, 16
        %v910 = vrot.slane %v908, 7
        %v911 = vshll.u32 %v836, 16
        %v913 = vor.u32 %v910, %v911
        %v914 = vsel %vm864, %v906, %v913
        %v915 = vrot.slane %v910, 4
        %v917 = vshrl.u32 %v837, 16
        %v919 = vrot.slane %v917, 7
        %v920 = vshll.u32 %v837, 16
        %v922 = vor.u32 %v919, %v920
        %v923 = vrot.slane %v919, 4
        %v925 = vshrl.u32 %v838, 16
        %v927 = vrot.slane %v925, 7
        %v928 = vshll.u32 %v838, 16
        %v930 = vor.u32 %v927, %v928
        %v931 = vsel %vm864, %v923, %v930
        %v932 = vrot.slane %v927, 4
        %v934 = vshrl.u32 %v839, 16
        %v936 = vrot.slane %v934, 7
        %v937 = vshll.u32 %v839, 16
        %v939 = vor.u32 %v936, %v937
        %v940 = vrot.slane %v936, 4
        %v942 = vshrl.u32 %v840, 16
        %v944 = vrot.slane %v942, 7
        %v945 = vshll.u32 %v840, 16
        %v947 = vor.u32 %v944, %v945
        %v948 = vsel %vm864, %v940, %v947
        %v949 = vrot.slane %v944, 4
        %v951 = vshrl.u32 %v841, 16
        %v953 = vrot.slane %v951, 7
        %v954 = vshll.u32 %v841, 16
        %v956 = vor.u32 %v953, %v954
        %v957 = vrot.slane %v953, 4
        %v959 = vshrl.u32 %v842, 16
        %v961 = vrot.slane %v959, 7
        %v962 = vshll.u32 %v842, 16
        %v964 = vor.u32 %v961, %v962
        %v965 = vsel %vm864, %v957, %v964
        %v966 = vrot.slane %v961, 4
        %v968 = vshrl.u32 %v843, 16
        %v970 = vrot.slane %v968, 7
        %v971 = vshll.u32 %v843, 16
        %v973 = vor.u32 %v970, %v971
        %v974 = vrot.slane %v970, 4
        %v976 = vshrl.u32 %v844, 16
        %v978 = vrot.slane %v976, 7
        %v979 = vshll.u32 %v844, 16
        %v981 = vor.u32 %v978, %v979
        %v982 = vsel %vm864, %v974, %v981
        %v983 = vrot.slane %v978, 4
        %v985 = vshrl.u32 %v845, 16
        %v987 = vrot.slane %v985, 7
        %v988 = vshll.u32 %v845, 16
        %v990 = vor.u32 %v987, %v988
        %v991 = vrot.slane %v987, 4
        %v993 = vshrl.u32 %v846, 16
        %v995 = vrot.slane %v993, 7
        %v996 = vshll.u32 %v846, 16
        %v998 = vor.u32 %v995, %v996
        %v999 = vsel %vm864, %v991, %v998
        %v1000 = vrot.slane %v995, 4
        %v1002 = vshrl.u32 %v847, 16
        %v1004 = vrot.slane %v1002, 7
        %v1005 = vshll.u32 %v847, 16
        %v1007 = vor.u32 %v1004, %v1005
        %v1008 = vrot.slane %v1004, 4
        %v1010 = vshrl.u32 %v848, 16
        %v1012 = vrot.slane %v1010, 7
        %v1013 = vshll.u32 %v848, 16
        %v1015 = vor.u32 %v1012, %v1013
        %v1016 = vsel %vm864, %v1008, %v1015
        %v1017 = vrot.slane %v1012, 4
        %v1019 = vshrl.u32 %v849, 16
        %v1021 = vrot.slane %v1019, 7
        %v1022 = vshll.u32 %v849, 16
        %v1024 = vor.u32 %v1021, %v1022
        %v1025 = vrot.slane %v1021, 4
        %v1027 = vshrl.u32 %v850, 16
        %v1029 = vrot.slane %v1027, 7
        %v1030 = vshll.u32 %v850, 16
        %v1032 = vor.u32 %v1029, %v1030
        %v1033 = vsel %vm864, %v1025, %v1032
        %v1034 = vrot.slane %v1029, 4
        %v1036 = vshrl.u32 %v851, 16
        %v1038 = vrot.slane %v1036, 7
        %v1039 = vshll.u32 %v851, 16
        %v1041 = vor.u32 %v1038, %v1039
        %v1042 = vrot.slane %v1038, 4
        %v1044 = vshrl.u32 %v852, 16
        %v1046 = vrot.slane %v1044, 7
        %v1047 = vshll.u32 %v852, 16
        %v1049 = vor.u32 %v1046, %v1047
        %v1050 = vsel %vm864, %v1042, %v1049
        %v1051 = vrot.slane %v1046, 4
        %v1053 = vshrl.u32 %v853, 16
        %v1055 = vrot.slane %v1053, 7
        %v1056 = vshll.u32 %v853, 16
        %v1058 = vor.u32 %v1055, %v1056
        %v1059 = vrot.slane %v1055, 4
        %v1061 = vshrl.u32 %v854, 16
        %v1063 = vrot.slane %v1061, 7
        %v1064 = vshll.u32 %v854, 16
        %v1066 = vor.u32 %v1063, %v1064
        %v1067 = vsel %vm864, %v1059, %v1066
        %v1068 = vrot.slane %v1063, 4
        %v1070 = vshrl.u32 %v855, 16
        %v1072 = vrot.slane %v1070, 7
        %v1073 = vshll.u32 %v855, 16
        %v1075 = vor.u32 %v1072, %v1073
        %v1076 = vrot.slane %v1072, 4
        %v1078 = vshrl.u32 %v856, 16
        %v1080 = vrot.slane %v1078, 7
        %v1081 = vshll.u32 %v856, 16
        %v1083 = vor.u32 %v1080, %v1081
        %v1084 = vsel %vm864, %v1076, %v1083
        %v1085 = vrot.slane %v1080, 4
        %v1087 = vshrl.u32 %v857, 16
        %v1089 = vrot.slane %v1087, 7
        %v1090 = vshll.u32 %v857, 16
        %v1092 = vor.u32 %v1089, %v1090
        %v1093 = vrot.slane %v1089, 4
        %v1095 = vshrl.u32 %v858, 16
        %v1097 = vrot.slane %v1095, 7
        %v1098 = vshll.u32 %v858, 16
        %v1100 = vor.u32 %v1097, %v1098
        %v1101 = vsel %vm864, %v1093, %v1100
        %v1102 = vrot.slane %v1097, 4
        %v1104 = vshrl.u32 %v859, 16
        %v1106 = vrot.slane %v1104, 7
        %v1107 = vshll.u32 %v859, 16
        %v1109 = vor.u32 %v1106, %v1107
        %v1110 = vrot.slane %v1106, 4
        %v1112 = vshrl.u32 %v860, 16
        %v1114 = vrot.slane %v1112, 7
        %v1115 = vshll.u32 %v860, 16
        %v1117 = vor.u32 %v1114, %v1115
        %v1118 = vsel %vm864, %v1110, %v1117
        %v1119 = vrot.slane %v1114, 4
        %v1121 = vshrl.u32 %v861, 16
        %v1123 = vrot.slane %v1121, 7
        %v1124 = vshll.u32 %v861, 16
        %v1126 = vor.u32 %v1123, %v1124
        %v1127 = vrot.slane %v1123, 4
        %v1129 = vshrl.u32 %v862, 16
        %v1131 = vrot.slane %v1129, 7
        %v1132 = vshll.u32 %v862, 16
        %v1134 = vor.u32 %v1131, %v1132
        %v1135 = vsel %vm864, %v1127, %v1134
        %v1136 = vrot.slane %v1131, 4
        %s1185 = scalar_lea.vmem [#allocation2], 12
        %vm1186 = vcmask 1043456
        %vm1187 = vmand %vm1186, %vm337
        %v1188 = vld [vmem:[%s1185] sm:$0xf]
        %v1189 = vsel %vm1187, %v871, %v1188
        %1190 = vst [vmem:[%s1185] sm:$0xf] %v1189
        %1191 = vst [vmem:[%s1185 + $0x4] sm:$0xf] %v880
        %v1192 = vld [vmem:[%s1185 + $0x8] sm:$0x1]
        %v1193 = vsel %vm282, %v881, %v1192
        %1194 = vst [vmem:[%s1185 + $0x8] sm:$0x1] %v1193
        %v1195 = vld [vmem:[%s1185 + $0xc] sm:$0xf]
        %v1196 = vsel %vm1187, %v888, %v1195
        %1197 = vst [vmem:[%s1185 + $0xc] sm:$0xf] %v1196
        %1198 = vst [vmem:[%s1185 + $0x10] sm:$0xf] %v897
        %v1199 = vld [vmem:[%s1185 + $0x14] sm:$0x1]
        %v1200 = vsel %vm282, %v898, %v1199
        %1201 = vst [vmem:[%s1185 + $0x14] sm:$0x1] %v1200
        %v1202 = vld [vmem:[%s1185 + $0x18] sm:$0xf]
        %v1203 = vsel %vm1187, %v905, %v1202
        %1204 = vst [vmem:[%s1185 + $0x18] sm:$0xf] %v1203
        %1205 = vst [vmem:[%s1185 + $0x1c] sm:$0xf] %v914
        %v1206 = vld [vmem:[%s1185 + $0x20] sm:$0x1]
        %v1207 = vsel %vm282, %v915, %v1206
        %1208 = vst [vmem:[%s1185 + $0x20] sm:$0x1] %v1207
        %v1209 = vld [vmem:[%s1185 + $0x24] sm:$0xf]
        %v1210 = vsel %vm1187, %v922, %v1209
        %1211 = vst [vmem:[%s1185 + $0x24] sm:$0xf] %v1210
        %1212 = vst [vmem:[%s1185 + $0x28] sm:$0xf] %v931
        %v1213 = vld [vmem:[%s1185 + $0x2c] sm:$0x1]
        %v1214 = vsel %vm282, %v932, %v1213
        %1215 = vst [vmem:[%s1185 + $0x2c] sm:$0x1] %v1214
        %v1216 = vld [vmem:[%s1185 + $0x30] sm:$0xf]
        %v1217 = vsel %vm1187, %v939, %v1216
        %1218 = vst [vmem:[%s1185 + $0x30] sm:$0xf] %v1217
        %1219 = vst [vmem:[%s1185 + $0x34] sm:$0xf] %v948
        %v1220 = vld [vmem:[%s1185 + $0x38] sm:$0x1]
        %v1221 = vsel %vm282, %v949, %v1220
        %1222 = vst [vmem:[%s1185 + $0x38] sm:$0x1] %v1221
        %v1223 = vld [vmem:[%s1185 + $0x3c] sm:$0xf]
        %v1224 = vsel %vm1187, %v956, %v1223
        %1225 = vst [vmem:[%s1185 + $0x3c] sm:$0xf] %v1224
        %1226 = vst [vmem:[%s1185 + $0x40] sm:$0xf] %v965
        %v1227 = vld [vmem:[%s1185 + $0x44] sm:$0x1]
        %v1228 = vsel %vm282, %v966, %v1227
        %1229 = vst [vmem:[%s1185 + $0x44] sm:$0x1] %v1228
        %v1230 = vld [vmem:[%s1185 + $0x48] sm:$0xf]
        %v1231 = vsel %vm1187, %v973, %v1230
        %1232 = vst [vmem:[%s1185 + $0x48] sm:$0xf] %v1231
        %1233 = vst [vmem:[%s1185 + $0x4c] sm:$0xf] %v982
        %v1234 = vld [vmem:[%s1185 + $0x50] sm:$0x1]
        %v1235 = vsel %vm282, %v983, %v1234
        %1236 = vst [vmem:[%s1185 + $0x50] sm:$0x1] %v1235
        %v1237 = vld [vmem:[%s1185 + $0x54] sm:$0xf]
        %v1238 = vsel %vm1187, %v990, %v1237
        %1239 = vst [vmem:[%s1185 + $0x54] sm:$0xf] %v1238
        %1240 = vst [vmem:[%s1185 + $0x58] sm:$0xf] %v999
        %v1241 = vld [vmem:[%s1185 + $0x5c] sm:$0x1]
        %v1242 = vsel %vm282, %v1000, %v1241
        %1243 = vst [vmem:[%s1185 + $0x5c] sm:$0x1] %v1242
        %v1244 = vld [vmem:[%s1185 + $0x60] sm:$0xf]
        %v1245 = vsel %vm1187, %v1007, %v1244
        %1246 = vst [vmem:[%s1185 + $0x60] sm:$0xf] %v1245
        %1247 = vst [vmem:[%s1185 + $0x64] sm:$0xf] %v1016
        %v1248 = vld [vmem:[%s1185 + $0x68] sm:$0x1]
        %v1249 = vsel %vm282, %v1017, %v1248
        %1250 = vst [vmem:[%s1185 + $0x68] sm:$0x1] %v1249
        %v1251 = vld [vmem:[%s1185 + $0x6c] sm:$0xf]
        %v1252 = vsel %vm1187, %v1024, %v1251
        %1253 = vst [vmem:[%s1185 + $0x6c] sm:$0xf] %v1252
        %1254 = vst [vmem:[%s1185 + $0x70] sm:$0xf] %v1033
        %v1255 = vld [vmem:[%s1185 + $0x74] sm:$0x1]
        %v1256 = vsel %vm282, %v1034, %v1255
        %1257 = vst [vmem:[%s1185 + $0x74] sm:$0x1] %v1256
        %v1258 = vld [vmem:[%s1185 + $0x78] sm:$0xf]
        %v1259 = vsel %vm1187, %v1041, %v1258
        %1260 = vst [vmem:[%s1185 + $0x78] sm:$0xf] %v1259
        %1261 = vst [vmem:[%s1185 + $0x7c] sm:$0xf] %v1050
        %v1262 = vld [vmem:[%s1185 + $0x80] sm:$0x1]
        %v1263 = vsel %vm282, %v1051, %v1262
        %1264 = vst [vmem:[%s1185 + $0x80] sm:$0x1] %v1263
        %v1265 = vld [vmem:[%s1185 + $0x84] sm:$0xf]
        %v1266 = vsel %vm1187, %v1058, %v1265
        %1267 = vst [vmem:[%s1185 + $0x84] sm:$0xf] %v1266
        %1268 = vst [vmem:[%s1185 + $0x88] sm:$0xf] %v1067
        %v1269 = vld [vmem:[%s1185 + $0x8c] sm:$0x1]
        %v1270 = vsel %vm282, %v1068, %v1269
        %1271 = vst [vmem:[%s1185 + $0x8c] sm:$0x1] %v1270
        %v1272 = vld [vmem:[%s1185 + $0x90] sm:$0xf]
        %v1273 = vsel %vm1187, %v1075, %v1272
        %1274 = vst [vmem:[%s1185 + $0x90] sm:$0xf] %v1273
        %1275 = vst [vmem:[%s1185 + $0x94] sm:$0xf] %v1084
        %v1276 = vld [vmem:[%s1185 + $0x98] sm:$0x1]
        %v1277 = vsel %vm282, %v1085, %v1276
        %1278 = vst [vmem:[%s1185 + $0x98] sm:$0x1] %v1277
        %v1279 = vld [vmem:[%s1185 + $0x9c] sm:$0xf]
        %v1280 = vsel %vm1187, %v1092, %v1279
        %1281 = vst [vmem:[%s1185 + $0x9c] sm:$0xf] %v1280
        %1282 = vst [vmem:[%s1185 + $0xa0] sm:$0xf] %v1101
        %v1283 = vld [vmem:[%s1185 + $0xa4] sm:$0x1]
        %v1284 = vsel %vm282, %v1102, %v1283
        %1285 = vst [vmem:[%s1185 + $0xa4] sm:$0x1] %v1284
        %v1286 = vld [vmem:[%s1185 + $0xa8] sm:$0xf]
        %v1287 = vsel %vm1187, %v1109, %v1286
        %1288 = vst [vmem:[%s1185 + $0xa8] sm:$0xf] %v1287
        %1289 = vst [vmem:[%s1185 + $0xac] sm:$0xf] %v1118
        %v1290 = vld [vmem:[%s1185 + $0xb0] sm:$0x1]
        %v1291 = vsel %vm282, %v1119, %v1290
        %1292 = vst [vmem:[%s1185 + $0xb0] sm:$0x1] %v1291
        %v1293 = vld [vmem:[%s1185 + $0xb4] sm:$0xf]
        %v1294 = vsel %vm1187, %v1126, %v1293
        %1295 = vst [vmem:[%s1185 + $0xb4] sm:$0xf] %v1294
        %1296 = vst [vmem:[%s1185 + $0xb8] sm:$0xf] %v1135
        %v1297 = vld [vmem:[%s1185 + $0xbc] sm:$0x1]
        %v1298 = vsel %vm282, %v1136, %v1297
        %1299 = vst [vmem:[%s1185 + $0xbc] sm:$0x1] %v1298
        %v1300 = vld [vmem:[#allocation2] sm:$0xf]
        %v1301 = vld [vmem:[#allocation2 + $0x4] sm:$0xf]
        %v1302 = vld [vmem:[#allocation2 + $0xc] sm:$0xf]
        %v1303 = vld [vmem:[#allocation2 + $0x10] sm:$0xf]
        %v1304 = vld [vmem:[#allocation2 + $0x18] sm:$0xf]
        %v1305 = vld [vmem:[#allocation2 + $0x1c] sm:$0xf]
        %v1306 = vld [vmem:[#allocation2 + $0x24] sm:$0xf]
        %v1307 = vld [vmem:[#allocation2 + $0x28] sm:$0xf]
        %v1308 = vld [vmem:[#allocation2 + $0x30] sm:$0xf]
        %v1309 = vld [vmem:[#allocation2 + $0x34] sm:$0xf]
        %v1310 = vld [vmem:[#allocation2 + $0x3c] sm:$0xf]
        %v1311 = vld [vmem:[#allocation2 + $0x40] sm:$0xf]
        %v1312 = vld [vmem:[#allocation2 + $0x48] sm:$0xf]
        %v1313 = vld [vmem:[#allocation2 + $0x4c] sm:$0xf]
        %v1314 = vld [vmem:[#allocation2 + $0x54] sm:$0xf]
        %v1315 = vld [vmem:[#allocation2 + $0x58] sm:$0xf]
        %v1316 = vld [vmem:[#allocation2 + $0x60] sm:$0xf]
        %v1317 = vld [vmem:[#allocation2 + $0x64] sm:$0xf]
        %v1318 = vld [vmem:[#allocation2 + $0x6c] sm:$0xf]
        %v1319 = vld [vmem:[#allocation2 + $0x70] sm:$0xf]
        %v1320 = vld [vmem:[#allocation2 + $0x78] sm:$0xf]
        %v1321 = vld [vmem:[#allocation2 + $0x7c] sm:$0xf]
        %v1322 = vld [vmem:[#allocation2 + $0x84] sm:$0xf]
        %v1323 = vld [vmem:[#allocation2 + $0x88] sm:$0xf]
        %v1324 = vld [vmem:[#allocation2 + $0x90] sm:$0xf]
        %v1325 = vld [vmem:[#allocation2 + $0x94] sm:$0xf]
        %v1326 = vld [vmem:[#allocation2 + $0x9c] sm:$0xf]
        %v1327 = vld [vmem:[#allocation2 + $0xa0] sm:$0xf]
        %v1328 = vld [vmem:[#allocation2 + $0xa8] sm:$0xf]
        %v1329 = vld [vmem:[#allocation2 + $0xac] sm:$0xf]
        %v1330 = vld [vmem:[#allocation2 + $0xb4] sm:$0xf]
        %v1331 = vld [vmem:[#allocation2 + $0xb8] sm:$0xf]
        %v1332 = vld [vmem:[#allocation8] sm:$0xf]
        %v1333 = vld [vmem:[#allocation8 + $0x4] sm:$0xf]
        %v1334 = vld [vmem:[#allocation8 + $0x8] sm:$0xf]
        %v1335 = vld [vmem:[#allocation8 + $0xc] sm:$0xf]
        %v1336 = vld [vmem:[#allocation8 + $0x10] sm:$0xf]
        %v1337 = vld [vmem:[#allocation8 + $0x14] sm:$0xf]
        %v1338 = vld [vmem:[#allocation8 + $0x18] sm:$0xf]
        %v1339 = vld [vmem:[#allocation8 + $0x1c] sm:$0xf]
        %v1340 = vld [vmem:[#allocation8 + $0x20] sm:$0xf]
        %v1341 = vld [vmem:[#allocation8 + $0x24] sm:$0xf]
        %v1342 = vld [vmem:[#allocation8 + $0x28] sm:$0xf]
        %v1343 = vld [vmem:[#allocation8 + $0x2c] sm:$0xf]
        %v1344 = vld [vmem:[#allocation8 + $0x30] sm:$0xf]
        %v1345 = vld [vmem:[#allocation8 + $0x34] sm:$0xf]
        %v1346 = vld [vmem:[#allocation8 + $0x38] sm:$0xf]
        %v1347 = vld [vmem:[#allocation8 + $0x3c] sm:$0xf]
        %v1348 = vld [vmem:[#allocation2 + $0x8] sm:$0x1]
        %v1349 = vld [vmem:[#allocation2 + $0x14] sm:$0x1]
        %v1350 = vld [vmem:[#allocation2 + $0x20] sm:$0x1]
        %v1351 = vld [vmem:[#allocation2 + $0x2c] sm:$0x1]
        %v1352 = vld [vmem:[#allocation2 + $0x38] sm:$0x1]
        %v1353 = vld [vmem:[#allocation2 + $0x44] sm:$0x1]
        %v1354 = vld [vmem:[#allocation2 + $0x50] sm:$0x1]
        %v1355 = vld [vmem:[#allocation2 + $0x5c] sm:$0x1]
        %v1356 = vld [vmem:[#allocation2 + $0x68] sm:$0x1]
        %v1357 = vld [vmem:[#allocation2 + $0x74] sm:$0x1]
        %v1358 = vld [vmem:[#allocation2 + $0x80] sm:$0x1]
        %v1359 = vld [vmem:[#allocation2 + $0x8c] sm:$0x1]
        %v1360 = vld [vmem:[#allocation2 + $0x98] sm:$0x1]
        %v1361 = vld [vmem:[#allocation2 + $0xa4] sm:$0x1]
        %v1362 = vld [vmem:[#allocation2 + $0xb0] sm:$0x1]
        %v1363 = vld [vmem:[#allocation2 + $0xbc] sm:$0x1]
        %vm1364 = vsmask.f32 3328
        %vm1365 = vsmask.f32 7440
        %vm1366 = vmor %vm1364, %vm1365
        %v1368 = vshrl.u32 %v1300, 16
        %v1370 = vrot.slane %v1368, 4
        %v1371 = vshll.u32 %v1300, 16
        %v1373 = vrot.slane %v1371, 5
        %v1374 = vor.u32 %v1370, %v1373
        %v1375 = vrot.slane %v1374, 4
        %v1377 = vshll.u32 %v1301, 16
        %v1379 = vrot.slane %v1377, 5
        %v1380 = vsel %vm1366, %v1375, %v1379
        %v1381 = vshrl.u32 %v1301, 16
        %v1383 = vrot.slane %v1381, 4
        %v1384 = vor.u32 %v1383, %v1379
        %v1385 = vrot.slane %v1384, 4
        %v1387 = vshll.u32 %v1348, 16
        %v1389 = vrot.slane %v1387, 5
        %v1390 = vsel %vm1366, %v1385, %v1389
        %v1392 = vshrl.u32 %v1302, 16
        %v1394 = vrot.slane %v1392, 4
        %v1395 = vshll.u32 %v1302, 16
        %v1397 = vrot.slane %v1395, 5
        %v1398 = vor.u32 %v1394, %v1397
        %v1399 = vrot.slane %v1398, 4
        %v1401 = vshll.u32 %v1303, 16
        %v1403 = vrot.slane %v1401, 5
        %v1404 = vsel %vm1366, %v1399, %v1403
        %v1405 = vshrl.u32 %v1303, 16
        %v1407 = vrot.slane %v1405, 4
        %v1408 = vor.u32 %v1407, %v1403
        %v1409 = vrot.slane %v1408, 4
        %v1411 = vshll.u32 %v1349, 16
        %v1413 = vrot.slane %v1411, 5
        %v1414 = vsel %vm1366, %v1409, %v1413
        %v1416 = vshrl.u32 %v1304, 16
        %v1418 = vrot.slane %v1416, 4
        %v1419 = vshll.u32 %v1304, 16
        %v1421 = vrot.slane %v1419, 5
        %v1422 = vor.u32 %v1418, %v1421
        %v1423 = vrot.slane %v1422, 4
        %v1425 = vshll.u32 %v1305, 16
        %v1427 = vrot.slane %v1425, 5
        %v1428 = vsel %vm1366, %v1423, %v1427
        %v1429 = vshrl.u32 %v1305, 16
        %v1431 = vrot.slane %v1429, 4
        %v1432 = vor.u32 %v1431, %v1427
        %v1433 = vrot.slane %v1432, 4
        %v1435 = vshll.u32 %v1350, 16
        %v1437 = vrot.slane %v1435, 5
        %v1438 = vsel %vm1366, %v1433, %v1437
        %v1440 = vshrl.u32 %v1306, 16
        %v1442 = vrot.slane %v1440, 4
        %v1443 = vshll.u32 %v1306, 16
        %v1445 = vrot.slane %v1443, 5
        %v1446 = vor.u32 %v1442, %v1445
        %v1447 = vrot.slane %v1446, 4
        %v1449 = vshll.u32 %v1307, 16
        %v1451 = vrot.slane %v1449, 5
        %v1452 = vsel %vm1366, %v1447, %v1451
        %v1453 = vshrl.u32 %v1307, 16
        %v1455 = vrot.slane %v1453, 4
        %v1456 = vor.u32 %v1455, %v1451
        %v1457 = vrot.slane %v1456, 4
        %v1459 = vshll.u32 %v1351, 16
        %v1461 = vrot.slane %v1459, 5
        %v1462 = vsel %vm1366, %v1457, %v1461
        %v1464 = vshrl.u32 %v1308, 16
        %v1466 = vrot.slane %v1464, 4
        %v1467 = vshll.u32 %v1308, 16
        %v1469 = vrot.slane %v1467, 5
        %v1470 = vor.u32 %v1466, %v1469
        %v1471 = vrot.slane %v1470, 4
        %v1473 = vshll.u32 %v1309, 16
        %v1475 = vrot.slane %v1473, 5
        %v1476 = vsel %vm1366, %v1471, %v1475
        %v1477 = vshrl.u32 %v1309, 16
        %v1479 = vrot.slane %v1477, 4
        %v1480 = vor.u32 %v1479, %v1475
        %v1481 = vrot.slane %v1480, 4
        %v1483 = vshll.u32 %v1352, 16
        %v1485 = vrot.slane %v1483, 5
        %v1486 = vsel %vm1366, %v1481, %v1485
        %v1488 = vshrl.u32 %v1310, 16
        %v1490 = vrot.slane %v1488, 4
        %v1491 = vshll.u32 %v1310, 16
        %v1493 = vrot.slane %v1491, 5
        %v1494 = vor.u32 %v1490, %v1493
        %v1495 = vrot.slane %v1494, 4
        %v1497 = vshll.u32 %v1311, 16
        %v1499 = vrot.slane %v1497, 5
        %v1500 = vsel %vm1366, %v1495, %v1499
        %v1501 = vshrl.u32 %v1311, 16
        %v1503 = vrot.slane %v1501, 4
        %v1504 = vor.u32 %v1503, %v1499
        %v1505 = vrot.slane %v1504, 4
        %v1507 = vshll.u32 %v1353, 16
        %v1509 = vrot.slane %v1507, 5
        %v1510 = vsel %vm1366, %v1505, %v1509
        %v1512 = vshrl.u32 %v1312, 16
        %v1514 = vrot.slane %v1512, 4
        %v1515 = vshll.u32 %v1312, 16
        %v1517 = vrot.slane %v1515, 5
        %v1518 = vor.u32 %v1514, %v1517
        %v1519 = vrot.slane %v1518, 4
        %v1521 = vshll.u32 %v1313, 16
        %v1523 = vrot.slane %v1521, 5
        %v1524 = vsel %vm1366, %v1519, %v1523
        %v1525 = vshrl.u32 %v1313, 16
        %v1527 = vrot.slane %v1525, 4
        %v1528 = vor.u32 %v1527, %v1523
        %v1529 = vrot.slane %v1528, 4
        %v1531 = vshll.u32 %v1354, 16
        %v1533 = vrot.slane %v1531, 5
        %v1534 = vsel %vm1366, %v1529, %v1533
        %v1536 = vshrl.u32 %v1314, 16
        %v1538 = vrot.slane %v1536, 4
        %v1539 = vshll.u32 %v1314, 16
        %v1541 = vrot.slane %v1539, 5
        %v1542 = vor.u32 %v1538, %v1541
        %v1543 = vrot.slane %v1542, 4
        %v1545 = vshll.u32 %v1315, 16
        %v1547 = vrot.slane %v1545, 5
        %v1548 = vsel %vm1366, %v1543, %v1547
        %v1549 = vshrl.u32 %v1315, 16
        %v1551 = vrot.slane %v1549, 4
        %v1552 = vor.u32 %v1551, %v1547
        %v1553 = vrot.slane %v1552, 4
        %v1555 = vshll.u32 %v1355, 16
        %v1557 = vrot.slane %v1555, 5
        %v1558 = vsel %vm1366, %v1553, %v1557
        %v1560 = vshrl.u32 %v1316, 16
        %v1562 = vrot.slane %v1560, 4
        %v1563 = vshll.u32 %v1316, 16
        %v1565 = vrot.slane %v1563, 5
        %v1566 = vor.u32 %v1562, %v1565
        %v1567 = vrot.slane %v1566, 4
        %v1569 = vshll.u32 %v1317, 16
        %v1571 = vrot.slane %v1569, 5
        %v1572 = vsel %vm1366, %v1567, %v1571
        %v1573 = vshrl.u32 %v1317, 16
        %v1575 = vrot.slane %v1573, 4
        %v1576 = vor.u32 %v1575, %v1571
        %v1577 = vrot.slane %v1576, 4
        %v1579 = vshll.u32 %v1356, 16
        %v1581 = vrot.slane %v1579, 5
        %v1582 = vsel %vm1366, %v1577, %v1581
        %v1584 = vshrl.u32 %v1318, 16
        %v1586 = vrot.slane %v1584, 4
        %v1587 = vshll.u32 %v1318, 16
        %v1589 = vrot.slane %v1587, 5
        %v1590 = vor.u32 %v1586, %v1589
        %v1591 = vrot.slane %v1590, 4
        %v1593 = vshll.u32 %v1319, 16
        %v1595 = vrot.slane %v1593, 5
        %v1596 = vsel %vm1366, %v1591, %v1595
        %v1597 = vshrl.u32 %v1319, 16
        %v1599 = vrot.slane %v1597, 4
        %v1600 = vor.u32 %v1599, %v1595
        %v1601 = vrot.slane %v1600, 4
        %v1603 = vshll.u32 %v1357, 16
        %v1605 = vrot.slane %v1603, 5
        %v1606 = vsel %vm1366, %v1601, %v1605
        %v1608 = vshrl.u32 %v1320, 16
        %v1610 = vrot.slane %v1608, 4
        %v1611 = vshll.u32 %v1320, 16
        %v1613 = vrot.slane %v1611, 5
        %v1614 = vor.u32 %v1610, %v1613
        %v1615 = vrot.slane %v1614, 4
        %v1617 = vshll.u32 %v1321, 16
        %v1619 = vrot.slane %v1617, 5
        %v1620 = vsel %vm1366, %v1615, %v1619
        %v1621 = vshrl.u32 %v1321, 16
        %v1623 = vrot.slane %v1621, 4
        %v1624 = vor.u32 %v1623, %v1619
        %v1625 = vrot.slane %v1624, 4
        %v1627 = vshll.u32 %v1358, 16
        %v1629 = vrot.slane %v1627, 5
        %v1630 = vsel %vm1366, %v1625, %v1629
        %v1632 = vshrl.u32 %v1322, 16
        %v1634 = vrot.slane %v1632, 4
        %v1635 = vshll.u32 %v1322, 16
        %v1637 = vrot.slane %v1635, 5
        %v1638 = vor.u32 %v1634, %v1637
        %v1639 = vrot.slane %v1638, 4
        %v1641 = vshll.u32 %v1323, 16
        %v1643 = vrot.slane %v1641, 5
        %v1644 = vsel %vm1366, %v1639, %v1643
        %v1645 = vshrl.u32 %v1323, 16
        %v1647 = vrot.slane %v1645, 4
        %v1648 = vor.u32 %v1647, %v1643
        %v1649 = vrot.slane %v1648, 4
        %v1651 = vshll.u32 %v1359, 16
        %v1653 = vrot.slane %v1651, 5
        %v1654 = vsel %vm1366, %v1649, %v1653
        %v1656 = vshrl.u32 %v1324, 16
        %v1658 = vrot.slane %v1656, 4
        %v1659 = vshll.u32 %v1324, 16
        %v1661 = vrot.slane %v1659, 5
        %v1662 = vor.u32 %v1658, %v1661
        %v1663 = vrot.slane %v1662, 4
        %v1665 = vshll.u32 %v1325, 16
        %v1667 = vrot.slane %v1665, 5
        %v1668 = vsel %vm1366, %v1663, %v1667
        %v1669 = vshrl.u32 %v1325, 16
        %v1671 = vrot.slane %v1669, 4
        %v1672 = vor.u32 %v1671, %v1667
        %v1673 = vrot.slane %v1672, 4
        %v1675 = vshll.u32 %v1360, 16
        %v1677 = vrot.slane %v1675, 5
        %v1678 = vsel %vm1366, %v1673, %v1677
        %v1680 = vshrl.u32 %v1326, 16
        %v1682 = vrot.slane %v1680, 4
        %v1683 = vshll.u32 %v1326, 16
        %v1685 = vrot.slane %v1683, 5
        %v1686 = vor.u32 %v1682, %v1685
        %v1687 = vrot.slane %v1686, 4
        %v1689 = vshll.u32 %v1327, 16
        %v1691 = vrot.slane %v1689, 5
        %v1692 = vsel %vm1366, %v1687, %v1691
        %v1693 = vshrl.u32 %v1327, 16
        %v1695 = vrot.slane %v1693, 4
        %v1696 = vor.u32 %v1695, %v1691
        %v1697 = vrot.slane %v1696, 4
        %v1699 = vshll.u32 %v1361, 16
        %v1701 = vrot.slane %v1699, 5
        %v1702 = vsel %vm1366, %v1697, %v1701
        %v1704 = vshrl.u32 %v1328, 16
        %v1706 = vrot.slane %v1704, 4
        %v1707 = vshll.u32 %v1328, 16
        %v1709 = vrot.slane %v1707, 5
        %v1710 = vor.u32 %v1706, %v1709
        %v1711 = vrot.slane %v1710, 4
        %v1713 = vshll.u32 %v1329, 16
        %v1715 = vrot.slane %v1713, 5
        %v1716 = vsel %vm1366, %v1711, %v1715
        %v1717 = vshrl.u32 %v1329, 16
        %v1719 = vrot.slane %v1717, 4
        %v1720 = vor.u32 %v1719, %v1715
        %v1721 = vrot.slane %v1720, 4
        %v1723 = vshll.u32 %v1362, 16
        %v1725 = vrot.slane %v1723, 5
        %v1726 = vsel %vm1366, %v1721, %v1725
        %v1728 = vshrl.u32 %v1330, 16
        %v1730 = vrot.slane %v1728, 4
        %v1731 = vshll.u32 %v1330, 16
        %v1733 = vrot.slane %v1731, 5
        %v1734 = vor.u32 %v1730, %v1733
        %v1735 = vrot.slane %v1734, 4
        %v1737 = vshll.u32 %v1331, 16
        %v1739 = vrot.slane %v1737, 5
        %v1740 = vsel %vm1366, %v1735, %v1739
        %v1741 = vshrl.u32 %v1331, 16
        %v1743 = vrot.slane %v1741, 4
        %v1744 = vor.u32 %v1743, %v1739
        %v1745 = vrot.slane %v1744, 4
        %v1747 = vshll.u32 %v1363, 16
        %v1749 = vrot.slane %v1747, 5
        %v1750 = vsel %vm1366, %v1745, %v1749
        %v1751 = vld [vmem:[#allocation8 + $0x40] sm:$0xf]
        %v1752 = vld [vmem:[#allocation8 + $0x44] sm:$0xf]
        %v1753 = vld [vmem:[#allocation8 + $0x48] sm:$0xf]
        %v1754 = vld [vmem:[#allocation8 + $0x4c] sm:$0xf]
        %v1755 = vld [vmem:[#allocation8 + $0x50] sm:$0xf]
        %v1756 = vld [vmem:[#allocation8 + $0x54] sm:$0xf]
        %v1757 = vld [vmem:[#allocation8 + $0x58] sm:$0xf]
        %v1758 = vld [vmem:[#allocation8 + $0x5c] sm:$0xf]
        %v1759 = vld [vmem:[#allocation8 + $0x60] sm:$0xf]
        %v1760 = vld [vmem:[#allocation8 + $0x64] sm:$0xf]
        %v1761 = vld [vmem:[#allocation8 + $0x68] sm:$0xf]
        %v1762 = vld [vmem:[#allocation8 + $0x6c] sm:$0xf]
        %v1763 = vld [vmem:[#allocation8 + $0x70] sm:$0xf]
        %v1764 = vld [vmem:[#allocation8 + $0x74] sm:$0xf]
        %v1765 = vld [vmem:[#allocation8 + $0x78] sm:$0xf]
        %v1766 = vld [vmem:[#allocation8 + $0x7c] sm:$0xf]
        %v1767 = vunpack.c.l.b16 %v1380
        %v1768 = vunpack.c.l.b16 %v1390
        %v1769 = vunpack.c.l.b16 %v1404
        %v1770 = vunpack.c.l.b16 %v1414
        %v1771 = vunpack.c.l.b16 %v1428
        %v1772 = vunpack.c.l.b16 %v1438
        %v1773 = vunpack.c.l.b16 %v1452
        %v1774 = vunpack.c.l.b16 %v1462
        %v1775 = vunpack.c.l.b16 %v1476
        %v1776 = vunpack.c.l.b16 %v1486
        %v1777 = vunpack.c.l.b16 %v1500
        %v1778 = vunpack.c.l.b16 %v1510
        %v1779 = vunpack.c.l.b16 %v1524
        %v1780 = vunpack.c.l.b16 %v1534
        %v1781 = vunpack.c.l.b16 %v1548
        %v1782 = vunpack.c.l.b16 %v1558
        %v1783 = vunpack.c.l.b16 %v1572
        %v1784 = vunpack.c.l.b16 %v1582
        %v1785 = vunpack.c.l.b16 %v1596
        %v1786 = vunpack.c.l.b16 %v1606
        %v1787 = vunpack.c.l.b16 %v1620
        %v1788 = vunpack.c.l.b16 %v1630
        %v1789 = vunpack.c.l.b16 %v1644
        %v1790 = vunpack.c.l.b16 %v1654
        %v1791 = vunpack.c.l.b16 %v1668
        %v1792 = vunpack.c.l.b16 %v1678
        %v1793 = vunpack.c.l.b16 %v1692
        %v1794 = vunpack.c.l.b16 %v1702
        %v1795 = vunpack.c.l.b16 %v1716
        %v1796 = vunpack.c.l.b16 %v1726
        %v1797 = vunpack.c.l.b16 %v1740
        %v1798 = vunpack.c.l.b16 %v1750
        %v1799 = vpack.c.b16 %v1768, %v1767
        %v1800 = vpack.c.b16 %v1770, %v1769
        %v1801 = vpack.c.b16 %v1772, %v1771
        %v1802 = vpack.c.b16 %v1774, %v1773
        %v1803 = vpack.c.b16 %v1776, %v1775
        %v1804 = vpack.c.b16 %v1778, %v1777
        %v1805 = vpack.c.b16 %v1780, %v1779
        %v1806 = vpack.c.b16 %v1782, %v1781
        %v1807 = vpack.c.b16 %v1784, %v1783
        %v1808 = vpack.c.b16 %v1786, %v1785
        %v1809 = vpack.c.b16 %v1788, %v1787
        %v1810 = vpack.c.b16 %v1790, %v1789
        %v1811 = vpack.c.b16 %v1792, %v1791
        %v1812 = vpack.c.b16 %v1794, %v1793
        %v1813 = vpack.c.b16 %v1796, %v1795
        %v1814 = vpack.c.b16 %v1798, %v1797
        %v1847 = vunpack.c.l.b16 %v1751
        %v1848 = vunpack.c.l.b16 %v1752
        %v1849 = vunpack.c.l.b16 %v1753
        %v1850 = vunpack.c.l.b16 %v1754
        %v1851 = vunpack.c.l.b16 %v1755
        %v1852 = vunpack.c.l.b16 %v1756
        %v1853 = vunpack.c.l.b16 %v1757
        %v1854 = vunpack.c.l.b16 %v1758
        %v1855 = vunpack.c.l.b16 %v1759
        %v1856 = vunpack.c.l.b16 %v1760
        %v1857 = vunpack.c.l.b16 %v1761
        %v1858 = vunpack.c.l.b16 %v1762
        %v1859 = vunpack.c.l.b16 %v1763
        %v1860 = vunpack.c.l.b16 %v1764
        %v1861 = vunpack.c.l.b16 %v1765
        %v1862 = vunpack.c.l.b16 %v1766
        %v1863 = vpack.c.b16 %v1848, %v1847
        %v1864 = vpack.c.b16 %v1850, %v1849
        %v1865 = vpack.c.b16 %v1852, %v1851
        %v1866 = vpack.c.b16 %v1854, %v1853
        %v1867 = vpack.c.b16 %v1856, %v1855
        %v1868 = vpack.c.b16 %v1858, %v1857
        %v1869 = vpack.c.b16 %v1860, %v1859
        %v1870 = vpack.c.b16 %v1862, %v1861
        %1879 = vmatpush.bf16.msra.mxu0 %v1870
        %1880 = vmatpush.bf16.msra.mxu0 %v1869
        %1881 = vmatpush.bf16.msra.mxu0 %v1868
        %1882 = vmatpush.bf16.msra.mxu0 %v1867
        %1883 = vmatpush.bf16.msra.mxu0 %v1866
        %1884 = vmatpush.bf16.msra.mxu0 %v1865
        %1885 = vmatpush.bf16.msra.mxu0 %v1864
        %1886 = vmatpush.bf16.msra.mxu0 %v1863
        %1887 = vmatmul.bf16.gmra.mxu0 %v1799
        %v1888 = vpop.f32.mrf.mxu0
        %v1889 = vadd.f32 0.0, %v1888
        %v1890 = vpop.f32.mrf.mxu0
        %v1891 = vadd.f32 0.0, %v1890
        %1892 = vmatmul.bf16.gmra.mxu0 %v1800
        %v1893 = vpop.f32.mrf.mxu0
        %v1894 = vadd.f32 0.0, %v1893
        %v1895 = vpop.f32.mrf.mxu0
        %v1896 = vadd.f32 0.0, %v1895
        %1897 = vmatmul.bf16.gmra.mxu0 %v1801
        %v1898 = vpop.f32.mrf.mxu0
        %v1899 = vadd.f32 0.0, %v1898
        %v1900 = vpop.f32.mrf.mxu0
        %v1901 = vadd.f32 0.0, %v1900
        %1902 = vmatmul.bf16.gmra.mxu0 %v1802
        %v1903 = vpop.f32.mrf.mxu0
        %v1904 = vadd.f32 0.0, %v1903
        %v1905 = vpop.f32.mrf.mxu0
        %v1906 = vadd.f32 0.0, %v1905
        %1907 = vmatmul.bf16.gmra.mxu0 %v1803
        %v1908 = vpop.f32.mrf.mxu0
        %v1909 = vadd.f32 0.0, %v1908
        %v1910 = vpop.f32.mrf.mxu0
        %v1911 = vadd.f32 0.0, %v1910
        %1912 = vmatmul.bf16.gmra.mxu0 %v1804
        %v1913 = vpop.f32.mrf.mxu0
        %v1914 = vadd.f32 0.0, %v1913
        %v1915 = vpop.f32.mrf.mxu0
        %v1916 = vadd.f32 0.0, %v1915
        %1917 = vmatmul.bf16.gmra.mxu0 %v1805
        %v1918 = vpop.f32.mrf.mxu0
        %v1919 = vadd.f32 0.0, %v1918
        %v1920 = vpop.f32.mrf.mxu0
        %v1921 = vadd.f32 0.0, %v1920
        %1922 = vmatmul.bf16.gmra.mxu0 %v1806
        %v1923 = vpop.f32.mrf.mxu0
        %v1924 = vadd.f32 0.0, %v1923
        %v1925 = vpop.f32.mrf.mxu0
        %v1926 = vadd.f32 0.0, %v1925
        %1927 = vmatmul.bf16.gmra.mxu0 %v1807
        %v1928 = vpop.f32.mrf.mxu0
        %v1929 = vadd.f32 0.0, %v1928
        %v1930 = vpop.f32.mrf.mxu0
        %v1931 = vadd.f32 0.0, %v1930
        %1932 = vmatmul.bf16.gmra.mxu0 %v1808
        %v1933 = vpop.f32.mrf.mxu0
        %v1934 = vadd.f32 0.0, %v1933
        %v1935 = vpop.f32.mrf.mxu0
        %v1936 = vadd.f32 0.0, %v1935
        %1937 = vmatmul.bf16.gmra.mxu0 %v1809
        %v1938 = vpop.f32.mrf.mxu0
        %v1939 = vadd.f32 0.0, %v1938
        %v1940 = vpop.f32.mrf.mxu0
        %v1941 = vadd.f32 0.0, %v1940
        %1942 = vmatmul.bf16.gmra.mxu0 %v1810
        %v1943 = vpop.f32.mrf.mxu0
        %v1944 = vadd.f32 0.0, %v1943
        %v1945 = vpop.f32.mrf.mxu0
        %v1946 = vadd.f32 0.0, %v1945
        %1947 = vmatmul.bf16.gmra.mxu0 %v1811
        %v1948 = vpop.f32.mrf.mxu0
        %v1949 = vadd.f32 0.0, %v1948
        %v1950 = vpop.f32.mrf.mxu0
        %v1951 = vadd.f32 0.0, %v1950
        %1952 = vmatmul.bf16.gmra.mxu0 %v1812
        %v1953 = vpop.f32.mrf.mxu0
        %v1954 = vadd.f32 0.0, %v1953
        %v1955 = vpop.f32.mrf.mxu0
        %v1956 = vadd.f32 0.0, %v1955
        %1957 = vmatmul.bf16.gmra.mxu0 %v1813
        %v1958 = vpop.f32.mrf.mxu0
        %v1959 = vadd.f32 0.0, %v1958
        %v1960 = vpop.f32.mrf.mxu0
        %v1961 = vadd.f32 0.0, %v1960
        %1962 = vmatmul.bf16.gmra.mxu0 %v1814
        %v1963 = vpop.f32.mrf.mxu0
        %v1964 = vadd.f32 0.0, %v1963
        %v1965 = vpop.f32.mrf.mxu0
        %v1966 = vadd.f32 0.0, %v1965
        %1967 = vdwg.mxu0
        %v2000 = vunpack.c.l.b16 %v1300
        %v2001 = vunpack.c.l.b16 %v1301
        %v2002 = vunpack.c.l.b16 %v1302
        %v2003 = vunpack.c.l.b16 %v1303
        %v2004 = vunpack.c.l.b16 %v1304
        %v2005 = vunpack.c.l.b16 %v1305
        %v2006 = vunpack.c.l.b16 %v1306
        %v2007 = vunpack.c.l.b16 %v1307
        %v2008 = vunpack.c.l.b16 %v1308
        %v2009 = vunpack.c.l.b16 %v1309
        %v2010 = vunpack.c.l.b16 %v1310
        %v2011 = vunpack.c.l.b16 %v1311
        %v2012 = vunpack.c.l.b16 %v1312
        %v2013 = vunpack.c.l.b16 %v1313
        %v2014 = vunpack.c.l.b16 %v1314
        %v2015 = vunpack.c.l.b16 %v1315
        %v2016 = vunpack.c.l.b16 %v1316
        %v2017 = vunpack.c.l.b16 %v1317
        %v2018 = vunpack.c.l.b16 %v1318
        %v2019 = vunpack.c.l.b16 %v1319
        %v2020 = vunpack.c.l.b16 %v1320
        %v2021 = vunpack.c.l.b16 %v1321
        %v2022 = vunpack.c.l.b16 %v1322
        %v2023 = vunpack.c.l.b16 %v1323
        %v2024 = vunpack.c.l.b16 %v1324
        %v2025 = vunpack.c.l.b16 %v1325
        %v2026 = vunpack.c.l.b16 %v1326
        %v2027 = vunpack.c.l.b16 %v1327
        %v2028 = vunpack.c.l.b16 %v1328
        %v2029 = vunpack.c.l.b16 %v1329
        %v2030 = vunpack.c.l.b16 %v1330
        %v2031 = vunpack.c.l.b16 %v1331
        %v2032 = vpack.c.b16 %v2001, %v2000
        %v2033 = vpack.c.b16 %v2003, %v2002
        %v2034 = vpack.c.b16 %v2005, %v2004
        %v2035 = vpack.c.b16 %v2007, %v2006
        %v2036 = vpack.c.b16 %v2009, %v2008
        %v2037 = vpack.c.b16 %v2011, %v2010
        %v2038 = vpack.c.b16 %v2013, %v2012
        %v2039 = vpack.c.b16 %v2015, %v2014
        %v2040 = vpack.c.b16 %v2017, %v2016
        %v2041 = vpack.c.b16 %v2019, %v2018
        %v2042 = vpack.c.b16 %v2021, %v2020
        %v2043 = vpack.c.b16 %v2023, %v2022
        %v2044 = vpack.c.b16 %v2025, %v2024
        %v2045 = vpack.c.b16 %v2027, %v2026
        %v2046 = vpack.c.b16 %v2029, %v2028
        %v2047 = vpack.c.b16 %v2031, %v2030
        %v2080 = vunpack.c.l.b16 %v1332
        %v2081 = vunpack.c.l.b16 %v1333
        %v2082 = vunpack.c.l.b16 %v1334
        %v2083 = vunpack.c.l.b16 %v1335
        %v2084 = vunpack.c.l.b16 %v1336
        %v2085 = vunpack.c.l.b16 %v1337
        %v2086 = vunpack.c.l.b16 %v1338
        %v2087 = vunpack.c.l.b16 %v1339
        %v2088 = vunpack.c.l.b16 %v1340
        %v2089 = vunpack.c.l.b16 %v1341
        %v2090 = vunpack.c.l.b16 %v1342
        %v2091 = vunpack.c.l.b16 %v1343
        %v2092 = vunpack.c.l.b16 %v1344
        %v2093 = vunpack.c.l.b16 %v1345
        %v2094 = vunpack.c.l.b16 %v1346
        %v2095 = vunpack.c.l.b16 %v1347
        %v2096 = vpack.c.b16 %v2081, %v2080
        %v2097 = vpack.c.b16 %v2083, %v2082
        %v2098 = vpack.c.b16 %v2085, %v2084
        %v2099 = vpack.c.b16 %v2087, %v2086
        %v2100 = vpack.c.b16 %v2089, %v2088
        %v2101 = vpack.c.b16 %v2091, %v2090
        %v2102 = vpack.c.b16 %v2093, %v2092
        %v2103 = vpack.c.b16 %v2095, %v2094
        %2112 = vmatpush.bf16.msra.mxu0 %v2103
        %2113 = vmatpush.bf16.msra.mxu0 %v2102
        %2114 = vmatpush.bf16.msra.mxu0 %v2101
        %2115 = vmatpush.bf16.msra.mxu0 %v2100
        %2116 = vmatpush.bf16.msra.mxu0 %v2099
        %2117 = vmatpush.bf16.msra.mxu0 %v2098
        %2118 = vmatpush.bf16.msra.mxu0 %v2097
        %2119 = vmatpush.bf16.msra.mxu0 %v2096
        %2120 = vmatmul.bf16.gmra.mxu0 %v2032
        %v2121 = vpop.f32.mrf.mxu0
        %v2122 = vadd.f32 %v1889, %v2121
        %v2123 = vpop.f32.mrf.mxu0
        %v2124 = vadd.f32 %v1891, %v2123
        %2125 = vmatmul.bf16.gmra.mxu0 %v2033
        %v2126 = vpop.f32.mrf.mxu0
        %v2127 = vadd.f32 %v1894, %v2126
        %v2128 = vpop.f32.mrf.mxu0
        %v2129 = vadd.f32 %v1896, %v2128
        %2130 = vmatmul.bf16.gmra.mxu0 %v2034
        %v2131 = vpop.f32.mrf.mxu0
        %v2132 = vadd.f32 %v1899, %v2131
        %v2133 = vpop.f32.mrf.mxu0
        %v2134 = vadd.f32 %v1901, %v2133
        %2135 = vmatmul.bf16.gmra.mxu0 %v2035
        %v2136 = vpop.f32.mrf.mxu0
        %v2137 = vadd.f32 %v1904, %v2136
        %v2138 = vpop.f32.mrf.mxu0
        %v2139 = vadd.f32 %v1906, %v2138
        %2140 = vmatmul.bf16.gmra.mxu0 %v2036
        %v2141 = vpop.f32.mrf.mxu0
        %v2142 = vadd.f32 %v1909, %v2141
        %v2143 = vpop.f32.mrf.mxu0
        %v2144 = vadd.f32 %v1911, %v2143
        %2145 = vmatmul.bf16.gmra.mxu0 %v2037
        %v2146 = vpop.f32.mrf.mxu0
        %v2147 = vadd.f32 %v1914, %v2146
        %v2148 = vpop.f32.mrf.mxu0
        %v2149 = vadd.f32 %v1916, %v2148
        %2150 = vmatmul.bf16.gmra.mxu0 %v2038
        %v2151 = vpop.f32.mrf.mxu0
        %v2152 = vadd.f32 %v1919, %v2151
        %v2153 = vpop.f32.mrf.mxu0
        %v2154 = vadd.f32 %v1921, %v2153
        %2155 = vmatmul.bf16.gmra.mxu0 %v2039
        %v2156 = vpop.f32.mrf.mxu0
        %v2157 = vadd.f32 %v1924, %v2156
        %v2158 = vpop.f32.mrf.mxu0
        %v2159 = vadd.f32 %v1926, %v2158
        %2160 = vmatmul.bf16.gmra.mxu0 %v2040
        %v2161 = vpop.f32.mrf.mxu0
        %v2162 = vadd.f32 %v1929, %v2161
        %v2163 = vpop.f32.mrf.mxu0
        %v2164 = vadd.f32 %v1931, %v2163
        %2165 = vmatmul.bf16.gmra.mxu0 %v2041
        %v2166 = vpop.f32.mrf.mxu0
        %v2167 = vadd.f32 %v1934, %v2166
        %v2168 = vpop.f32.mrf.mxu0
        %v2169 = vadd.f32 %v1936, %v2168
        %2170 = vmatmul.bf16.gmra.mxu0 %v2042
        %v2171 = vpop.f32.mrf.mxu0
        %v2172 = vadd.f32 %v1939, %v2171
        %v2173 = vpop.f32.mrf.mxu0
        %v2174 = vadd.f32 %v1941, %v2173
        %2175 = vmatmul.bf16.gmra.mxu0 %v2043
        %v2176 = vpop.f32.mrf.mxu0
        %v2177 = vadd.f32 %v1944, %v2176
        %v2178 = vpop.f32.mrf.mxu0
        %v2179 = vadd.f32 %v1946, %v2178
        %2180 = vmatmul.bf16.gmra.mxu0 %v2044
        %v2181 = vpop.f32.mrf.mxu0
        %v2182 = vadd.f32 %v1949, %v2181
        %v2183 = vpop.f32.mrf.mxu0
        %v2184 = vadd.f32 %v1951, %v2183
        %2185 = vmatmul.bf16.gmra.mxu0 %v2045
        %v2186 = vpop.f32.mrf.mxu0
        %v2187 = vadd.f32 %v1954, %v2186
        %v2188 = vpop.f32.mrf.mxu0
        %v2189 = vadd.f32 %v1956, %v2188
        %2190 = vmatmul.bf16.gmra.mxu0 %v2046
        %v2191 = vpop.f32.mrf.mxu0
        %v2192 = vadd.f32 %v1959, %v2191
        %v2193 = vpop.f32.mrf.mxu0
        %v2194 = vadd.f32 %v1961, %v2193
        %2195 = vmatmul.bf16.gmra.mxu0 %v2047
        %v2196 = vpop.f32.mrf.mxu0
        %v2197 = vadd.f32 %v1964, %v2196
        %v2198 = vpop.f32.mrf.mxu0
        %v2199 = vadd.f32 %v1966, %v2198
        %2200 = vdwg.mxu0
        %v2201 = vld [vmem:[#allocation2] sm:$0xe]
        %v2202 = vld [vmem:[#allocation2 + $0xc] sm:$0xe]
        %v2203 = vld [vmem:[#allocation2 + $0x18] sm:$0xe]
        %v2204 = vld [vmem:[#allocation2 + $0x24] sm:$0xe]
        %v2205 = vld [vmem:[#allocation2 + $0x30] sm:$0xe]
        %v2206 = vld [vmem:[#allocation2 + $0x3c] sm:$0xe]
        %v2207 = vld [vmem:[#allocation2 + $0x48] sm:$0xe]
        %v2208 = vld [vmem:[#allocation2 + $0x54] sm:$0xe]
        %v2209 = vld [vmem:[#allocation2 + $0x60] sm:$0xe]
        %v2210 = vld [vmem:[#allocation2 + $0x6c] sm:$0xe]
        %v2211 = vld [vmem:[#allocation2 + $0x78] sm:$0xe]
        %v2212 = vld [vmem:[#allocation2 + $0x84] sm:$0xe]
        %v2213 = vld [vmem:[#allocation2 + $0x90] sm:$0xe]
        %v2214 = vld [vmem:[#allocation2 + $0x9c] sm:$0xe]
        %v2215 = vld [vmem:[#allocation2 + $0xa8] sm:$0xe]
        %v2216 = vld [vmem:[#allocation2 + $0xb4] sm:$0xe]
        %vm2249 = vcmask 1042432
        %vm2250 = vcmask 1046532
        %vm2251 = vmor %vm2249, %vm2250
        %v2252 = vrot.slane %v2201, 5
        %v2253 = vrot.slane %v2252, 4
        %v2254 = vrot.slane %v1301, 5
        %v2255 = vsel %vm2251, %v2253, %v2254
        %v2256 = vrot.slane %v2254, 4
        %v2257 = vrot.slane %v1348, 5
        %v2258 = vsel %vm2251, %v2256, %v2257
        %v2259 = vrot.slane %v2202, 5
        %v2260 = vrot.slane %v2259, 4
        %v2261 = vrot.slane %v1303, 5
        %v2262 = vsel %vm2251, %v2260, %v2261
        %v2263 = vrot.slane %v2261, 4
        %v2264 = vrot.slane %v1349, 5
        %v2265 = vsel %vm2251, %v2263, %v2264
        %v2266 = vrot.slane %v2203, 5
        %v2267 = vrot.slane %v2266, 4
        %v2268 = vrot.slane %v1305, 5
        %v2269 = vsel %vm2251, %v2267, %v2268
        %v2270 = vrot.slane %v2268, 4
        %v2271 = vrot.slane %v1350, 5
        %v2272 = vsel %vm2251, %v2270, %v2271
        %v2273 = vrot.slane %v2204, 5
        %v2274 = vrot.slane %v2273, 4
        %v2275 = vrot.slane %v1307, 5
        %v2276 = vsel %vm2251, %v2274, %v2275
        %v2277 = vrot.slane %v2275, 4
        %v2278 = vrot.slane %v1351, 5
        %v2279 = vsel %vm2251, %v2277, %v2278
        %v2280 = vrot.slane %v2205, 5
        %v2281 = vrot.slane %v2280, 4
        %v2282 = vrot.slane %v1309, 5
        %v2283 = vsel %vm2251, %v2281, %v2282
        %v2284 = vrot.slane %v2282, 4
        %v2285 = vrot.slane %v1352, 5
        %v2286 = vsel %vm2251, %v2284, %v2285
        %v2287 = vrot.slane %v2206, 5
        %v2288 = vrot.slane %v2287, 4
        %v2289 = vrot.slane %v1311, 5
        %v2290 = vsel %vm2251, %v2288, %v2289
        %v2291 = vrot.slane %v2289, 4
        %v2292 = vrot.slane %v1353, 5
        %v2293 = vsel %vm2251, %v2291, %v2292
        %v2294 = vrot.slane %v2207, 5
        %v2295 = vrot.slane %v2294, 4
        %v2296 = vrot.slane %v1313, 5
        %v2297 = vsel %vm2251, %v2295, %v2296
        %v2298 = vrot.slane %v2296, 4
        %v2299 = vrot.slane %v1354, 5
        %v2300 = vsel %vm2251, %v2298, %v2299
        %v2301 = vrot.slane %v2208, 5
        %v2302 = vrot.slane %v2301, 4
        %v2303 = vrot.slane %v1315, 5
        %v2304 = vsel %vm2251, %v2302, %v2303
        %v2305 = vrot.slane %v2303, 4
        %v2306 = vrot.slane %v1355, 5
        %v2307 = vsel %vm2251, %v2305, %v2306
        %v2308 = vrot.slane %v2209, 5
        %v2309 = vrot.slane %v2308, 4
        %v2310 = vrot.slane %v1317, 5
        %v2311 = vsel %vm2251, %v2309, %v2310
        %v2312 = vrot.slane %v2310, 4
        %v2313 = vrot.slane %v1356, 5
        %v2314 = vsel %vm2251, %v2312, %v2313
        %v2315 = vrot.slane %v2210, 5
        %v2316 = vrot.slane %v2315, 4
        %v2317 = vrot.slane %v1319, 5
        %v2318 = vsel %vm2251, %v2316, %v2317
        %v2319 = vrot.slane %v2317, 4
        %v2320 = vrot.slane %v1357, 5
        %v2321 = vsel %vm2251, %v2319, %v2320
        %v2322 = vrot.slane %v2211, 5
        %v2323 = vrot.slane %v2322, 4
        %v2324 = vrot.slane %v1321, 5
        %v2325 = vsel %vm2251, %v2323, %v2324
        %v2326 = vrot.slane %v2324, 4
        %v2327 = vrot.slane %v1358, 5
        %v2328 = vsel %vm2251, %v2326, %v2327
        %v2329 = vrot.slane %v2212, 5
        %v2330 = vrot.slane %v2329, 4
        %v2331 = vrot.slane %v1323, 5
        %v2332 = vsel %vm2251, %v2330, %v2331
        %v2333 = vrot.slane %v2331, 4
        %v2334 = vrot.slane %v1359, 5
        %v2335 = vsel %vm2251, %v2333, %v2334
        %v2336 = vrot.slane %v2213, 5
        %v2337 = vrot.slane %v2336, 4
        %v2338 = vrot.slane %v1325, 5
        %v2339 = vsel %vm2251, %v2337, %v2338
        %v2340 = vrot.slane %v2338, 4
        %v2341 = vrot.slane %v1360, 5
        %v2342 = vsel %vm2251, %v2340, %v2341
        %v2343 = vrot.slane %v2214, 5
        %v2344 = vrot.slane %v2343, 4
        %v2345 = vrot.slane %v1327, 5
        %v2346 = vsel %vm2251, %v2344, %v2345
        %v2347 = vrot.slane %v2345, 4
        %v2348 = vrot.slane %v1361, 5
        %v2349 = vsel %vm2251, %v2347, %v2348
        %v2350 = vrot.slane %v2215, 5
        %v2351 = vrot.slane %v2350, 4
        %v2352 = vrot.slane %v1329, 5
        %v2353 = vsel %vm2251, %v2351, %v2352
        %v2354 = vrot.slane %v2352, 4
        %v2355 = vrot.slane %v1362, 5
        %v2356 = vsel %vm2251, %v2354, %v2355
        %v2357 = vrot.slane %v2216, 5
        %v2358 = vrot.slane %v2357, 4
        %v2359 = vrot.slane %v1331, 5
        %v2360 = vsel %vm2251, %v2358, %v2359
        %v2361 = vrot.slane %v2359, 4
        %v2362 = vrot.slane %v1363, 5
        %v2363 = vsel %vm2251, %v2361, %v2362
        %v2364 = vld [vmem:[#allocation8 + $0x80] sm:$0xf]
        %v2365 = vld [vmem:[#allocation8 + $0x84] sm:$0xf]
        %v2366 = vld [vmem:[#allocation8 + $0x88] sm:$0xf]
        %v2367 = vld [vmem:[#allocation8 + $0x8c] sm:$0xf]
        %v2368 = vld [vmem:[#allocation8 + $0x90] sm:$0xf]
        %v2369 = vld [vmem:[#allocation8 + $0x94] sm:$0xf]
        %v2370 = vld [vmem:[#allocation8 + $0x98] sm:$0xf]
        %v2371 = vld [vmem:[#allocation8 + $0x9c] sm:$0xf]
        %v2372 = vld [vmem:[#allocation8 + $0xa0] sm:$0xf]
        %v2373 = vld [vmem:[#allocation8 + $0xa4] sm:$0xf]
        %v2374 = vld [vmem:[#allocation8 + $0xa8] sm:$0xf]
        %v2375 = vld [vmem:[#allocation8 + $0xac] sm:$0xf]
        %v2376 = vld [vmem:[#allocation8 + $0xb0] sm:$0xf]
        %v2377 = vld [vmem:[#allocation8 + $0xb4] sm:$0xf]
        %v2378 = vld [vmem:[#allocation8 + $0xb8] sm:$0xf]
        %v2379 = vld [vmem:[#allocation8 + $0xbc] sm:$0xf]
        %v2380 = vunpack.c.l.b16 %v2255
        %v2381 = vunpack.c.l.b16 %v2258
        %v2382 = vunpack.c.l.b16 %v2262
        %v2383 = vunpack.c.l.b16 %v2265
        %v2384 = vunpack.c.l.b16 %v2269
        %v2385 = vunpack.c.l.b16 %v2272
        %v2386 = vunpack.c.l.b16 %v2276
        %v2387 = vunpack.c.l.b16 %v2279
        %v2388 = vunpack.c.l.b16 %v2283
        %v2389 = vunpack.c.l.b16 %v2286
        %v2390 = vunpack.c.l.b16 %v2290
        %v2391 = vunpack.c.l.b16 %v2293
        %v2392 = vunpack.c.l.b16 %v2297
        %v2393 = vunpack.c.l.b16 %v2300
        %v2394 = vunpack.c.l.b16 %v2304
        %v2395 = vunpack.c.l.b16 %v2307
        %v2396 = vunpack.c.l.b16 %v2311
        %v2397 = vunpack.c.l.b16 %v2314
        %v2398 = vunpack.c.l.b16 %v2318
        %v2399 = vunpack.c.l.b16 %v2321
        %v2400 = vunpack.c.l.b16 %v2325
        %v2401 = vunpack.c.l.b16 %v2328
        %v2402 = vunpack.c.l.b16 %v2332
        %v2403 = vunpack.c.l.b16 %v2335
        %v2404 = vunpack.c.l.b16 %v2339
        %v2405 = vunpack.c.l.b16 %v2342
        %v2406 = vunpack.c.l.b16 %v2346
        %v2407 = vunpack.c.l.b16 %v2349
        %v2408 = vunpack.c.l.b16 %v2353
        %v2409 = vunpack.c.l.b16 %v2356
        %v2410 = vunpack.c.l.b16 %v2360
        %v2411 = vunpack.c.l.b16 %v2363
        %v2412 = vpack.c.b16 %v2381, %v2380
        %v2413 = vpack.c.b16 %v2383, %v2382
        %v2414 = vpack.c.b16 %v2385, %v2384
        %v2415 = vpack.c.b16 %v2387, %v2386
        %v2416 = vpack.c.b16 %v2389, %v2388
        %v2417 = vpack.c.b16 %v2391, %v2390
        %v2418 = vpack.c.b16 %v2393, %v2392
        %v2419 = vpack.c.b16 %v2395, %v2394
        %v2420 = vpack.c.b16 %v2397, %v2396
        %v2421 = vpack.c.b16 %v2399, %v2398
        %v2422 = vpack.c.b16 %v2401, %v2400
        %v2423 = vpack.c.b16 %v2403, %v2402
        %v2424 = vpack.c.b16 %v2405, %v2404
        %v2425 = vpack.c.b16 %v2407, %v2406
        %v2426 = vpack.c.b16 %v2409, %v2408
        %v2427 = vpack.c.b16 %v2411, %v2410
        %v2460 = vunpack.c.l.b16 %v2364
        %v2461 = vunpack.c.l.b16 %v2365
        %v2462 = vunpack.c.l.b16 %v2366
        %v2463 = vunpack.c.l.b16 %v2367
        %v2464 = vunpack.c.l.b16 %v2368
        %v2465 = vunpack.c.l.b16 %v2369
        %v2466 = vunpack.c.l.b16 %v2370
        %v2467 = vunpack.c.l.b16 %v2371
        %v2468 = vunpack.c.l.b16 %v2372
        %v2469 = vunpack.c.l.b16 %v2373
        %v2470 = vunpack.c.l.b16 %v2374
        %v2471 = vunpack.c.l.b16 %v2375
        %v2472 = vunpack.c.l.b16 %v2376
        %v2473 = vunpack.c.l.b16 %v2377
        %v2474 = vunpack.c.l.b16 %v2378
        %v2475 = vunpack.c.l.b16 %v2379
        %v2476 = vpack.c.b16 %v2461, %v2460
        %v2477 = vpack.c.b16 %v2463, %v2462
        %v2478 = vpack.c.b16 %v2465, %v2464
        %v2479 = vpack.c.b16 %v2467, %v2466
        %v2480 = vpack.c.b16 %v2469, %v2468
        %v2481 = vpack.c.b16 %v2471, %v2470
        %v2482 = vpack.c.b16 %v2473, %v2472
        %v2483 = vpack.c.b16 %v2475, %v2474
        %2492 = vmatpush.bf16.msra.mxu0 %v2483
        %2493 = vmatpush.bf16.msra.mxu0 %v2482
        %2494 = vmatpush.bf16.msra.mxu0 %v2481
        %2495 = vmatpush.bf16.msra.mxu0 %v2480
        %2496 = vmatpush.bf16.msra.mxu0 %v2479
        %2497 = vmatpush.bf16.msra.mxu0 %v2478
        %2498 = vmatpush.bf16.msra.mxu0 %v2477
        %2499 = vmatpush.bf16.msra.mxu0 %v2476
        %2500 = vmatmul.bf16.gmra.mxu0 %v2412
        %v2501 = vpop.f32.mrf.mxu0
        %v2502 = vadd.f32 0.0, %v2501
        %v2503 = vpop.f32.mrf.mxu0
        %v2504 = vadd.f32 0.0, %v2503
        %2505 = vmatmul.bf16.gmra.mxu0 %v2413
        %v2506 = vpop.f32.mrf.mxu0
        %v2507 = vadd.f32 0.0, %v2506
        %v2508 = vpop.f32.mrf.mxu0
        %v2509 = vadd.f32 0.0, %v2508
        %2510 = vmatmul.bf16.gmra.mxu0 %v2414
        %v2511 = vpop.f32.mrf.mxu0
        %v2512 = vadd.f32 0.0, %v2511
        %v2513 = vpop.f32.mrf.mxu0
        %v2514 = vadd.f32 0.0, %v2513
        %2515 = vmatmul.bf16.gmra.mxu0 %v2415
        %v2516 = vpop.f32.mrf.mxu0
        %v2517 = vadd.f32 0.0, %v2516
        %v2518 = vpop.f32.mrf.mxu0
        %v2519 = vadd.f32 0.0, %v2518
        %2520 = vmatmul.bf16.gmra.mxu0 %v2416
        %v2521 = vpop.f32.mrf.mxu0
        %v2522 = vadd.f32 0.0, %v2521
        %v2523 = vpop.f32.mrf.mxu0
        %v2524 = vadd.f32 0.0, %v2523
        %2525 = vmatmul.bf16.gmra.mxu0 %v2417
        %v2526 = vpop.f32.mrf.mxu0
        %v2527 = vadd.f32 0.0, %v2526
        %v2528 = vpop.f32.mrf.mxu0
        %v2529 = vadd.f32 0.0, %v2528
        %2530 = vmatmul.bf16.gmra.mxu0 %v2418
        %v2531 = vpop.f32.mrf.mxu0
        %v2532 = vadd.f32 0.0, %v2531
        %v2533 = vpop.f32.mrf.mxu0
        %v2534 = vadd.f32 0.0, %v2533
        %2535 = vmatmul.bf16.gmra.mxu0 %v2419
        %v2536 = vpop.f32.mrf.mxu0
        %v2537 = vadd.f32 0.0, %v2536
        %v2538 = vpop.f32.mrf.mxu0
        %v2539 = vadd.f32 0.0, %v2538
        %2540 = vmatmul.bf16.gmra.mxu0 %v2420
        %v2541 = vpop.f32.mrf.mxu0
        %v2542 = vadd.f32 0.0, %v2541
        %v2543 = vpop.f32.mrf.mxu0
        %v2544 = vadd.f32 0.0, %v2543
        %2545 = vmatmul.bf16.gmra.mxu0 %v2421
        %v2546 = vpop.f32.mrf.mxu0
        %v2547 = vadd.f32 0.0, %v2546
        %v2548 = vpop.f32.mrf.mxu0
        %v2549 = vadd.f32 0.0, %v2548
        %2550 = vmatmul.bf16.gmra.mxu0 %v2422
        %v2551 = vpop.f32.mrf.mxu0
        %v2552 = vadd.f32 0.0, %v2551
        %v2553 = vpop.f32.mrf.mxu0
        %v2554 = vadd.f32 0.0, %v2553
        %2555 = vmatmul.bf16.gmra.mxu0 %v2423
        %v2556 = vpop.f32.mrf.mxu0
        %v2557 = vadd.f32 0.0, %v2556
        %v2558 = vpop.f32.mrf.mxu0
        %v2559 = vadd.f32 0.0, %v2558
        %2560 = vmatmul.bf16.gmra.mxu0 %v2424
        %v2561 = vpop.f32.mrf.mxu0
        %v2562 = vadd.f32 0.0, %v2561
        %v2563 = vpop.f32.mrf.mxu0
        %v2564 = vadd.f32 0.0, %v2563
        %2565 = vmatmul.bf16.gmra.mxu0 %v2425
        %v2566 = vpop.f32.mrf.mxu0
        %v2567 = vadd.f32 0.0, %v2566
        %v2568 = vpop.f32.mrf.mxu0
        %v2569 = vadd.f32 0.0, %v2568
        %2570 = vmatmul.bf16.gmra.mxu0 %v2426
        %v2571 = vpop.f32.mrf.mxu0
        %v2572 = vadd.f32 0.0, %v2571
        %v2573 = vpop.f32.mrf.mxu0
        %v2574 = vadd.f32 0.0, %v2573
        %2575 = vmatmul.bf16.gmra.mxu0 %v2427
        %v2576 = vpop.f32.mrf.mxu0
        %v2577 = vadd.f32 0.0, %v2576
        %v2578 = vpop.f32.mrf.mxu0
        %v2579 = vadd.f32 0.0, %v2578
        %2580 = vdwg.mxu0
        %v2581 = vadd.f32 %v2122, %v2502
        %v2582 = vadd.f32 %v2124, %v2504
        %v2583 = vadd.f32 %v2127, %v2507
        %v2584 = vadd.f32 %v2129, %v2509
        %v2585 = vadd.f32 %v2132, %v2512
        %v2586 = vadd.f32 %v2134, %v2514
        %v2587 = vadd.f32 %v2137, %v2517
        %v2588 = vadd.f32 %v2139, %v2519
        %v2589 = vadd.f32 %v2142, %v2522
        %v2590 = vadd.f32 %v2144, %v2524
        %v2591 = vadd.f32 %v2147, %v2527
        %v2592 = vadd.f32 %v2149, %v2529
        %v2593 = vadd.f32 %v2152, %v2532
        %v2594 = vadd.f32 %v2154, %v2534
        %v2595 = vadd.f32 %v2157, %v2537
        %v2596 = vadd.f32 %v2159, %v2539
        %v2597 = vadd.f32 %v2162, %v2542
        %v2598 = vadd.f32 %v2164, %v2544
        %v2599 = vadd.f32 %v2167, %v2547
        %v2600 = vadd.f32 %v2169, %v2549
        %v2601 = vadd.f32 %v2172, %v2552
        %v2602 = vadd.f32 %v2174, %v2554
        %v2603 = vadd.f32 %v2177, %v2557
        %v2604 = vadd.f32 %v2179, %v2559
        %v2605 = vadd.f32 %v2182, %v2562
        %v2606 = vadd.f32 %v2184, %v2564
        %v2607 = vadd.f32 %v2187, %v2567
        %v2608 = vadd.f32 %v2189, %v2569
        %v2609 = vadd.f32 %v2192, %v2572
        %v2610 = vadd.f32 %v2194, %v2574
        %v2611 = vadd.f32 %v2197, %v2577
        %v2612 = vadd.f32 %v2199, %v2579
        %v2613 = vld [vmem:[%s1185] sm:$0xf]
        %v2614 = vld [vmem:[%s1185 + $0x4] sm:$0xf]
        %v2615 = vld [vmem:[%s1185 + $0xc] sm:$0xf]
        %v2616 = vld [vmem:[%s1185 + $0x10] sm:$0xf]
        %v2617 = vld [vmem:[%s1185 + $0x18] sm:$0xf]
        %v2618 = vld [vmem:[%s1185 + $0x1c] sm:$0xf]
        %v2619 = vld [vmem:[%s1185 + $0x24] sm:$0xf]
        %v2620 = vld [vmem:[%s1185 + $0x28] sm:$0xf]
        %v2621 = vld [vmem:[%s1185 + $0x30] sm:$0xf]
        %v2622 = vld [vmem:[%s1185 + $0x34] sm:$0xf]
        %v2623 = vld [vmem:[%s1185 + $0x3c] sm:$0xf]
        %v2624 = vld [vmem:[%s1185 + $0x40] sm:$0xf]
        %v2625 = vld [vmem:[%s1185 + $0x48] sm:$0xf]
        %v2626 = vld [vmem:[%s1185 + $0x4c] sm:$0xf]
        %v2627 = vld [vmem:[%s1185 + $0x54] sm:$0xf]
        %v2628 = vld [vmem:[%s1185 + $0x58] sm:$0xf]
        %v2629 = vld [vmem:[%s1185 + $0x60] sm:$0xf]
        %v2630 = vld [vmem:[%s1185 + $0x64] sm:$0xf]
        %v2631 = vld [vmem:[%s1185 + $0x6c] sm:$0xf]
        %v2632 = vld [vmem:[%s1185 + $0x70] sm:$0xf]
        %v2633 = vld [vmem:[%s1185 + $0x78] sm:$0xf]
        %v2634 = vld [vmem:[%s1185 + $0x7c] sm:$0xf]
        %v2635 = vld [vmem:[%s1185 + $0x84] sm:$0xf]
        %v2636 = vld [vmem:[%s1185 + $0x88] sm:$0xf]
        %v2637 = vld [vmem:[%s1185 + $0x90] sm:$0xf]
        %v2638 = vld [vmem:[%s1185 + $0x94] sm:$0xf]
        %v2639 = vld [vmem:[%s1185 + $0x9c] sm:$0xf]
        %v2640 = vld [vmem:[%s1185 + $0xa0] sm:$0xf]
        %v2641 = vld [vmem:[%s1185 + $0xa8] sm:$0xf]
        %v2642 = vld [vmem:[%s1185 + $0xac] sm:$0xf]
        %v2643 = vld [vmem:[%s1185 + $0xb4] sm:$0xf]
        %v2644 = vld [vmem:[%s1185 + $0xb8] sm:$0xf]
        %v2645 = vld [vmem:[#allocation8 + $0xc0] sm:$0xf]
        %v2646 = vld [vmem:[#allocation8 + $0xc4] sm:$0xf]
        %v2647 = vld [vmem:[#allocation8 + $0xc8] sm:$0xf]
        %v2648 = vld [vmem:[#allocation8 + $0xcc] sm:$0xf]
        %v2649 = vld [vmem:[#allocation8 + $0xd0] sm:$0xf]
        %v2650 = vld [vmem:[#allocation8 + $0xd4] sm:$0xf]
        %v2651 = vld [vmem:[#allocation8 + $0xd8] sm:$0xf]
        %v2652 = vld [vmem:[#allocation8 + $0xdc] sm:$0xf]
        %v2653 = vld [vmem:[#allocation8 + $0xe0] sm:$0xf]
        %v2654 = vld [vmem:[#allocation8 + $0xe4] sm:$0xf]
        %v2655 = vld [vmem:[#allocation8 + $0xe8] sm:$0xf]
        %v2656 = vld [vmem:[#allocation8 + $0xec] sm:$0xf]
        %v2657 = vld [vmem:[#allocation8 + $0xf0] sm:$0xf]
        %v2658 = vld [vmem:[#allocation8 + $0xf4] sm:$0xf]
        %v2659 = vld [vmem:[#allocation8 + $0xf8] sm:$0xf]
        %v2660 = vld [vmem:[#allocation8 + $0xfc] sm:$0xf]
        %v2693 = vunpack.c.l.b16 %v2613
        %v2694 = vunpack.c.l.b16 %v2614
        %v2695 = vunpack.c.l.b16 %v2615
        %v2696 = vunpack.c.l.b16 %v2616
        %v2697 = vunpack.c.l.b16 %v2617
        %v2698 = vunpack.c.l.b16 %v2618
        %v2699 = vunpack.c.l.b16 %v2619
        %v2700 = vunpack.c.l.b16 %v2620
        %v2701 = vunpack.c.l.b16 %v2621
        %v2702 = vunpack.c.l.b16 %v2622
        %v2703 = vunpack.c.l.b16 %v2623
        %v2704 = vunpack.c.l.b16 %v2624
        %v2705 = vunpack.c.l.b16 %v2625
        %v2706 = vunpack.c.l.b16 %v2626
        %v2707 = vunpack.c.l.b16 %v2627
        %v2708 = vunpack.c.l.b16 %v2628
        %v2709 = vunpack.c.l.b16 %v2629
        %v2710 = vunpack.c.l.b16 %v2630
        %v2711 = vunpack.c.l.b16 %v2631
        %v2712 = vunpack.c.l.b16 %v2632
        %v2713 = vunpack.c.l.b16 %v2633
        %v2714 = vunpack.c.l.b16 %v2634
        %v2715 = vunpack.c.l.b16 %v2635
        %v2716 = vunpack.c.l.b16 %v2636
        %v2717 = vunpack.c.l.b16 %v2637
        %v2718 = vunpack.c.l.b16 %v2638
        %v2719 = vunpack.c.l.b16 %v2639
        %v2720 = vunpack.c.l.b16 %v2640
        %v2721 = vunpack.c.l.b16 %v2641
        %v2722 = vunpack.c.l.b16 %v2642
        %v2723 = vunpack.c.l.b16 %v2643
        %v2724 = vunpack.c.l.b16 %v2644
        %v2725 = vpack.c.b16 %v2694, %v2693
        %v2726 = vpack.c.b16 %v2696, %v2695
        %v2727 = vpack.c.b16 %v2698, %v2697
        %v2728 = vpack.c.b16 %v2700, %v2699
        %v2729 = vpack.c.b16 %v2702, %v2701
        %v2730 = vpack.c.b16 %v2704, %v2703
        %v2731 = vpack.c.b16 %v2706, %v2705
        %v2732 = vpack.c.b16 %v2708, %v2707
        %v2733 = vpack.c.b16 %v2710, %v2709
        %v2734 = vpack.c.b16 %v2712, %v2711
        %v2735 = vpack.c.b16 %v2714, %v2713
        %v2736 = vpack.c.b16 %v2716, %v2715
        %v2737 = vpack.c.b16 %v2718, %v2717
        %v2738 = vpack.c.b16 %v2720, %v2719
        %v2739 = vpack.c.b16 %v2722, %v2721
        %v2740 = vpack.c.b16 %v2724, %v2723
        %v2773 = vunpack.c.l.b16 %v2645
        %v2774 = vunpack.c.l.b16 %v2646
        %v2775 = vunpack.c.l.b16 %v2647
        %v2776 = vunpack.c.l.b16 %v2648
        %v2777 = vunpack.c.l.b16 %v2649
        %v2778 = vunpack.c.l.b16 %v2650
        %v2779 = vunpack.c.l.b16 %v2651
        %v2780 = vunpack.c.l.b16 %v2652
        %v2781 = vunpack.c.l.b16 %v2653
        %v2782 = vunpack.c.l.b16 %v2654
        %v2783 = vunpack.c.l.b16 %v2655
        %v2784 = vunpack.c.l.b16 %v2656
        %v2785 = vunpack.c.l.b16 %v2657
        %v2786 = vunpack.c.l.b16 %v2658
        %v2787 = vunpack.c.l.b16 %v2659
        %v2788 = vunpack.c.l.b16 %v2660
        %v2789 = vpack.c.b16 %v2774, %v2773
        %v2790 = vpack.c.b16 %v2776, %v2775
        %v2791 = vpack.c.b16 %v2778, %v2777
        %v2792 = vpack.c.b16 %v2780, %v2779
        %v2793 = vpack.c.b16 %v2782, %v2781
        %v2794 = vpack.c.b16 %v2784, %v2783
        %v2795 = vpack.c.b16 %v2786, %v2785
        %v2796 = vpack.c.b16 %v2788, %v2787
        %2805 = vmatpush.bf16.msra.mxu0 %v2796
        %2806 = vmatpush.bf16.msra.mxu0 %v2795
        %2807 = vmatpush.bf16.msra.mxu0 %v2794
        %2808 = vmatpush.bf16.msra.mxu0 %v2793
        %2809 = vmatpush.bf16.msra.mxu0 %v2792
        %2810 = vmatpush.bf16.msra.mxu0 %v2791
        %2811 = vmatpush.bf16.msra.mxu0 %v2790
        %2812 = vmatpush.bf16.msra.mxu0 %v2789
        %2813 = vmatmul.bf16.gmra.mxu0 %v2725
        %v2814 = vpop.f32.mrf.mxu0
        %v2815 = vadd.f32 0.0, %v2814
        %v2816 = vpop.f32.mrf.mxu0
        %v2817 = vadd.f32 0.0, %v2816
        %2818 = vmatmul.bf16.gmra.mxu0 %v2726
        %v2819 = vpop.f32.mrf.mxu0
        %v2820 = vadd.f32 0.0, %v2819
        %v2821 = vpop.f32.mrf.mxu0
        %v2822 = vadd.f32 0.0, %v2821
        %2823 = vmatmul.bf16.gmra.mxu0 %v2727
        %v2824 = vpop.f32.mrf.mxu0
        %v2825 = vadd.f32 0.0, %v2824
        %v2826 = vpop.f32.mrf.mxu0
        %v2827 = vadd.f32 0.0, %v2826
        %2828 = vmatmul.bf16.gmra.mxu0 %v2728
        %v2829 = vpop.f32.mrf.mxu0
        %v2830 = vadd.f32 0.0, %v2829
        %v2831 = vpop.f32.mrf.mxu0
        %v2832 = vadd.f32 0.0, %v2831
        %2833 = vmatmul.bf16.gmra.mxu0 %v2729
        %v2834 = vpop.f32.mrf.mxu0
        %v2835 = vadd.f32 0.0, %v2834
        %v2836 = vpop.f32.mrf.mxu0
        %v2837 = vadd.f32 0.0, %v2836
        %2838 = vmatmul.bf16.gmra.mxu0 %v2730
        %v2839 = vpop.f32.mrf.mxu0
        %v2840 = vadd.f32 0.0, %v2839
        %v2841 = vpop.f32.mrf.mxu0
        %v2842 = vadd.f32 0.0, %v2841
        %2843 = vmatmul.bf16.gmra.mxu0 %v2731
        %v2844 = vpop.f32.mrf.mxu0
        %v2845 = vadd.f32 0.0, %v2844
        %v2846 = vpop.f32.mrf.mxu0
        %v2847 = vadd.f32 0.0, %v2846
        %2848 = vmatmul.bf16.gmra.mxu0 %v2732
        %v2849 = vpop.f32.mrf.mxu0
        %v2850 = vadd.f32 0.0, %v2849
        %v2851 = vpop.f32.mrf.mxu0
        %v2852 = vadd.f32 0.0, %v2851
        %2853 = vmatmul.bf16.gmra.mxu0 %v2733
        %v2854 = vpop.f32.mrf.mxu0
        %v2855 = vadd.f32 0.0, %v2854
        %v2856 = vpop.f32.mrf.mxu0
        %v2857 = vadd.f32 0.0, %v2856
        %2858 = vmatmul.bf16.gmra.mxu0 %v2734
        %v2859 = vpop.f32.mrf.mxu0
        %v2860 = vadd.f32 0.0, %v2859
        %v2861 = vpop.f32.mrf.mxu0
        %v2862 = vadd.f32 0.0, %v2861
        %2863 = vmatmul.bf16.gmra.mxu0 %v2735
        %v2864 = vpop.f32.mrf.mxu0
        %v2865 = vadd.f32 0.0, %v2864
        %v2866 = vpop.f32.mrf.mxu0
        %v2867 = vadd.f32 0.0, %v2866
        %2868 = vmatmul.bf16.gmra.mxu0 %v2736
        %v2869 = vpop.f32.mrf.mxu0
        %v2870 = vadd.f32 0.0, %v2869
        %v2871 = vpop.f32.mrf.mxu0
        %v2872 = vadd.f32 0.0, %v2871
        %2873 = vmatmul.bf16.gmra.mxu0 %v2737
        %v2874 = vpop.f32.mrf.mxu0
        %v2875 = vadd.f32 0.0, %v2874
        %v2876 = vpop.f32.mrf.mxu0
        %v2877 = vadd.f32 0.0, %v2876
        %2878 = vmatmul.bf16.gmra.mxu0 %v2738
        %v2879 = vpop.f32.mrf.mxu0
        %v2880 = vadd.f32 0.0, %v2879
        %v2881 = vpop.f32.mrf.mxu0
        %v2882 = vadd.f32 0.0, %v2881
        %2883 = vmatmul.bf16.gmra.mxu0 %v2739
        %v2884 = vpop.f32.mrf.mxu0
        %v2885 = vadd.f32 0.0, %v2884
        %v2886 = vpop.f32.mrf.mxu0
        %v2887 = vadd.f32 0.0, %v2886
        %2888 = vmatmul.bf16.gmra.mxu0 %v2740
        %v2889 = vpop.f32.mrf.mxu0
        %v2890 = vadd.f32 0.0, %v2889
        %v2891 = vpop.f32.mrf.mxu0
        %v2892 = vadd.f32 0.0, %v2891
        %2893 = vdwg.mxu0
        %v2894 = vadd.f32 %v2581, %v2815
        %v2895 = vadd.f32 %v2582, %v2817
        %v2896 = vadd.f32 %v2583, %v2820
        %v2897 = vadd.f32 %v2584, %v2822
        %v2898 = vadd.f32 %v2585, %v2825
        %v2899 = vadd.f32 %v2586, %v2827
        %v2900 = vadd.f32 %v2587, %v2830
        %v2901 = vadd.f32 %v2588, %v2832
        %v2902 = vadd.f32 %v2589, %v2835
        %v2903 = vadd.f32 %v2590, %v2837
        %v2904 = vadd.f32 %v2591, %v2840
        %v2905 = vadd.f32 %v2592, %v2842
        %v2906 = vadd.f32 %v2593, %v2845
        %v2907 = vadd.f32 %v2594, %v2847
        %v2908 = vadd.f32 %v2595, %v2850
        %v2909 = vadd.f32 %v2596, %v2852
        %v2910 = vadd.f32 %v2597, %v2855
        %v2911 = vadd.f32 %v2598, %v2857
        %v2912 = vadd.f32 %v2599, %v2860
        %v2913 = vadd.f32 %v2600, %v2862
        %v2914 = vadd.f32 %v2601, %v2865
        %v2915 = vadd.f32 %v2602, %v2867
        %v2916 = vadd.f32 %v2603, %v2870
        %v2917 = vadd.f32 %v2604, %v2872
        %v2918 = vadd.f32 %v2605, %v2875
        %v2919 = vadd.f32 %v2606, %v2877
        %v2920 = vadd.f32 %v2607, %v2880
        %v2921 = vadd.f32 %v2608, %v2882
        %v2922 = vadd.f32 %v2609, %v2885
        %v2923 = vadd.f32 %v2610, %v2887
        %v2924 = vadd.f32 %v2611, %v2890
        %v2925 = vadd.f32 %v2612, %v2892
        %v2926 = vld [vmem:[%s1185] sm:$0xf]
        %v2927 = vld [vmem:[%s1185 + $0x4] sm:$0xf]
        %v2928 = vld [vmem:[%s1185 + $0x8] sm:$0x1]
        %v2929 = vld [vmem:[%s1185 + $0xc] sm:$0xf]
        %v2930 = vld [vmem:[%s1185 + $0x10] sm:$0xf]
        %v2931 = vld [vmem:[%s1185 + $0x14] sm:$0x1]
        %v2932 = vld [vmem:[%s1185 + $0x18] sm:$0xf]
        %v2933 = vld [vmem:[%s1185 + $0x1c] sm:$0xf]
        %v2934 = vld [vmem:[%s1185 + $0x20] sm:$0x1]
        %v2935 = vld [vmem:[%s1185 + $0x24] sm:$0xf]
        %v2936 = vld [vmem:[%s1185 + $0x28] sm:$0xf]
        %v2937 = vld [vmem:[%s1185 + $0x2c] sm:$0x1]
        %v2938 = vld [vmem:[%s1185 + $0x30] sm:$0xf]
        %v2939 = vld [vmem:[%s1185 + $0x34] sm:$0xf]
        %v2940 = vld [vmem:[%s1185 + $0x38] sm:$0x1]
        %v2941 = vld [vmem:[%s1185 + $0x3c] sm:$0xf]
        %v2942 = vld [vmem:[%s1185 + $0x40] sm:$0xf]
        %v2943 = vld [vmem:[%s1185 + $0x44] sm:$0x1]
        %v2944 = vld [vmem:[%s1185 + $0x48] sm:$0xf]
        %v2945 = vld [vmem:[%s1185 + $0x4c] sm:$0xf]
        %v2946 = vld [vmem:[%s1185 + $0x50] sm:$0x1]
        %v2947 = vld [vmem:[%s1185 + $0x54] sm:$0xf]
        %v2948 = vld [vmem:[%s1185 + $0x58] sm:$0xf]
        %v2949 = vld [vmem:[%s1185 + $0x5c] sm:$0x1]
        %v2950 = vld [vmem:[%s1185 + $0x60] sm:$0xf]
        %v2951 = vld [vmem:[%s1185 + $0x64] sm:$0xf]
        %v2952 = vld [vmem:[%s1185 + $0x68] sm:$0x1]
        %v2953 = vld [vmem:[%s1185 + $0x6c] sm:$0xf]
        %v2954 = vld [vmem:[%s1185 + $0x70] sm:$0xf]
        %v2955 = vld [vmem:[%s1185 + $0x74] sm:$0x1]
        %v2956 = vld [vmem:[%s1185 + $0x78] sm:$0xf]
        %v2957 = vld [vmem:[%s1185 + $0x7c] sm:$0xf]
        %v2958 = vld [vmem:[%s1185 + $0x80] sm:$0x1]
        %v2959 = vld [vmem:[%s1185 + $0x84] sm:$0xf]
        %v2960 = vld [vmem:[%s1185 + $0x88] sm:$0xf]
        %v2961 = vld [vmem:[%s1185 + $0x8c] sm:$0x1]
        %v2962 = vld [vmem:[%s1185 + $0x90] sm:$0xf]
        %v2963 = vld [vmem:[%s1185 + $0x94] sm:$0xf]
        %v2964 = vld [vmem:[%s1185 + $0x98] sm:$0x1]
        %v2965 = vld [vmem:[%s1185 + $0x9c] sm:$0xf]
        %v2966 = vld [vmem:[%s1185 + $0xa0] sm:$0xf]
        %v2967 = vld [vmem:[%s1185 + $0xa4] sm:$0x1]
        %v2968 = vld [vmem:[%s1185 + $0xa8] sm:$0xf]
        %v2969 = vld [vmem:[%s1185 + $0xac] sm:$0xf]
        %v2970 = vld [vmem:[%s1185 + $0xb0] sm:$0x1]
        %v2971 = vld [vmem:[%s1185 + $0xb4] sm:$0xf]
        %v2972 = vld [vmem:[%s1185 + $0xb8] sm:$0xf]
        %v2973 = vld [vmem:[%s1185 + $0xbc] sm:$0x1]
        %v2975 = vshrl.u32 %v2926, 16
        %v2977 = vrot.slane %v2975, 4
        %v2978 = vshll.u32 %v2926, 16
        %v2980 = vrot.slane %v2978, 5
        %v2981 = vor.u32 %v2977, %v2980
        %v2982 = vrot.slane %v2981, 4
        %v2984 = vshll.u32 %v2927, 16
        %v2986 = vrot.slane %v2984, 5
        %v2987 = vsel %vm1366, %v2982, %v2986
        %v2988 = vshrl.u32 %v2927, 16
        %v2990 = vrot.slane %v2988, 4
        %v2991 = vor.u32 %v2990, %v2986
        %v2992 = vrot.slane %v2991, 4
        %v2994 = vshll.u32 %v2928, 16
        %v2996 = vrot.slane %v2994, 5
        %v2997 = vsel %vm1366, %v2992, %v2996
        %v2999 = vshrl.u32 %v2929, 16
        %v3001 = vrot.slane %v2999, 4
        %v3002 = vshll.u32 %v2929, 16
        %v3004 = vrot.slane %v3002, 5
        %v3005 = vor.u32 %v3001, %v3004
        %v3006 = vrot.slane %v3005, 4
        %v3008 = vshll.u32 %v2930, 16
        %v3010 = vrot.slane %v3008, 5
        %v3011 = vsel %vm1366, %v3006, %v3010
        %v3012 = vshrl.u32 %v2930, 16
        %v3014 = vrot.slane %v3012, 4
        %v3015 = vor.u32 %v3014, %v3010
        %v3016 = vrot.slane %v3015, 4
        %v3018 = vshll.u32 %v2931, 16
        %v3020 = vrot.slane %v3018, 5
        %v3021 = vsel %vm1366, %v3016, %v3020
        %v3023 = vshrl.u32 %v2932, 16
        %v3025 = vrot.slane %v3023, 4
        %v3026 = vshll.u32 %v2932, 16
        %v3028 = vrot.slane %v3026, 5
        %v3029 = vor.u32 %v3025, %v3028
        %v3030 = vrot.slane %v3029, 4
        %v3032 = vshll.u32 %v2933, 16
        %v3034 = vrot.slane %v3032, 5
        %v3035 = vsel %vm1366, %v3030, %v3034
        %v3036 = vshrl.u32 %v2933, 16
        %v3038 = vrot.slane %v3036, 4
        %v3039 = vor.u32 %v3038, %v3034
        %v3040 = vrot.slane %v3039, 4
        %v3042 = vshll.u32 %v2934, 16
        %v3044 = vrot.slane %v3042, 5
        %v3045 = vsel %vm1366, %v3040, %v3044
        %v3047 = vshrl.u32 %v2935, 16
        %v3049 = vrot.slane %v3047, 4
        %v3050 = vshll.u32 %v2935, 16
        %v3052 = vrot.slane %v3050, 5
        %v3053 = vor.u32 %v3049, %v3052
        %v3054 = vrot.slane %v3053, 4
        %v3056 = vshll.u32 %v2936, 16
        %v3058 = vrot.slane %v3056, 5
        %v3059 = vsel %vm1366, %v3054, %v3058
        %v3060 = vshrl.u32 %v2936, 16
        %v3062 = vrot.slane %v3060, 4
        %v3063 = vor.u32 %v3062, %v3058
        %v3064 = vrot.slane %v3063, 4
        %v3066 = vshll.u32 %v2937, 16
        %v3068 = vrot.slane %v3066, 5
        %v3069 = vsel %vm1366, %v3064, %v3068
        %v3071 = vshrl.u32 %v2938, 16
        %v3073 = vrot.slane %v3071, 4
        %v3074 = vshll.u32 %v2938, 16
        %v3076 = vrot.slane %v3074, 5
        %v3077 = vor.u32 %v3073, %v3076
        %v3078 = vrot.slane %v3077, 4
        %v3080 = vshll.u32 %v2939, 16
        %v3082 = vrot.slane %v3080, 5
        %v3083 = vsel %vm1366, %v3078, %v3082
        %v3084 = vshrl.u32 %v2939, 16
        %v3086 = vrot.slane %v3084, 4
        %v3087 = vor.u32 %v3086, %v3082
        %v3088 = vrot.slane %v3087, 4
        %v3090 = vshll.u32 %v2940, 16
        %v3092 = vrot.slane %v3090, 5
        %v3093 = vsel %vm1366, %v3088, %v3092
        %v3095 = vshrl.u32 %v2941, 16
        %v3097 = vrot.slane %v3095, 4
        %v3098 = vshll.u32 %v2941, 16
        %v3100 = vrot.slane %v3098, 5
        %v3101 = vor.u32 %v3097, %v3100
        %v3102 = vrot.slane %v3101, 4
        %v3104 = vshll.u32 %v2942, 16
        %v3106 = vrot.slane %v3104, 5
        %v3107 = vsel %vm1366, %v3102, %v3106
        %v3108 = vshrl.u32 %v2942, 16
        %v3110 = vrot.slane %v3108, 4
        %v3111 = vor.u32 %v3110, %v3106
        %v3112 = vrot.slane %v3111, 4
        %v3114 = vshll.u32 %v2943, 16
        %v3116 = vrot.slane %v3114, 5
        %v3117 = vsel %vm1366, %v3112, %v3116
        %v3119 = vshrl.u32 %v2944, 16
        %v3121 = vrot.slane %v3119, 4
        %v3122 = vshll.u32 %v2944, 16
        %v3124 = vrot.slane %v3122, 5
        %v3125 = vor.u32 %v3121, %v3124
        %v3126 = vrot.slane %v3125, 4
        %v3128 = vshll.u32 %v2945, 16
        %v3130 = vrot.slane %v3128, 5
        %v3131 = vsel %vm1366, %v3126, %v3130
        %v3132 = vshrl.u32 %v2945, 16
        %v3134 = vrot.slane %v3132, 4
        %v3135 = vor.u32 %v3134, %v3130
        %v3136 = vrot.slane %v3135, 4
        %v3138 = vshll.u32 %v2946, 16
        %v3140 = vrot.slane %v3138, 5
        %v3141 = vsel %vm1366, %v3136, %v3140
        %v3143 = vshrl.u32 %v2947, 16
        %v3145 = vrot.slane %v3143, 4
        %v3146 = vshll.u32 %v2947, 16
        %v3148 = vrot.slane %v3146, 5
        %v3149 = vor.u32 %v3145, %v3148
        %v3150 = vrot.slane %v3149, 4
        %v3152 = vshll.u32 %v2948, 16
        %v3154 = vrot.slane %v3152, 5
        %v3155 = vsel %vm1366, %v3150, %v3154
        %v3156 = vshrl.u32 %v2948, 16
        %v3158 = vrot.slane %v3156, 4
        %v3159 = vor.u32 %v3158, %v3154
        %v3160 = vrot.slane %v3159, 4
        %v3162 = vshll.u32 %v2949, 16
        %v3164 = vrot.slane %v3162, 5
        %v3165 = vsel %vm1366, %v3160, %v3164
        %v3167 = vshrl.u32 %v2950, 16
        %v3169 = vrot.slane %v3167, 4
        %v3170 = vshll.u32 %v2950, 16
        %v3172 = vrot.slane %v3170, 5
        %v3173 = vor.u32 %v3169, %v3172
        %v3174 = vrot.slane %v3173, 4
        %v3176 = vshll.u32 %v2951, 16
        %v3178 = vrot.slane %v3176, 5
        %v3179 = vsel %vm1366, %v3174, %v3178
        %v3180 = vshrl.u32 %v2951, 16
        %v3182 = vrot.slane %v3180, 4
        %v3183 = vor.u32 %v3182, %v3178
        %v3184 = vrot.slane %v3183, 4
        %v3186 = vshll.u32 %v2952, 16
        %v3188 = vrot.slane %v3186, 5
        %v3189 = vsel %vm1366, %v3184, %v3188
        %v3191 = vshrl.u32 %v2953, 16
        %v3193 = vrot.slane %v3191, 4
        %v3194 = vshll.u32 %v2953, 16
        %v3196 = vrot.slane %v3194, 5
        %v3197 = vor.u32 %v3193, %v3196
        %v3198 = vrot.slane %v3197, 4
        %v3200 = vshll.u32 %v2954, 16
        %v3202 = vrot.slane %v3200, 5
        %v3203 = vsel %vm1366, %v3198, %v3202
        %v3204 = vshrl.u32 %v2954, 16
        %v3206 = vrot.slane %v3204, 4
        %v3207 = vor.u32 %v3206, %v3202
        %v3208 = vrot.slane %v3207, 4
        %v3210 = vshll.u32 %v2955, 16
        %v3212 = vrot.slane %v3210, 5
        %v3213 = vsel %vm1366, %v3208, %v3212
        %v3215 = vshrl.u32 %v2956, 16
        %v3217 = vrot.slane %v3215, 4
        %v3218 = vshll.u32 %v2956, 16
        %v3220 = vrot.slane %v3218, 5
        %v3221 = vor.u32 %v3217, %v3220
        %v3222 = vrot.slane %v3221, 4
        %v3224 = vshll.u32 %v2957, 16
        %v3226 = vrot.slane %v3224, 5
        %v3227 = vsel %vm1366, %v3222, %v3226
        %v3228 = vshrl.u32 %v2957, 16
        %v3230 = vrot.slane %v3228, 4
        %v3231 = vor.u32 %v3230, %v3226
        %v3232 = vrot.slane %v3231, 4
        %v3234 = vshll.u32 %v2958, 16
        %v3236 = vrot.slane %v3234, 5
        %v3237 = vsel %vm1366, %v3232, %v3236
        %v3239 = vshrl.u32 %v2959, 16
        %v3241 = vrot.slane %v3239, 4
        %v3242 = vshll.u32 %v2959, 16
        %v3244 = vrot.slane %v3242, 5
        %v3245 = vor.u32 %v3241, %v3244
        %v3246 = vrot.slane %v3245, 4
        %v3248 = vshll.u32 %v2960, 16
        %v3250 = vrot.slane %v3248, 5
        %v3251 = vsel %vm1366, %v3246, %v3250
        %v3252 = vshrl.u32 %v2960, 16
        %v3254 = vrot.slane %v3252, 4
        %v3255 = vor.u32 %v3254, %v3250
        %v3256 = vrot.slane %v3255, 4
        %v3258 = vshll.u32 %v2961, 16
        %v3260 = vrot.slane %v3258, 5
        %v3261 = vsel %vm1366, %v3256, %v3260
        %v3263 = vshrl.u32 %v2962, 16
        %v3265 = vrot.slane %v3263, 4
        %v3266 = vshll.u32 %v2962, 16
        %v3268 = vrot.slane %v3266, 5
        %v3269 = vor.u32 %v3265, %v3268
        %v3270 = vrot.slane %v3269, 4
        %v3272 = vshll.u32 %v2963, 16
        %v3274 = vrot.slane %v3272, 5
        %v3275 = vsel %vm1366, %v3270, %v3274
        %v3276 = vshrl.u32 %v2963, 16
        %v3278 = vrot.slane %v3276, 4
        %v3279 = vor.u32 %v3278, %v3274
        %v3280 = vrot.slane %v3279, 4
        %v3282 = vshll.u32 %v2964, 16
        %v3284 = vrot.slane %v3282, 5
        %v3285 = vsel %vm1366, %v3280, %v3284
        %v3287 = vshrl.u32 %v2965, 16
        %v3289 = vrot.slane %v3287, 4
        %v3290 = vshll.u32 %v2965, 16
        %v3292 = vrot.slane %v3290, 5
        %v3293 = vor.u32 %v3289, %v3292
        %v3294 = vrot.slane %v3293, 4
        %v3296 = vshll.u32 %v2966, 16
        %v3298 = vrot.slane %v3296, 5
        %v3299 = vsel %vm1366, %v3294, %v3298
        %v3300 = vshrl.u32 %v2966, 16
        %v3302 = vrot.slane %v3300, 4
        %v3303 = vor.u32 %v3302, %v3298
        %v3304 = vrot.slane %v3303, 4
        %v3306 = vshll.u32 %v2967, 16
        %v3308 = vrot.slane %v3306, 5
        %v3309 = vsel %vm1366, %v3304, %v3308
        %v3311 = vshrl.u32 %v2968, 16
        %v3313 = vrot.slane %v3311, 4
        %v3314 = vshll.u32 %v2968, 16
        %v3316 = vrot.slane %v3314, 5
        %v3317 = vor.u32 %v3313, %v3316
        %v3318 = vrot.slane %v3317, 4
        %v3320 = vshll.u32 %v2969, 16
        %v3322 = vrot.slane %v3320, 5
        %v3323 = vsel %vm1366, %v3318, %v3322
        %v3324 = vshrl.u32 %v2969, 16
        %v3326 = vrot.slane %v3324, 4
        %v3327 = vor.u32 %v3326, %v3322
        %v3328 = vrot.slane %v3327, 4
        %v3330 = vshll.u32 %v2970, 16
        %v3332 = vrot.slane %v3330, 5
        %v3333 = vsel %vm1366, %v3328, %v3332
        %v3335 = vshrl.u32 %v2971, 16
        %v3337 = vrot.slane %v3335, 4
        %v3338 = vshll.u32 %v2971, 16
        %v3340 = vrot.slane %v3338, 5
        %v3341 = vor.u32 %v3337, %v3340
        %v3342 = vrot.slane %v3341, 4
        %v3344 = vshll.u32 %v2972, 16
        %v3346 = vrot.slane %v3344, 5
        %v3347 = vsel %vm1366, %v3342, %v3346
        %v3348 = vshrl.u32 %v2972, 16
        %v3350 = vrot.slane %v3348, 4
        %v3351 = vor.u32 %v3350, %v3346
        %v3352 = vrot.slane %v3351, 4
        %v3354 = vshll.u32 %v2973, 16
        %v3356 = vrot.slane %v3354, 5
        %v3357 = vsel %vm1366, %v3352, %v3356
        %v3358 = vld [vmem:[#allocation8 + $0x100] sm:$0xf]
        %v3359 = vld [vmem:[#allocation8 + $0x104] sm:$0xf]
        %v3360 = vld [vmem:[#allocation8 + $0x108] sm:$0xf]
        %v3361 = vld [vmem:[#allocation8 + $0x10c] sm:$0xf]
        %v3362 = vld [vmem:[#allocation8 + $0x110] sm:$0xf]
        %v3363 = vld [vmem:[#allocation8 + $0x114] sm:$0xf]
        %v3364 = vld [vmem:[#allocation8 + $0x118] sm:$0xf]
        %v3365 = vld [vmem:[#allocation8 + $0x11c] sm:$0xf]
        %v3366 = vld [vmem:[#allocation8 + $0x120] sm:$0xf]
        %v3367 = vld [vmem:[#allocation8 + $0x124] sm:$0xf]
        %v3368 = vld [vmem:[#allocation8 + $0x128] sm:$0xf]
        %v3369 = vld [vmem:[#allocation8 + $0x12c] sm:$0xf]
        %v3370 = vld [vmem:[#allocation8 + $0x130] sm:$0xf]
        %v3371 = vld [vmem:[#allocation8 + $0x134] sm:$0xf]
        %v3372 = vld [vmem:[#allocation8 + $0x138] sm:$0xf]
        %v3373 = vld [vmem:[#allocation8 + $0x13c] sm:$0xf]
        %v3374 = vunpack.c.l.b16 %v2987
        %v3375 = vunpack.c.l.b16 %v2997
        %v3376 = vunpack.c.l.b16 %v3011
        %v3377 = vunpack.c.l.b16 %v3021
        %v3378 = vunpack.c.l.b16 %v3035
        %v3379 = vunpack.c.l.b16 %v3045
        %v3380 = vunpack.c.l.b16 %v3059
        %v3381 = vunpack.c.l.b16 %v3069
        %v3382 = vunpack.c.l.b16 %v3083
        %v3383 = vunpack.c.l.b16 %v3093
        %v3384 = vunpack.c.l.b16 %v3107
        %v3385 = vunpack.c.l.b16 %v3117
        %v3386 = vunpack.c.l.b16 %v3131
        %v3387 = vunpack.c.l.b16 %v3141
        %v3388 = vunpack.c.l.b16 %v3155
        %v3389 = vunpack.c.l.b16 %v3165
        %v3390 = vunpack.c.l.b16 %v3179
        %v3391 = vunpack.c.l.b16 %v3189
        %v3392 = vunpack.c.l.b16 %v3203
        %v3393 = vunpack.c.l.b16 %v3213
        %v3394 = vunpack.c.l.b16 %v3227
        %v3395 = vunpack.c.l.b16 %v3237
        %v3396 = vunpack.c.l.b16 %v3251
        %v3397 = vunpack.c.l.b16 %v3261
        %v3398 = vunpack.c.l.b16 %v3275
        %v3399 = vunpack.c.l.b16 %v3285
        %v3400 = vunpack.c.l.b16 %v3299
        %v3401 = vunpack.c.l.b16 %v3309
        %v3402 = vunpack.c.l.b16 %v3323
        %v3403 = vunpack.c.l.b16 %v3333
        %v3404 = vunpack.c.l.b16 %v3347
        %v3405 = vunpack.c.l.b16 %v3357
        %v3406 = vpack.c.b16 %v3375, %v3374
        %v3407 = vpack.c.b16 %v3377, %v3376
        %v3408 = vpack.c.b16 %v3379, %v3378
        %v3409 = vpack.c.b16 %v3381, %v3380
        %v3410 = vpack.c.b16 %v3383, %v3382
        %v3411 = vpack.c.b16 %v3385, %v3384
        %v3412 = vpack.c.b16 %v3387, %v3386
        %v3413 = vpack.c.b16 %v3389, %v3388
        %v3414 = vpack.c.b16 %v3391, %v3390
        %v3415 = vpack.c.b16 %v3393, %v3392
        %v3416 = vpack.c.b16 %v3395, %v3394
        %v3417 = vpack.c.b16 %v3397, %v3396
        %v3418 = vpack.c.b16 %v3399, %v3398
        %v3419 = vpack.c.b16 %v3401, %v3400
        %v3420 = vpack.c.b16 %v3403, %v3402
        %v3421 = vpack.c.b16 %v3405, %v3404
        %v3454 = vunpack.c.l.b16 %v3358
        %v3455 = vunpack.c.l.b16 %v3359
        %v3456 = vunpack.c.l.b16 %v3360
        %v3457 = vunpack.c.l.b16 %v3361
        %v3458 = vunpack.c.l.b16 %v3362
        %v3459 = vunpack.c.l.b16 %v3363
        %v3460 = vunpack.c.l.b16 %v3364
        %v3461 = vunpack.c.l.b16 %v3365
        %v3462 = vunpack.c.l.b16 %v3366
        %v3463 = vunpack.c.l.b16 %v3367
        %v3464 = vunpack.c.l.b16 %v3368
        %v3465 = vunpack.c.l.b16 %v3369
        %v3466 = vunpack.c.l.b16 %v3370
        %v3467 = vunpack.c.l.b16 %v3371
        %v3468 = vunpack.c.l.b16 %v3372
        %v3469 = vunpack.c.l.b16 %v3373
        %v3470 = vpack.c.b16 %v3455, %v3454
        %v3471 = vpack.c.b16 %v3457, %v3456
        %v3472 = vpack.c.b16 %v3459, %v3458
        %v3473 = vpack.c.b16 %v3461, %v3460
        %v3474 = vpack.c.b16 %v3463, %v3462
        %v3475 = vpack.c.b16 %v3465, %v3464
        %v3476 = vpack.c.b16 %v3467, %v3466
        %v3477 = vpack.c.b16 %v3469, %v3468
        %3486 = vmatpush.bf16.msra.mxu0 %v3477
        %3487 = vmatpush.bf16.msra.mxu0 %v3476
        %3488 = vmatpush.bf16.msra.mxu0 %v3475
        %3489 = vmatpush.bf16.msra.mxu0 %v3474
        %3490 = vmatpush.bf16.msra.mxu0 %v3473
        %3491 = vmatpush.bf16.msra.mxu0 %v3472
        %3492 = vmatpush.bf16.msra.mxu0 %v3471
        %3493 = vmatpush.bf16.msra.mxu0 %v3470
        %3494 = vmatmul.bf16.gmra.mxu0 %v3406
        %v3495 = vpop.f32.mrf.mxu0
        %v3496 = vadd.f32 0.0, %v3495
        %v3497 = vpop.f32.mrf.mxu0
        %v3498 = vadd.f32 0.0, %v3497
        %3499 = vmatmul.bf16.gmra.mxu0 %v3407
        %v3500 = vpop.f32.mrf.mxu0
        %v3501 = vadd.f32 0.0, %v3500
        %v3502 = vpop.f32.mrf.mxu0
        %v3503 = vadd.f32 0.0, %v3502
        %3504 = vmatmul.bf16.gmra.mxu0 %v3408
        %v3505 = vpop.f32.mrf.mxu0
        %v3506 = vadd.f32 0.0, %v3505
        %v3507 = vpop.f32.mrf.mxu0
        %v3508 = vadd.f32 0.0, %v3507
        %3509 = vmatmul.bf16.gmra.mxu0 %v3409
        %v3510 = vpop.f32.mrf.mxu0
        %v3511 = vadd.f32 0.0, %v3510
        %v3512 = vpop.f32.mrf.mxu0
        %v3513 = vadd.f32 0.0, %v3512
        %3514 = vmatmul.bf16.gmra.mxu0 %v3410
        %v3515 = vpop.f32.mrf.mxu0
        %v3516 = vadd.f32 0.0, %v3515
        %v3517 = vpop.f32.mrf.mxu0
        %v3518 = vadd.f32 0.0, %v3517
        %3519 = vmatmul.bf16.gmra.mxu0 %v3411
        %v3520 = vpop.f32.mrf.mxu0
        %v3521 = vadd.f32 0.0, %v3520
        %v3522 = vpop.f32.mrf.mxu0
        %v3523 = vadd.f32 0.0, %v3522
        %3524 = vmatmul.bf16.gmra.mxu0 %v3412
        %v3525 = vpop.f32.mrf.mxu0
        %v3526 = vadd.f32 0.0, %v3525
        %v3527 = vpop.f32.mrf.mxu0
        %v3528 = vadd.f32 0.0, %v3527
        %3529 = vmatmul.bf16.gmra.mxu0 %v3413
        %v3530 = vpop.f32.mrf.mxu0
        %v3531 = vadd.f32 0.0, %v3530
        %v3532 = vpop.f32.mrf.mxu0
        %v3533 = vadd.f32 0.0, %v3532
        %3534 = vmatmul.bf16.gmra.mxu0 %v3414
        %v3535 = vpop.f32.mrf.mxu0
        %v3536 = vadd.f32 0.0, %v3535
        %v3537 = vpop.f32.mrf.mxu0
        %v3538 = vadd.f32 0.0, %v3537
        %3539 = vmatmul.bf16.gmra.mxu0 %v3415
        %v3540 = vpop.f32.mrf.mxu0
        %v3541 = vadd.f32 0.0, %v3540
        %v3542 = vpop.f32.mrf.mxu0
        %v3543 = vadd.f32 0.0, %v3542
        %3544 = vmatmul.bf16.gmra.mxu0 %v3416
        %v3545 = vpop.f32.mrf.mxu0
        %v3546 = vadd.f32 0.0, %v3545
        %v3547 = vpop.f32.mrf.mxu0
        %v3548 = vadd.f32 0.0, %v3547
        %3549 = vmatmul.bf16.gmra.mxu0 %v3417
        %v3550 = vpop.f32.mrf.mxu0
        %v3551 = vadd.f32 0.0, %v3550
        %v3552 = vpop.f32.mrf.mxu0
        %v3553 = vadd.f32 0.0, %v3552
        %3554 = vmatmul.bf16.gmra.mxu0 %v3418
        %v3555 = vpop.f32.mrf.mxu0
        %v3556 = vadd.f32 0.0, %v3555
        %v3557 = vpop.f32.mrf.mxu0
        %v3558 = vadd.f32 0.0, %v3557
        %3559 = vmatmul.bf16.gmra.mxu0 %v3419
        %v3560 = vpop.f32.mrf.mxu0
        %v3561 = vadd.f32 0.0, %v3560
        %v3562 = vpop.f32.mrf.mxu0
        %v3563 = vadd.f32 0.0, %v3562
        %3564 = vmatmul.bf16.gmra.mxu0 %v3420
        %v3565 = vpop.f32.mrf.mxu0
        %v3566 = vadd.f32 0.0, %v3565
        %v3567 = vpop.f32.mrf.mxu0
        %v3568 = vadd.f32 0.0, %v3567
        %3569 = vmatmul.bf16.gmra.mxu0 %v3421
        %v3570 = vpop.f32.mrf.mxu0
        %v3571 = vadd.f32 0.0, %v3570
        %v3572 = vpop.f32.mrf.mxu0
        %v3573 = vadd.f32 0.0, %v3572
        %3574 = vdwg.mxu0
        %v3575 = vadd.f32 %v2894, %v3496
        %v3576 = vadd.f32 %v2895, %v3498
        %v3577 = vadd.f32 %v2896, %v3501
        %v3578 = vadd.f32 %v2897, %v3503
        %v3579 = vadd.f32 %v2898, %v3506
        %v3580 = vadd.f32 %v2899, %v3508
        %v3581 = vadd.f32 %v2900, %v3511
        %v3582 = vadd.f32 %v2901, %v3513
        %v3583 = vadd.f32 %v2902, %v3516
        %v3584 = vadd.f32 %v2903, %v3518
        %v3585 = vadd.f32 %v2904, %v3521
        %v3586 = vadd.f32 %v2905, %v3523
        %v3587 = vadd.f32 %v2906, %v3526
        %v3588 = vadd.f32 %v2907, %v3528
        %v3589 = vadd.f32 %v2908, %v3531
        %v3590 = vadd.f32 %v2909, %v3533
        %v3591 = vadd.f32 %v2910, %v3536
        %v3592 = vadd.f32 %v2911, %v3538
        %v3593 = vadd.f32 %v2912, %v3541
        %v3594 = vadd.f32 %v2913, %v3543
        %v3595 = vadd.f32 %v2914, %v3546
        %v3596 = vadd.f32 %v2915, %v3548
        %v3597 = vadd.f32 %v2916, %v3551
        %v3598 = vadd.f32 %v2917, %v3553
        %v3599 = vadd.f32 %v2918, %v3556
        %v3600 = vadd.f32 %v2919, %v3558
        %v3601 = vadd.f32 %v2920, %v3561
        %v3602 = vadd.f32 %v2921, %v3563
        %v3603 = vadd.f32 %v2922, %v3566
        %v3604 = vadd.f32 %v2923, %v3568
        %v3605 = vadd.f32 %v2924, %v3571
        %v3606 = vadd.f32 %v2925, %v3573
        %v3607 = vld [vmem:[%s1185] sm:$0xe]
        %v3608 = vld [vmem:[%s1185 + $0xc] sm:$0xe]
        %v3609 = vld [vmem:[%s1185 + $0x18] sm:$0xe]
        %v3610 = vld [vmem:[%s1185 + $0x24] sm:$0xe]
        %v3611 = vld [vmem:[%s1185 + $0x30] sm:$0xe]
        %v3612 = vld [vmem:[%s1185 + $0x3c] sm:$0xe]
        %v3613 = vld [vmem:[%s1185 + $0x48] sm:$0xe]
        %v3614 = vld [vmem:[%s1185 + $0x54] sm:$0xe]
        %v3615 = vld [vmem:[%s1185 + $0x60] sm:$0xe]
        %v3616 = vld [vmem:[%s1185 + $0x6c] sm:$0xe]
        %v3617 = vld [vmem:[%s1185 + $0x78] sm:$0xe]
        %v3618 = vld [vmem:[%s1185 + $0x84] sm:$0xe]
        %v3619 = vld [vmem:[%s1185 + $0x90] sm:$0xe]
        %v3620 = vld [vmem:[%s1185 + $0x9c] sm:$0xe]
        %v3621 = vld [vmem:[%s1185 + $0xa8] sm:$0xe]
        %v3622 = vld [vmem:[%s1185 + $0xb4] sm:$0xe]
        %v3671 = vrot.slane %v3607, 5
        %v3672 = vrot.slane %v3671, 4
        %v3673 = vrot.slane %v2927, 5
        %v3674 = vsel %vm2251, %v3672, %v3673
        %v3675 = vrot.slane %v3673, 4
        %v3676 = vrot.slane %v2928, 5
        %v3677 = vsel %vm2251, %v3675, %v3676
        %v3678 = vrot.slane %v3608, 5
        %v3679 = vrot.slane %v3678, 4
        %v3680 = vrot.slane %v2930, 5
        %v3681 = vsel %vm2251, %v3679, %v3680
        %v3682 = vrot.slane %v3680, 4
        %v3683 = vrot.slane %v2931, 5
        %v3684 = vsel %vm2251, %v3682, %v3683
        %v3685 = vrot.slane %v3609, 5
        %v3686 = vrot.slane %v3685, 4
        %v3687 = vrot.slane %v2933, 5
        %v3688 = vsel %vm2251, %v3686, %v3687
        %v3689 = vrot.slane %v3687, 4
        %v3690 = vrot.slane %v2934, 5
        %v3691 = vsel %vm2251, %v3689, %v3690
        %v3692 = vrot.slane %v3610, 5
        %v3693 = vrot.slane %v3692, 4
        %v3694 = vrot.slane %v2936, 5
        %v3695 = vsel %vm2251, %v3693, %v3694
        %v3696 = vrot.slane %v3694, 4
        %v3697 = vrot.slane %v2937, 5
        %v3698 = vsel %vm2251, %v3696, %v3697
        %v3699 = vrot.slane %v3611, 5
        %v3700 = vrot.slane %v3699, 4
        %v3701 = vrot.slane %v2939, 5
        %v3702 = vsel %vm2251, %v3700, %v3701
        %v3703 = vrot.slane %v3701, 4
        %v3704 = vrot.slane %v2940, 5
        %v3705 = vsel %vm2251, %v3703, %v3704
        %v3706 = vrot.slane %v3612, 5
        %v3707 = vrot.slane %v3706, 4
        %v3708 = vrot.slane %v2942, 5
        %v3709 = vsel %vm2251, %v3707, %v3708
        %v3710 = vrot.slane %v3708, 4
        %v3711 = vrot.slane %v2943, 5
        %v3712 = vsel %vm2251, %v3710, %v3711
        %v3713 = vrot.slane %v3613, 5
        %v3714 = vrot.slane %v3713, 4
        %v3715 = vrot.slane %v2945, 5
        %v3716 = vsel %vm2251, %v3714, %v3715
        %v3717 = vrot.slane %v3715, 4
        %v3718 = vrot.slane %v2946, 5
        %v3719 = vsel %vm2251, %v3717, %v3718
        %v3720 = vrot.slane %v3614, 5
        %v3721 = vrot.slane %v3720, 4
        %v3722 = vrot.slane %v2948, 5
        %v3723 = vsel %vm2251, %v3721, %v3722
        %v3724 = vrot.slane %v3722, 4
        %v3725 = vrot.slane %v2949, 5
        %v3726 = vsel %vm2251, %v3724, %v3725
        %v3727 = vrot.slane %v3615, 5
        %v3728 = vrot.slane %v3727, 4
        %v3729 = vrot.slane %v2951, 5
        %v3730 = vsel %vm2251, %v3728, %v3729
        %v3731 = vrot.slane %v3729, 4
        %v3732 = vrot.slane %v2952, 5
        %v3733 = vsel %vm2251, %v3731, %v3732
        %v3734 = vrot.slane %v3616, 5
        %v3735 = vrot.slane %v3734, 4
        %v3736 = vrot.slane %v2954, 5
        %v3737 = vsel %vm2251, %v3735, %v3736
        %v3738 = vrot.slane %v3736, 4
        %v3739 = vrot.slane %v2955, 5
        %v3740 = vsel %vm2251, %v3738, %v3739
        %v3741 = vrot.slane %v3617, 5
        %v3742 = vrot.slane %v3741, 4
        %v3743 = vrot.slane %v2957, 5
        %v3744 = vsel %vm2251, %v3742, %v3743
        %v3745 = vrot.slane %v3743, 4
        %v3746 = vrot.slane %v2958, 5
        %v3747 = vsel %vm2251, %v3745, %v3746
        %v3748 = vrot.slane %v3618, 5
        %v3749 = vrot.slane %v3748, 4
        %v3750 = vrot.slane %v2960, 5
        %v3751 = vsel %vm2251, %v3749, %v3750
        %v3752 = vrot.slane %v3750, 4
        %v3753 = vrot.slane %v2961, 5
        %v3754 = vsel %vm2251, %v3752, %v3753
        %v3755 = vrot.slane %v3619, 5
        %v3756 = vrot.slane %v3755, 4
        %v3757 = vrot.slane %v2963, 5
        %v3758 = vsel %vm2251, %v3756, %v3757
        %v3759 = vrot.slane %v3757, 4
        %v3760 = vrot.slane %v2964, 5
        %v3761 = vsel %vm2251, %v3759, %v3760
        %v3762 = vrot.slane %v3620, 5
        %v3763 = vrot.slane %v3762, 4
        %v3764 = vrot.slane %v2966, 5
        %v3765 = vsel %vm2251, %v3763, %v3764
        %v3766 = vrot.slane %v3764, 4
        %v3767 = vrot.slane %v2967, 5
        %v3768 = vsel %vm2251, %v3766, %v3767
        %v3769 = vrot.slane %v3621, 5
        %v3770 = vrot.slane %v3769, 4
        %v3771 = vrot.slane %v2969, 5
        %v3772 = vsel %vm2251, %v3770, %v3771
        %v3773 = vrot.slane %v3771, 4
        %v3774 = vrot.slane %v2970, 5
        %v3775 = vsel %vm2251, %v3773, %v3774
        %v3776 = vrot.slane %v3622, 5
        %v3777 = vrot.slane %v3776, 4
        %v3778 = vrot.slane %v2972, 5
        %v3779 = vsel %vm2251, %v3777, %v3778
        %v3780 = vrot.slane %v3778, 4
        %v3781 = vrot.slane %v2973, 5
        %v3782 = vsel %vm2251, %v3780, %v3781
        %v3783 = vld [vmem:[#allocation8 + $0x140] sm:$0xf]
        %v3784 = vld [vmem:[#allocation8 + $0x144] sm:$0xf]
        %v3785 = vld [vmem:[#allocation8 + $0x148] sm:$0xf]
        %v3786 = vld [vmem:[#allocation8 + $0x14c] sm:$0xf]
        %v3787 = vld [vmem:[#allocation8 + $0x150] sm:$0xf]
        %v3788 = vld [vmem:[#allocation8 + $0x154] sm:$0xf]
        %v3789 = vld [vmem:[#allocation8 + $0x158] sm:$0xf]
        %v3790 = vld [vmem:[#allocation8 + $0x15c] sm:$0xf]
        %v3791 = vld [vmem:[#allocation8 + $0x160] sm:$0xf]
        %v3792 = vld [vmem:[#allocation8 + $0x164] sm:$0xf]
        %v3793 = vld [vmem:[#allocation8 + $0x168] sm:$0xf]
        %v3794 = vld [vmem:[#allocation8 + $0x16c] sm:$0xf]
        %v3795 = vld [vmem:[#allocation8 + $0x170] sm:$0xf]
        %v3796 = vld [vmem:[#allocation8 + $0x174] sm:$0xf]
        %v3797 = vld [vmem:[#allocation8 + $0x178] sm:$0xf]
        %v3798 = vld [vmem:[#allocation8 + $0x17c] sm:$0xf]
        %v3799 = vunpack.c.l.b16 %v3674
        %v3800 = vunpack.c.l.b16 %v3677
        %v3801 = vunpack.c.l.b16 %v3681
        %v3802 = vunpack.c.l.b16 %v3684
        %v3803 = vunpack.c.l.b16 %v3688
        %v3804 = vunpack.c.l.b16 %v3691
        %v3805 = vunpack.c.l.b16 %v3695
        %v3806 = vunpack.c.l.b16 %v3698
        %v3807 = vunpack.c.l.b16 %v3702
        %v3808 = vunpack.c.l.b16 %v3705
        %v3809 = vunpack.c.l.b16 %v3709
        %v3810 = vunpack.c.l.b16 %v3712
        %v3811 = vunpack.c.l.b16 %v3716
        %v3812 = vunpack.c.l.b16 %v3719
        %v3813 = vunpack.c.l.b16 %v3723
        %v3814 = vunpack.c.l.b16 %v3726
        %v3815 = vunpack.c.l.b16 %v3730
        %v3816 = vunpack.c.l.b16 %v3733
        %v3817 = vunpack.c.l.b16 %v3737
        %v3818 = vunpack.c.l.b16 %v3740
        %v3819 = vunpack.c.l.b16 %v3744
        %v3820 = vunpack.c.l.b16 %v3747
        %v3821 = vunpack.c.l.b16 %v3751
        %v3822 = vunpack.c.l.b16 %v3754
        %v3823 = vunpack.c.l.b16 %v3758
        %v3824 = vunpack.c.l.b16 %v3761
        %v3825 = vunpack.c.l.b16 %v3765
        %v3826 = vunpack.c.l.b16 %v3768
        %v3827 = vunpack.c.l.b16 %v3772
        %v3828 = vunpack.c.l.b16 %v3775
        %v3829 = vunpack.c.l.b16 %v3779
        %v3830 = vunpack.c.l.b16 %v3782
        %v3831 = vpack.c.b16 %v3800, %v3799
        %v3832 = vpack.c.b16 %v3802, %v3801
        %v3833 = vpack.c.b16 %v3804, %v3803
        %v3834 = vpack.c.b16 %v3806, %v3805
        %v3835 = vpack.c.b16 %v3808, %v3807
        %v3836 = vpack.c.b16 %v3810, %v3809
        %v3837 = vpack.c.b16 %v3812, %v3811
        %v3838 = vpack.c.b16 %v3814, %v3813
        %v3839 = vpack.c.b16 %v3816, %v3815
        %v3840 = vpack.c.b16 %v3818, %v3817
        %v3841 = vpack.c.b16 %v3820, %v3819
        %v3842 = vpack.c.b16 %v3822, %v3821
        %v3843 = vpack.c.b16 %v3824, %v3823
        %v3844 = vpack.c.b16 %v3826, %v3825
        %v3845 = vpack.c.b16 %v3828, %v3827
        %v3846 = vpack.c.b16 %v3830, %v3829
        %v3879 = vunpack.c.l.b16 %v3783
        %v3880 = vunpack.c.l.b16 %v3784
        %v3881 = vunpack.c.l.b16 %v3785
        %v3882 = vunpack.c.l.b16 %v3786
        %v3883 = vunpack.c.l.b16 %v3787
        %v3884 = vunpack.c.l.b16 %v3788
        %v3885 = vunpack.c.l.b16 %v3789
        %v3886 = vunpack.c.l.b16 %v3790
        %v3887 = vunpack.c.l.b16 %v3791
        %v3888 = vunpack.c.l.b16 %v3792
        %v3889 = vunpack.c.l.b16 %v3793
        %v3890 = vunpack.c.l.b16 %v3794
        %v3891 = vunpack.c.l.b16 %v3795
        %v3892 = vunpack.c.l.b16 %v3796
        %v3893 = vunpack.c.l.b16 %v3797
        %v3894 = vunpack.c.l.b16 %v3798
        %v3895 = vpack.c.b16 %v3880, %v3879
        %v3896 = vpack.c.b16 %v3882, %v3881
        %v3897 = vpack.c.b16 %v3884, %v3883
        %v3898 = vpack.c.b16 %v3886, %v3885
        %v3899 = vpack.c.b16 %v3888, %v3887
        %v3900 = vpack.c.b16 %v3890, %v3889
        %v3901 = vpack.c.b16 %v3892, %v3891
        %v3902 = vpack.c.b16 %v3894, %v3893
        %3911 = vmatpush.bf16.msra.mxu0 %v3902
        %3912 = vmatpush.bf16.msra.mxu0 %v3901
        %3913 = vmatpush.bf16.msra.mxu0 %v3900
        %3914 = vmatpush.bf16.msra.mxu0 %v3899
        %3915 = vmatpush.bf16.msra.mxu0 %v3898
        %3916 = vmatpush.bf16.msra.mxu0 %v3897
        %3917 = vmatpush.bf16.msra.mxu0 %v3896
        %3918 = vmatpush.bf16.msra.mxu0 %v3895
        %3919 = vmatmul.bf16.gmra.mxu0 %v3831
        %v3920 = vpop.f32.mrf.mxu0
        %v3921 = vadd.f32 0.0, %v3920
        %v3922 = vpop.f32.mrf.mxu0
        %v3923 = vadd.f32 0.0, %v3922
        %3924 = vmatmul.bf16.gmra.mxu0 %v3832
        %v3925 = vpop.f32.mrf.mxu0
        %v3926 = vadd.f32 0.0, %v3925
        %v3927 = vpop.f32.mrf.mxu0
        %v3928 = vadd.f32 0.0, %v3927
        %3929 = vmatmul.bf16.gmra.mxu0 %v3833
        %v3930 = vpop.f32.mrf.mxu0
        %v3931 = vadd.f32 0.0, %v3930
        %v3932 = vpop.f32.mrf.mxu0
        %v3933 = vadd.f32 0.0, %v3932
        %3934 = vmatmul.bf16.gmra.mxu0 %v3834
        %v3935 = vpop.f32.mrf.mxu0
        %v3936 = vadd.f32 0.0, %v3935
        %v3937 = vpop.f32.mrf.mxu0
        %v3938 = vadd.f32 0.0, %v3937
        %3939 = vmatmul.bf16.gmra.mxu0 %v3835
        %v3940 = vpop.f32.mrf.mxu0
        %v3941 = vadd.f32 0.0, %v3940
        %v3942 = vpop.f32.mrf.mxu0
        %v3943 = vadd.f32 0.0, %v3942
        %3944 = vmatmul.bf16.gmra.mxu0 %v3836
        %v3945 = vpop.f32.mrf.mxu0
        %v3946 = vadd.f32 0.0, %v3945
        %v3947 = vpop.f32.mrf.mxu0
        %v3948 = vadd.f32 0.0, %v3947
        %3949 = vmatmul.bf16.gmra.mxu0 %v3837
        %v3950 = vpop.f32.mrf.mxu0
        %v3951 = vadd.f32 0.0, %v3950
        %v3952 = vpop.f32.mrf.mxu0
        %v3953 = vadd.f32 0.0, %v3952
        %3954 = vmatmul.bf16.gmra.mxu0 %v3838
        %v3955 = vpop.f32.mrf.mxu0
        %v3956 = vadd.f32 0.0, %v3955
        %v3957 = vpop.f32.mrf.mxu0
        %v3958 = vadd.f32 0.0, %v3957
        %3959 = vmatmul.bf16.gmra.mxu0 %v3839
        %v3960 = vpop.f32.mrf.mxu0
        %v3961 = vadd.f32 0.0, %v3960
        %v3962 = vpop.f32.mrf.mxu0
        %v3963 = vadd.f32 0.0, %v3962
        %3964 = vmatmul.bf16.gmra.mxu0 %v3840
        %v3965 = vpop.f32.mrf.mxu0
        %v3966 = vadd.f32 0.0, %v3965
        %v3967 = vpop.f32.mrf.mxu0
        %v3968 = vadd.f32 0.0, %v3967
        %3969 = vmatmul.bf16.gmra.mxu0 %v3841
        %v3970 = vpop.f32.mrf.mxu0
        %v3971 = vadd.f32 0.0, %v3970
        %v3972 = vpop.f32.mrf.mxu0
        %v3973 = vadd.f32 0.0, %v3972
        %3974 = vmatmul.bf16.gmra.mxu0 %v3842
        %v3975 = vpop.f32.mrf.mxu0
        %v3976 = vadd.f32 0.0, %v3975
        %v3977 = vpop.f32.mrf.mxu0
        %v3978 = vadd.f32 0.0, %v3977
        %3979 = vmatmul.bf16.gmra.mxu0 %v3843
        %v3980 = vpop.f32.mrf.mxu0
        %v3981 = vadd.f32 0.0, %v3980
        %v3982 = vpop.f32.mrf.mxu0
        %v3983 = vadd.f32 0.0, %v3982
        %3984 = vmatmul.bf16.gmra.mxu0 %v3844
        %v3985 = vpop.f32.mrf.mxu0
        %v3986 = vadd.f32 0.0, %v3985
        %v3987 = vpop.f32.mrf.mxu0
        %v3988 = vadd.f32 0.0, %v3987
        %3989 = vmatmul.bf16.gmra.mxu0 %v3845
        %v3990 = vpop.f32.mrf.mxu0
        %v3991 = vadd.f32 0.0, %v3990
        %v3992 = vpop.f32.mrf.mxu0
        %v3993 = vadd.f32 0.0, %v3992
        %3994 = vmatmul.bf16.gmra.mxu0 %v3846
        %v3995 = vpop.f32.mrf.mxu0
        %v3996 = vadd.f32 0.0, %v3995
        %v3997 = vpop.f32.mrf.mxu0
        %v3998 = vadd.f32 0.0, %v3997
        %3999 = vdwg.mxu0
        %v4000 = vadd.f32 %v3575, %v3921
        %v4001 = vadd.f32 %v3576, %v3923
        %v4002 = vadd.f32 %v3577, %v3926
        %v4003 = vadd.f32 %v3578, %v3928
        %v4004 = vadd.f32 %v3579, %v3931
        %v4005 = vadd.f32 %v3580, %v3933
        %v4006 = vadd.f32 %v3581, %v3936
        %v4007 = vadd.f32 %v3582, %v3938
        %v4008 = vadd.f32 %v3583, %v3941
        %v4009 = vadd.f32 %v3584, %v3943
        %v4010 = vadd.f32 %v3585, %v3946
        %v4011 = vadd.f32 %v3586, %v3948
        %v4012 = vadd.f32 %v3587, %v3951
        %v4013 = vadd.f32 %v3588, %v3953
        %v4014 = vadd.f32 %v3589, %v3956
        %v4015 = vadd.f32 %v3590, %v3958
        %v4016 = vadd.f32 %v3591, %v3961
        %v4017 = vadd.f32 %v3592, %v3963
        %v4018 = vadd.f32 %v3593, %v3966
        %v4019 = vadd.f32 %v3594, %v3968
        %v4020 = vadd.f32 %v3595, %v3971
        %v4021 = vadd.f32 %v3596, %v3973
        %v4022 = vadd.f32 %v3597, %v3976
        %v4023 = vadd.f32 %v3598, %v3978
        %v4024 = vadd.f32 %v3599, %v3981
        %v4025 = vadd.f32 %v3600, %v3983
        %v4026 = vadd.f32 %v3601, %v3986
        %v4027 = vadd.f32 %v3602, %v3988
        %v4028 = vadd.f32 %v3603, %v3991
        %v4029 = vadd.f32 %v3604, %v3993
        %v4030 = vadd.f32 %v3605, %v3996
        %v4031 = vadd.f32 %v3606, %v3998
        %s4032 = scalar_lea.vmem [#allocation2], 24
        %v4033 = vld [vmem:[%s4032] sm:$0xf]
        %v4034 = vld [vmem:[%s4032 + $0x4] sm:$0xf]
        %v4035 = vld [vmem:[%s4032 + $0xc] sm:$0xf]
        %v4036 = vld [vmem:[%s4032 + $0x10] sm:$0xf]
        %v4037 = vld [vmem:[%s4032 + $0x18] sm:$0xf]
        %v4038 = vld [vmem:[%s4032 + $0x1c] sm:$0xf]
        %v4039 = vld [vmem:[%s4032 + $0x24] sm:$0xf]
        %v4040 = vld [vmem:[%s4032 + $0x28] sm:$0xf]
        %v4041 = vld [vmem:[%s4032 + $0x30] sm:$0xf]
        %v4042 = vld [vmem:[%s4032 + $0x34] sm:$0xf]
        %v4043 = vld [vmem:[%s4032 + $0x3c] sm:$0xf]
        %v4044 = vld [vmem:[%s4032 + $0x40] sm:$0xf]
        %v4045 = vld [vmem:[%s4032 + $0x48] sm:$0xf]
        %v4046 = vld [vmem:[%s4032 + $0x4c] sm:$0xf]
        %v4047 = vld [vmem:[%s4032 + $0x54] sm:$0xf]
        %v4048 = vld [vmem:[%s4032 + $0x58] sm:$0xf]
        %v4049 = vld [vmem:[%s4032 + $0x60] sm:$0xf]
        %v4050 = vld [vmem:[%s4032 + $0x64] sm:$0xf]
        %v4051 = vld [vmem:[%s4032 + $0x6c] sm:$0xf]
        %v4052 = vld [vmem:[%s4032 + $0x70] sm:$0xf]
        %v4053 = vld [vmem:[%s4032 + $0x78] sm:$0xf]
        %v4054 = vld [vmem:[%s4032 + $0x7c] sm:$0xf]
        %v4055 = vld [vmem:[%s4032 + $0x84] sm:$0xf]
        %v4056 = vld [vmem:[%s4032 + $0x88] sm:$0xf]
        %v4057 = vld [vmem:[%s4032 + $0x90] sm:$0xf]
        %v4058 = vld [vmem:[%s4032 + $0x94] sm:$0xf]
        %v4059 = vld [vmem:[%s4032 + $0x9c] sm:$0xf]
        %v4060 = vld [vmem:[%s4032 + $0xa0] sm:$0xf]
        %v4061 = vld [vmem:[%s4032 + $0xa8] sm:$0xf]
        %v4062 = vld [vmem:[%s4032 + $0xac] sm:$0xf]
        %v4063 = vld [vmem:[%s4032 + $0xb4] sm:$0xf]
        %v4064 = vld [vmem:[%s4032 + $0xb8] sm:$0xf]
        %v4065 = vld [vmem:[#allocation8 + $0x180] sm:$0xf]
        %v4066 = vld [vmem:[#allocation8 + $0x184] sm:$0xf]
        %v4067 = vld [vmem:[#allocation8 + $0x188] sm:$0xf]
        %v4068 = vld [vmem:[#allocation8 + $0x18c] sm:$0xf]
        %v4069 = vld [vmem:[#allocation8 + $0x190] sm:$0xf]
        %v4070 = vld [vmem:[#allocation8 + $0x194] sm:$0xf]
        %v4071 = vld [vmem:[#allocation8 + $0x198] sm:$0xf]
        %v4072 = vld [vmem:[#allocation8 + $0x19c] sm:$0xf]
        %v4073 = vld [vmem:[#allocation8 + $0x1a0] sm:$0xf]
        %v4074 = vld [vmem:[#allocation8 + $0x1a4] sm:$0xf]
        %v4075 = vld [vmem:[#allocation8 + $0x1a8] sm:$0xf]
        %v4076 = vld [vmem:[#allocation8 + $0x1ac] sm:$0xf]
        %v4077 = vld [vmem:[#allocation8 + $0x1b0] sm:$0xf]
        %v4078 = vld [vmem:[#allocation8 + $0x1b4] sm:$0xf]
        %v4079 = vld [vmem:[#allocation8 + $0x1b8] sm:$0xf]
        %v4080 = vld [vmem:[#allocation8 + $0x1bc] sm:$0xf]
        %v4113 = vunpack.c.l.b16 %v4033
        %v4114 = vunpack.c.l.b16 %v4034
        %v4115 = vunpack.c.l.b16 %v4035
        %v4116 = vunpack.c.l.b16 %v4036
        %v4117 = vunpack.c.l.b16 %v4037
        %v4118 = vunpack.c.l.b16 %v4038
        %v4119 = vunpack.c.l.b16 %v4039
        %v4120 = vunpack.c.l.b16 %v4040
        %v4121 = vunpack.c.l.b16 %v4041
        %v4122 = vunpack.c.l.b16 %v4042
        %v4123 = vunpack.c.l.b16 %v4043
        %v4124 = vunpack.c.l.b16 %v4044
        %v4125 = vunpack.c.l.b16 %v4045
        %v4126 = vunpack.c.l.b16 %v4046
        %v4127 = vunpack.c.l.b16 %v4047
        %v4128 = vunpack.c.l.b16 %v4048
        %v4129 = vunpack.c.l.b16 %v4049
        %v4130 = vunpack.c.l.b16 %v4050
        %v4131 = vunpack.c.l.b16 %v4051
        %v4132 = vunpack.c.l.b16 %v4052
        %v4133 = vunpack.c.l.b16 %v4053
        %v4134 = vunpack.c.l.b16 %v4054
        %v4135 = vunpack.c.l.b16 %v4055
        %v4136 = vunpack.c.l.b16 %v4056
        %v4137 = vunpack.c.l.b16 %v4057
        %v4138 = vunpack.c.l.b16 %v4058
        %v4139 = vunpack.c.l.b16 %v4059
        %v4140 = vunpack.c.l.b16 %v4060
        %v4141 = vunpack.c.l.b16 %v4061
        %v4142 = vunpack.c.l.b16 %v4062
        %v4143 = vunpack.c.l.b16 %v4063
        %v4144 = vunpack.c.l.b16 %v4064
        %v4145 = vpack.c.b16 %v4114, %v4113
        %v4146 = vpack.c.b16 %v4116, %v4115
        %v4147 = vpack.c.b16 %v4118, %v4117
        %v4148 = vpack.c.b16 %v4120, %v4119
        %v4149 = vpack.c.b16 %v4122, %v4121
        %v4150 = vpack.c.b16 %v4124, %v4123
        %v4151 = vpack.c.b16 %v4126, %v4125
        %v4152 = vpack.c.b16 %v4128, %v4127
        %v4153 = vpack.c.b16 %v4130, %v4129
        %v4154 = vpack.c.b16 %v4132, %v4131
        %v4155 = vpack.c.b16 %v4134, %v4133
        %v4156 = vpack.c.b16 %v4136, %v4135
        %v4157 = vpack.c.b16 %v4138, %v4137
        %v4158 = vpack.c.b16 %v4140, %v4139
        %v4159 = vpack.c.b16 %v4142, %v4141
        %v4160 = vpack.c.b16 %v4144, %v4143
        %v4193 = vunpack.c.l.b16 %v4065
        %v4194 = vunpack.c.l.b16 %v4066
        %v4195 = vunpack.c.l.b16 %v4067
        %v4196 = vunpack.c.l.b16 %v4068
        %v4197 = vunpack.c.l.b16 %v4069
        %v4198 = vunpack.c.l.b16 %v4070
        %v4199 = vunpack.c.l.b16 %v4071
        %v4200 = vunpack.c.l.b16 %v4072
        %v4201 = vunpack.c.l.b16 %v4073
        %v4202 = vunpack.c.l.b16 %v4074
        %v4203 = vunpack.c.l.b16 %v4075
        %v4204 = vunpack.c.l.b16 %v4076
        %v4205 = vunpack.c.l.b16 %v4077
        %v4206 = vunpack.c.l.b16 %v4078
        %v4207 = vunpack.c.l.b16 %v4079
        %v4208 = vunpack.c.l.b16 %v4080
        %v4209 = vpack.c.b16 %v4194, %v4193
        %v4210 = vpack.c.b16 %v4196, %v4195
        %v4211 = vpack.c.b16 %v4198, %v4197
        %v4212 = vpack.c.b16 %v4200, %v4199
        %v4213 = vpack.c.b16 %v4202, %v4201
        %v4214 = vpack.c.b16 %v4204, %v4203
        %v4215 = vpack.c.b16 %v4206, %v4205
        %v4216 = vpack.c.b16 %v4208, %v4207
        %4225 = vmatpush.bf16.msra.mxu0 %v4216
        %4226 = vmatpush.bf16.msra.mxu0 %v4215
        %4227 = vmatpush.bf16.msra.mxu0 %v4214
        %4228 = vmatpush.bf16.msra.mxu0 %v4213
        %4229 = vmatpush.bf16.msra.mxu0 %v4212
        %4230 = vmatpush.bf16.msra.mxu0 %v4211
        %4231 = vmatpush.bf16.msra.mxu0 %v4210
        %4232 = vmatpush.bf16.msra.mxu0 %v4209
        %4233 = vmatmul.bf16.gmra.mxu0 %v4145
        %v4234 = vpop.f32.mrf.mxu0
        %v4235 = vadd.f32 0.0, %v4234
        %v4236 = vpop.f32.mrf.mxu0
        %v4237 = vadd.f32 0.0, %v4236
        %4238 = vmatmul.bf16.gmra.mxu0 %v4146
        %v4239 = vpop.f32.mrf.mxu0
        %v4240 = vadd.f32 0.0, %v4239
        %v4241 = vpop.f32.mrf.mxu0
        %v4242 = vadd.f32 0.0, %v4241
        %4243 = vmatmul.bf16.gmra.mxu0 %v4147
        %v4244 = vpop.f32.mrf.mxu0
        %v4245 = vadd.f32 0.0, %v4244
        %v4246 = vpop.f32.mrf.mxu0
        %v4247 = vadd.f32 0.0, %v4246
        %4248 = vmatmul.bf16.gmra.mxu0 %v4148
        %v4249 = vpop.f32.mrf.mxu0
        %v4250 = vadd.f32 0.0, %v4249
        %v4251 = vpop.f32.mrf.mxu0
        %v4252 = vadd.f32 0.0, %v4251
        %4253 = vmatmul.bf16.gmra.mxu0 %v4149
        %v4254 = vpop.f32.mrf.mxu0
        %v4255 = vadd.f32 0.0, %v4254
        %v4256 = vpop.f32.mrf.mxu0
        %v4257 = vadd.f32 0.0, %v4256
        %4258 = vmatmul.bf16.gmra.mxu0 %v4150
        %v4259 = vpop.f32.mrf.mxu0
        %v4260 = vadd.f32 0.0, %v4259
        %v4261 = vpop.f32.mrf.mxu0
        %v4262 = vadd.f32 0.0, %v4261
        %4263 = vmatmul.bf16.gmra.mxu0 %v4151
        %v4264 = vpop.f32.mrf.mxu0
        %v4265 = vadd.f32 0.0, %v4264
        %v4266 = vpop.f32.mrf.mxu0
        %v4267 = vadd.f32 0.0, %v4266
        %4268 = vmatmul.bf16.gmra.mxu0 %v4152
        %v4269 = vpop.f32.mrf.mxu0
        %v4270 = vadd.f32 0.0, %v4269
        %v4271 = vpop.f32.mrf.mxu0
        %v4272 = vadd.f32 0.0, %v4271
        %4273 = vmatmul.bf16.gmra.mxu0 %v4153
        %v4274 = vpop.f32.mrf.mxu0
        %v4275 = vadd.f32 0.0, %v4274
        %v4276 = vpop.f32.mrf.mxu0
        %v4277 = vadd.f32 0.0, %v4276
        %4278 = vmatmul.bf16.gmra.mxu0 %v4154
        %v4279 = vpop.f32.mrf.mxu0
        %v4280 = vadd.f32 0.0, %v4279
        %v4281 = vpop.f32.mrf.mxu0
        %v4282 = vadd.f32 0.0, %v4281
        %4283 = vmatmul.bf16.gmra.mxu0 %v4155
        %v4284 = vpop.f32.mrf.mxu0
        %v4285 = vadd.f32 0.0, %v4284
        %v4286 = vpop.f32.mrf.mxu0
        %v4287 = vadd.f32 0.0, %v4286
        %4288 = vmatmul.bf16.gmra.mxu0 %v4156
        %v4289 = vpop.f32.mrf.mxu0
        %v4290 = vadd.f32 0.0, %v4289
        %v4291 = vpop.f32.mrf.mxu0
        %v4292 = vadd.f32 0.0, %v4291
        %4293 = vmatmul.bf16.gmra.mxu0 %v4157
        %v4294 = vpop.f32.mrf.mxu0
        %v4295 = vadd.f32 0.0, %v4294
        %v4296 = vpop.f32.mrf.mxu0
        %v4297 = vadd.f32 0.0, %v4296
        %4298 = vmatmul.bf16.gmra.mxu0 %v4158
        %v4299 = vpop.f32.mrf.mxu0
        %v4300 = vadd.f32 0.0, %v4299
        %v4301 = vpop.f32.mrf.mxu0
        %v4302 = vadd.f32 0.0, %v4301
        %4303 = vmatmul.bf16.gmra.mxu0 %v4159
        %v4304 = vpop.f32.mrf.mxu0
        %v4305 = vadd.f32 0.0, %v4304
        %v4306 = vpop.f32.mrf.mxu0
        %v4307 = vadd.f32 0.0, %v4306
        %4308 = vmatmul.bf16.gmra.mxu0 %v4160
        %v4309 = vpop.f32.mrf.mxu0
        %v4310 = vadd.f32 0.0, %v4309
        %v4311 = vpop.f32.mrf.mxu0
        %v4312 = vadd.f32 0.0, %v4311
        %4313 = vdwg.mxu0
        %v4314 = vadd.f32 %v4000, %v4235
        %v4315 = vadd.f32 %v4001, %v4237
        %v4316 = vadd.f32 %v4002, %v4240
        %v4317 = vadd.f32 %v4003, %v4242
        %v4318 = vadd.f32 %v4004, %v4245
        %v4319 = vadd.f32 %v4005, %v4247
        %v4320 = vadd.f32 %v4006, %v4250
        %v4321 = vadd.f32 %v4007, %v4252
        %v4322 = vadd.f32 %v4008, %v4255
        %v4323 = vadd.f32 %v4009, %v4257
        %v4324 = vadd.f32 %v4010, %v4260
        %v4325 = vadd.f32 %v4011, %v4262
        %v4326 = vadd.f32 %v4012, %v4265
        %v4327 = vadd.f32 %v4013, %v4267
        %v4328 = vadd.f32 %v4014, %v4270
        %v4329 = vadd.f32 %v4015, %v4272
        %v4330 = vadd.f32 %v4016, %v4275
        %v4331 = vadd.f32 %v4017, %v4277
        %v4332 = vadd.f32 %v4018, %v4280
        %v4333 = vadd.f32 %v4019, %v4282
        %v4334 = vadd.f32 %v4020, %v4285
        %v4335 = vadd.f32 %v4021, %v4287
        %v4336 = vadd.f32 %v4022, %v4290
        %v4337 = vadd.f32 %v4023, %v4292
        %v4338 = vadd.f32 %v4024, %v4295
        %v4339 = vadd.f32 %v4025, %v4297
        %v4340 = vadd.f32 %v4026, %v4300
        %v4341 = vadd.f32 %v4027, %v4302
        %v4342 = vadd.f32 %v4028, %v4305
        %v4343 = vadd.f32 %v4029, %v4307
        %v4344 = vadd.f32 %v4030, %v4310
        %v4345 = vadd.f32 %v4031, %v4312
        %v4346 = vld [vmem:[%s4032] sm:$0xf]
        %v4347 = vld [vmem:[%s4032 + $0x4] sm:$0xf]
        %v4348 = vld [vmem:[%s4032 + $0x8] sm:$0x1]
        %v4349 = vld [vmem:[%s4032 + $0xc] sm:$0xf]
        %v4350 = vld [vmem:[%s4032 + $0x10] sm:$0xf]
        %v4351 = vld [vmem:[%s4032 + $0x14] sm:$0x1]
        %v4352 = vld [vmem:[%s4032 + $0x18] sm:$0xf]
        %v4353 = vld [vmem:[%s4032 + $0x1c] sm:$0xf]
        %v4354 = vld [vmem:[%s4032 + $0x20] sm:$0x1]
        %v4355 = vld [vmem:[%s4032 + $0x24] sm:$0xf]
        %v4356 = vld [vmem:[%s4032 + $0x28] sm:$0xf]
        %v4357 = vld [vmem:[%s4032 + $0x2c] sm:$0x1]
        %v4358 = vld [vmem:[%s4032 + $0x30] sm:$0xf]
        %v4359 = vld [vmem:[%s4032 + $0x34] sm:$0xf]
        %v4360 = vld [vmem:[%s4032 + $0x38] sm:$0x1]
        %v4361 = vld [vmem:[%s4032 + $0x3c] sm:$0xf]
        %v4362 = vld [vmem:[%s4032 + $0x40] sm:$0xf]
        %v4363 = vld [vmem:[%s4032 + $0x44] sm:$0x1]
        %v4364 = vld [vmem:[%s4032 + $0x48] sm:$0xf]
        %v4365 = vld [vmem:[%s4032 + $0x4c] sm:$0xf]
        %v4366 = vld [vmem:[%s4032 + $0x50] sm:$0x1]
        %v4367 = vld [vmem:[%s4032 + $0x54] sm:$0xf]
        %v4368 = vld [vmem:[%s4032 + $0x58] sm:$0xf]
        %v4369 = vld [vmem:[%s4032 + $0x5c] sm:$0x1]
        %v4370 = vld [vmem:[%s4032 + $0x60] sm:$0xf]
        %v4371 = vld [vmem:[%s4032 + $0x64] sm:$0xf]
        %v4372 = vld [vmem:[%s4032 + $0x68] sm:$0x1]
        %v4373 = vld [vmem:[%s4032 + $0x6c] sm:$0xf]
        %v4374 = vld [vmem:[%s4032 + $0x70] sm:$0xf]
        %v4375 = vld [vmem:[%s4032 + $0x74] sm:$0x1]
        %v4376 = vld [vmem:[%s4032 + $0x78] sm:$0xf]
        %v4377 = vld [vmem:[%s4032 + $0x7c] sm:$0xf]
        %v4378 = vld [vmem:[%s4032 + $0x80] sm:$0x1]
        %v4379 = vld [vmem:[%s4032 + $0x84] sm:$0xf]
        %v4380 = vld [vmem:[%s4032 + $0x88] sm:$0xf]
        %v4381 = vld [vmem:[%s4032 + $0x8c] sm:$0x1]
        %v4382 = vld [vmem:[%s4032 + $0x90] sm:$0xf]
        %v4383 = vld [vmem:[%s4032 + $0x94] sm:$0xf]
        %v4384 = vld [vmem:[%s4032 + $0x98] sm:$0x1]
        %v4385 = vld [vmem:[%s4032 + $0x9c] sm:$0xf]
        %v4386 = vld [vmem:[%s4032 + $0xa0] sm:$0xf]
        %v4387 = vld [vmem:[%s4032 + $0xa4] sm:$0x1]
        %v4388 = vld [vmem:[%s4032 + $0xa8] sm:$0xf]
        %v4389 = vld [vmem:[%s4032 + $0xac] sm:$0xf]
        %v4390 = vld [vmem:[%s4032 + $0xb0] sm:$0x1]
        %v4391 = vld [vmem:[%s4032 + $0xb4] sm:$0xf]
        %v4392 = vld [vmem:[%s4032 + $0xb8] sm:$0xf]
        %v4393 = vld [vmem:[%s4032 + $0xbc] sm:$0x1]
        %v4395 = vshrl.u32 %v4346, 16
        %v4397 = vrot.slane %v4395, 4
        %v4398 = vshll.u32 %v4346, 16
        %v4400 = vrot.slane %v4398, 5
        %v4401 = vor.u32 %v4397, %v4400
        %v4402 = vrot.slane %v4401, 4
        %v4404 = vshll.u32 %v4347, 16
        %v4406 = vrot.slane %v4404, 5
        %v4407 = vsel %vm1366, %v4402, %v4406
        %v4408 = vshrl.u32 %v4347, 16
        %v4410 = vrot.slane %v4408, 4
        %v4411 = vor.u32 %v4410, %v4406
        %v4412 = vrot.slane %v4411, 4
        %v4414 = vshll.u32 %v4348, 16
        %v4416 = vrot.slane %v4414, 5
        %v4417 = vsel %vm1366, %v4412, %v4416
        %v4419 = vshrl.u32 %v4349, 16
        %v4421 = vrot.slane %v4419, 4
        %v4422 = vshll.u32 %v4349, 16
        %v4424 = vrot.slane %v4422, 5
        %v4425 = vor.u32 %v4421, %v4424
        %v4426 = vrot.slane %v4425, 4
        %v4428 = vshll.u32 %v4350, 16
        %v4430 = vrot.slane %v4428, 5
        %v4431 = vsel %vm1366, %v4426, %v4430
        %v4432 = vshrl.u32 %v4350, 16
        %v4434 = vrot.slane %v4432, 4
        %v4435 = vor.u32 %v4434, %v4430
        %v4436 = vrot.slane %v4435, 4
        %v4438 = vshll.u32 %v4351, 16
        %v4440 = vrot.slane %v4438, 5
        %v4441 = vsel %vm1366, %v4436, %v4440
        %v4443 = vshrl.u32 %v4352, 16
        %v4445 = vrot.slane %v4443, 4
        %v4446 = vshll.u32 %v4352, 16
        %v4448 = vrot.slane %v4446, 5
        %v4449 = vor.u32 %v4445, %v4448
        %v4450 = vrot.slane %v4449, 4
        %v4452 = vshll.u32 %v4353, 16
        %v4454 = vrot.slane %v4452, 5
        %v4455 = vsel %vm1366, %v4450, %v4454
        %v4456 = vshrl.u32 %v4353, 16
        %v4458 = vrot.slane %v4456, 4
        %v4459 = vor.u32 %v4458, %v4454
        %v4460 = vrot.slane %v4459, 4
        %v4462 = vshll.u32 %v4354, 16
        %v4464 = vrot.slane %v4462, 5
        %v4465 = vsel %vm1366, %v4460, %v4464
        %v4467 = vshrl.u32 %v4355, 16
        %v4469 = vrot.slane %v4467, 4
        %v4470 = vshll.u32 %v4355, 16
        %v4472 = vrot.slane %v4470, 5
        %v4473 = vor.u32 %v4469, %v4472
        %v4474 = vrot.slane %v4473, 4
        %v4476 = vshll.u32 %v4356, 16
        %v4478 = vrot.slane %v4476, 5
        %v4479 = vsel %vm1366, %v4474, %v4478
        %v4480 = vshrl.u32 %v4356, 16
        %v4482 = vrot.slane %v4480, 4
        %v4483 = vor.u32 %v4482, %v4478
        %v4484 = vrot.slane %v4483, 4
        %v4486 = vshll.u32 %v4357, 16
        %v4488 = vrot.slane %v4486, 5
        %v4489 = vsel %vm1366, %v4484, %v4488
        %v4491 = vshrl.u32 %v4358, 16
        %v4493 = vrot.slane %v4491, 4
        %v4494 = vshll.u32 %v4358, 16
        %v4496 = vrot.slane %v4494, 5
        %v4497 = vor.u32 %v4493, %v4496
        %v4498 = vrot.slane %v4497, 4
        %v4500 = vshll.u32 %v4359, 16
        %v4502 = vrot.slane %v4500, 5
        %v4503 = vsel %vm1366, %v4498, %v4502
        %v4504 = vshrl.u32 %v4359, 16
        %v4506 = vrot.slane %v4504, 4
        %v4507 = vor.u32 %v4506, %v4502
        %v4508 = vrot.slane %v4507, 4
        %v4510 = vshll.u32 %v4360, 16
        %v4512 = vrot.slane %v4510, 5
        %v4513 = vsel %vm1366, %v4508, %v4512
        %v4515 = vshrl.u32 %v4361, 16
        %v4517 = vrot.slane %v4515, 4
        %v4518 = vshll.u32 %v4361, 16
        %v4520 = vrot.slane %v4518, 5
        %v4521 = vor.u32 %v4517, %v4520
        %v4522 = vrot.slane %v4521, 4
        %v4524 = vshll.u32 %v4362, 16
        %v4526 = vrot.slane %v4524, 5
        %v4527 = vsel %vm1366, %v4522, %v4526
        %v4528 = vshrl.u32 %v4362, 16
        %v4530 = vrot.slane %v4528, 4
        %v4531 = vor.u32 %v4530, %v4526
        %v4532 = vrot.slane %v4531, 4
        %v4534 = vshll.u32 %v4363, 16
        %v4536 = vrot.slane %v4534, 5
        %v4537 = vsel %vm1366, %v4532, %v4536
        %v4539 = vshrl.u32 %v4364, 16
        %v4541 = vrot.slane %v4539, 4
        %v4542 = vshll.u32 %v4364, 16
        %v4544 = vrot.slane %v4542, 5
        %v4545 = vor.u32 %v4541, %v4544
        %v4546 = vrot.slane %v4545, 4
        %v4548 = vshll.u32 %v4365, 16
        %v4550 = vrot.slane %v4548, 5
        %v4551 = vsel %vm1366, %v4546, %v4550
        %v4552 = vshrl.u32 %v4365, 16
        %v4554 = vrot.slane %v4552, 4
        %v4555 = vor.u32 %v4554, %v4550
        %v4556 = vrot.slane %v4555, 4
        %v4558 = vshll.u32 %v4366, 16
        %v4560 = vrot.slane %v4558, 5
        %v4561 = vsel %vm1366, %v4556, %v4560
        %v4563 = vshrl.u32 %v4367, 16
        %v4565 = vrot.slane %v4563, 4
        %v4566 = vshll.u32 %v4367, 16
        %v4568 = vrot.slane %v4566, 5
        %v4569 = vor.u32 %v4565, %v4568
        %v4570 = vrot.slane %v4569, 4
        %v4572 = vshll.u32 %v4368, 16
        %v4574 = vrot.slane %v4572, 5
        %v4575 = vsel %vm1366, %v4570, %v4574
        %v4576 = vshrl.u32 %v4368, 16
        %v4578 = vrot.slane %v4576, 4
        %v4579 = vor.u32 %v4578, %v4574
        %v4580 = vrot.slane %v4579, 4
        %v4582 = vshll.u32 %v4369, 16
        %v4584 = vrot.slane %v4582, 5
        %v4585 = vsel %vm1366, %v4580, %v4584
        %v4587 = vshrl.u32 %v4370, 16
        %v4589 = vrot.slane %v4587, 4
        %v4590 = vshll.u32 %v4370, 16
        %v4592 = vrot.slane %v4590, 5
        %v4593 = vor.u32 %v4589, %v4592
        %v4594 = vrot.slane %v4593, 4
        %v4596 = vshll.u32 %v4371, 16
        %v4598 = vrot.slane %v4596, 5
        %v4599 = vsel %vm1366, %v4594, %v4598
        %v4600 = vshrl.u32 %v4371, 16
        %v4602 = vrot.slane %v4600, 4
        %v4603 = vor.u32 %v4602, %v4598
        %v4604 = vrot.slane %v4603, 4
        %v4606 = vshll.u32 %v4372, 16
        %v4608 = vrot.slane %v4606, 5
        %v4609 = vsel %vm1366, %v4604, %v4608
        %v4611 = vshrl.u32 %v4373, 16
        %v4613 = vrot.slane %v4611, 4
        %v4614 = vshll.u32 %v4373, 16
        %v4616 = vrot.slane %v4614, 5
        %v4617 = vor.u32 %v4613, %v4616
        %v4618 = vrot.slane %v4617, 4
        %v4620 = vshll.u32 %v4374, 16
        %v4622 = vrot.slane %v4620, 5
        %v4623 = vsel %vm1366, %v4618, %v4622
        %v4624 = vshrl.u32 %v4374, 16
        %v4626 = vrot.slane %v4624, 4
        %v4627 = vor.u32 %v4626, %v4622
        %v4628 = vrot.slane %v4627, 4
        %v4630 = vshll.u32 %v4375, 16
        %v4632 = vrot.slane %v4630, 5
        %v4633 = vsel %vm1366, %v4628, %v4632
        %v4635 = vshrl.u32 %v4376, 16
        %v4637 = vrot.slane %v4635, 4
        %v4638 = vshll.u32 %v4376, 16
        %v4640 = vrot.slane %v4638, 5
        %v4641 = vor.u32 %v4637, %v4640
        %v4642 = vrot.slane %v4641, 4
        %v4644 = vshll.u32 %v4377, 16
        %v4646 = vrot.slane %v4644, 5
        %v4647 = vsel %vm1366, %v4642, %v4646
        %v4648 = vshrl.u32 %v4377, 16
        %v4650 = vrot.slane %v4648, 4
        %v4651 = vor.u32 %v4650, %v4646
        %v4652 = vrot.slane %v4651, 4
        %v4654 = vshll.u32 %v4378, 16
        %v4656 = vrot.slane %v4654, 5
        %v4657 = vsel %vm1366, %v4652, %v4656
        %v4659 = vshrl.u32 %v4379, 16
        %v4661 = vrot.slane %v4659, 4
        %v4662 = vshll.u32 %v4379, 16
        %v4664 = vrot.slane %v4662, 5
        %v4665 = vor.u32 %v4661, %v4664
        %v4666 = vrot.slane %v4665, 4
        %v4668 = vshll.u32 %v4380, 16
        %v4670 = vrot.slane %v4668, 5
        %v4671 = vsel %vm1366, %v4666, %v4670
        %v4672 = vshrl.u32 %v4380, 16
        %v4674 = vrot.slane %v4672, 4
        %v4675 = vor.u32 %v4674, %v4670
        %v4676 = vrot.slane %v4675, 4
        %v4678 = vshll.u32 %v4381, 16
        %v4680 = vrot.slane %v4678, 5
        %v4681 = vsel %vm1366, %v4676, %v4680
        %v4683 = vshrl.u32 %v4382, 16
        %v4685 = vrot.slane %v4683, 4
        %v4686 = vshll.u32 %v4382, 16
        %v4688 = vrot.slane %v4686, 5
        %v4689 = vor.u32 %v4685, %v4688
        %v4690 = vrot.slane %v4689, 4
        %v4692 = vshll.u32 %v4383, 16
        %v4694 = vrot.slane %v4692, 5
        %v4695 = vsel %vm1366, %v4690, %v4694
        %v4696 = vshrl.u32 %v4383, 16
        %v4698 = vrot.slane %v4696, 4
        %v4699 = vor.u32 %v4698, %v4694
        %v4700 = vrot.slane %v4699, 4
        %v4702 = vshll.u32 %v4384, 16
        %v4704 = vrot.slane %v4702, 5
        %v4705 = vsel %vm1366, %v4700, %v4704
        %v4707 = vshrl.u32 %v4385, 16
        %v4709 = vrot.slane %v4707, 4
        %v4710 = vshll.u32 %v4385, 16
        %v4712 = vrot.slane %v4710, 5
        %v4713 = vor.u32 %v4709, %v4712
        %v4714 = vrot.slane %v4713, 4
        %v4716 = vshll.u32 %v4386, 16
        %v4718 = vrot.slane %v4716, 5
        %v4719 = vsel %vm1366, %v4714, %v4718
        %v4720 = vshrl.u32 %v4386, 16
        %v4722 = vrot.slane %v4720, 4
        %v4723 = vor.u32 %v4722, %v4718
        %v4724 = vrot.slane %v4723, 4
        %v4726 = vshll.u32 %v4387, 16
        %v4728 = vrot.slane %v4726, 5
        %v4729 = vsel %vm1366, %v4724, %v4728
        %v4731 = vshrl.u32 %v4388, 16
        %v4733 = vrot.slane %v4731, 4
        %v4734 = vshll.u32 %v4388, 16
        %v4736 = vrot.slane %v4734, 5
        %v4737 = vor.u32 %v4733, %v4736
        %v4738 = vrot.slane %v4737, 4
        %v4740 = vshll.u32 %v4389, 16
        %v4742 = vrot.slane %v4740, 5
        %v4743 = vsel %vm1366, %v4738, %v4742
        %v4744 = vshrl.u32 %v4389, 16
        %v4746 = vrot.slane %v4744, 4
        %v4747 = vor.u32 %v4746, %v4742
        %v4748 = vrot.slane %v4747, 4
        %v4750 = vshll.u32 %v4390, 16
        %v4752 = vrot.slane %v4750, 5
        %v4753 = vsel %vm1366, %v4748, %v4752
        %v4755 = vshrl.u32 %v4391, 16
        %v4757 = vrot.slane %v4755, 4
        %v4758 = vshll.u32 %v4391, 16
        %v4760 = vrot.slane %v4758, 5
        %v4761 = vor.u32 %v4757, %v4760
        %v4762 = vrot.slane %v4761, 4
        %v4764 = vshll.u32 %v4392, 16
        %v4766 = vrot.slane %v4764, 5
        %v4767 = vsel %vm1366, %v4762, %v4766
        %v4768 = vshrl.u32 %v4392, 16
        %v4770 = vrot.slane %v4768, 4
        %v4771 = vor.u32 %v4770, %v4766
        %v4772 = vrot.slane %v4771, 4
        %v4774 = vshll.u32 %v4393, 16
        %v4776 = vrot.slane %v4774, 5
        %v4777 = vsel %vm1366, %v4772, %v4776
        %v4778 = vld [vmem:[#allocation8 + $0x1c0] sm:$0xf]
        %v4779 = vld [vmem:[#allocation8 + $0x1c4] sm:$0xf]
        %v4780 = vld [vmem:[#allocation8 + $0x1c8] sm:$0xf]
        %v4781 = vld [vmem:[#allocation8 + $0x1cc] sm:$0xf]
        %v4782 = vld [vmem:[#allocation8 + $0x1d0] sm:$0xf]
        %v4783 = vld [vmem:[#allocation8 + $0x1d4] sm:$0xf]
        %v4784 = vld [vmem:[#allocation8 + $0x1d8] sm:$0xf]
        %v4785 = vld [vmem:[#allocation8 + $0x1dc] sm:$0xf]
        %v4786 = vld [vmem:[#allocation8 + $0x1e0] sm:$0xf]
        %v4787 = vld [vmem:[#allocation8 + $0x1e4] sm:$0xf]
        %v4788 = vld [vmem:[#allocation8 + $0x1e8] sm:$0xf]
        %v4789 = vld [vmem:[#allocation8 + $0x1ec] sm:$0xf]
        %v4790 = vld [vmem:[#allocation8 + $0x1f0] sm:$0xf]
        %v4791 = vld [vmem:[#allocation8 + $0x1f4] sm:$0xf]
        %v4792 = vld [vmem:[#allocation8 + $0x1f8] sm:$0xf]
        %v4793 = vld [vmem:[#allocation8 + $0x1fc] sm:$0xf]
        %v4794 = vunpack.c.l.b16 %v4407
        %v4795 = vunpack.c.l.b16 %v4417
        %v4796 = vunpack.c.l.b16 %v4431
        %v4797 = vunpack.c.l.b16 %v4441
        %v4798 = vunpack.c.l.b16 %v4455
        %v4799 = vunpack.c.l.b16 %v4465
        %v4800 = vunpack.c.l.b16 %v4479
        %v4801 = vunpack.c.l.b16 %v4489
        %v4802 = vunpack.c.l.b16 %v4503
        %v4803 = vunpack.c.l.b16 %v4513
        %v4804 = vunpack.c.l.b16 %v4527
        %v4805 = vunpack.c.l.b16 %v4537
        %v4806 = vunpack.c.l.b16 %v4551
        %v4807 = vunpack.c.l.b16 %v4561
        %v4808 = vunpack.c.l.b16 %v4575
        %v4809 = vunpack.c.l.b16 %v4585
        %v4810 = vunpack.c.l.b16 %v4599
        %v4811 = vunpack.c.l.b16 %v4609
        %v4812 = vunpack.c.l.b16 %v4623
        %v4813 = vunpack.c.l.b16 %v4633
        %v4814 = vunpack.c.l.b16 %v4647
        %v4815 = vunpack.c.l.b16 %v4657
        %v4816 = vunpack.c.l.b16 %v4671
        %v4817 = vunpack.c.l.b16 %v4681
        %v4818 = vunpack.c.l.b16 %v4695
        %v4819 = vunpack.c.l.b16 %v4705
        %v4820 = vunpack.c.l.b16 %v4719
        %v4821 = vunpack.c.l.b16 %v4729
        %v4822 = vunpack.c.l.b16 %v4743
        %v4823 = vunpack.c.l.b16 %v4753
        %v4824 = vunpack.c.l.b16 %v4767
        %v4825 = vunpack.c.l.b16 %v4777
        %v4826 = vpack.c.b16 %v4795, %v4794
        %v4827 = vpack.c.b16 %v4797, %v4796
        %v4828 = vpack.c.b16 %v4799, %v4798
        %v4829 = vpack.c.b16 %v4801, %v4800
        %v4830 = vpack.c.b16 %v4803, %v4802
        %v4831 = vpack.c.b16 %v4805, %v4804
        %v4832 = vpack.c.b16 %v4807, %v4806
        %v4833 = vpack.c.b16 %v4809, %v4808
        %v4834 = vpack.c.b16 %v4811, %v4810
        %v4835 = vpack.c.b16 %v4813, %v4812
        %v4836 = vpack.c.b16 %v4815, %v4814
        %v4837 = vpack.c.b16 %v4817, %v4816
        %v4838 = vpack.c.b16 %v4819, %v4818
        %v4839 = vpack.c.b16 %v4821, %v4820
        %v4840 = vpack.c.b16 %v4823, %v4822
        %v4841 = vpack.c.b16 %v4825, %v4824
        %v4874 = vunpack.c.l.b16 %v4778
        %v4875 = vunpack.c.l.b16 %v4779
        %v4876 = vunpack.c.l.b16 %v4780
        %v4877 = vunpack.c.l.b16 %v4781
        %v4878 = vunpack.c.l.b16 %v4782
        %v4879 = vunpack.c.l.b16 %v4783
        %v4880 = vunpack.c.l.b16 %v4784
        %v4881 = vunpack.c.l.b16 %v4785
        %v4882 = vunpack.c.l.b16 %v4786
        %v4883 = vunpack.c.l.b16 %v4787
        %v4884 = vunpack.c.l.b16 %v4788
        %v4885 = vunpack.c.l.b16 %v4789
        %v4886 = vunpack.c.l.b16 %v4790
        %v4887 = vunpack.c.l.b16 %v4791
        %v4888 = vunpack.c.l.b16 %v4792
        %v4889 = vunpack.c.l.b16 %v4793
        %v4890 = vpack.c.b16 %v4875, %v4874
        %v4891 = vpack.c.b16 %v4877, %v4876
        %v4892 = vpack.c.b16 %v4879, %v4878
        %v4893 = vpack.c.b16 %v4881, %v4880
        %v4894 = vpack.c.b16 %v4883, %v4882
        %v4895 = vpack.c.b16 %v4885, %v4884
        %v4896 = vpack.c.b16 %v4887, %v4886
        %v4897 = vpack.c.b16 %v4889, %v4888
        %4906 = vmatpush.bf16.msra.mxu0 %v4897
        %4907 = vmatpush.bf16.msra.mxu0 %v4896
        %4908 = vmatpush.bf16.msra.mxu0 %v4895
        %4909 = vmatpush.bf16.msra.mxu0 %v4894
        %4910 = vmatpush.bf16.msra.mxu0 %v4893
        %4911 = vmatpush.bf16.msra.mxu0 %v4892
        %4912 = vmatpush.bf16.msra.mxu0 %v4891
        %4913 = vmatpush.bf16.msra.mxu0 %v4890
        %4914 = vmatmul.bf16.gmra.mxu0 %v4826
        %v4915 = vpop.f32.mrf.mxu0
        %v4916 = vadd.f32 0.0, %v4915
        %v4917 = vpop.f32.mrf.mxu0
        %v4918 = vadd.f32 0.0, %v4917
        %4919 = vmatmul.bf16.gmra.mxu0 %v4827
        %v4920 = vpop.f32.mrf.mxu0
        %v4921 = vadd.f32 0.0, %v4920
        %v4922 = vpop.f32.mrf.mxu0
        %v4923 = vadd.f32 0.0, %v4922
        %4924 = vmatmul.bf16.gmra.mxu0 %v4828
        %v4925 = vpop.f32.mrf.mxu0
        %v4926 = vadd.f32 0.0, %v4925
        %v4927 = vpop.f32.mrf.mxu0
        %v4928 = vadd.f32 0.0, %v4927
        %4929 = vmatmul.bf16.gmra.mxu0 %v4829
        %v4930 = vpop.f32.mrf.mxu0
        %v4931 = vadd.f32 0.0, %v4930
        %v4932 = vpop.f32.mrf.mxu0
        %v4933 = vadd.f32 0.0, %v4932
        %4934 = vmatmul.bf16.gmra.mxu0 %v4830
        %v4935 = vpop.f32.mrf.mxu0
        %v4936 = vadd.f32 0.0, %v4935
        %v4937 = vpop.f32.mrf.mxu0
        %v4938 = vadd.f32 0.0, %v4937
        %4939 = vmatmul.bf16.gmra.mxu0 %v4831
        %v4940 = vpop.f32.mrf.mxu0
        %v4941 = vadd.f32 0.0, %v4940
        %v4942 = vpop.f32.mrf.mxu0
        %v4943 = vadd.f32 0.0, %v4942
        %4944 = vmatmul.bf16.gmra.mxu0 %v4832
        %v4945 = vpop.f32.mrf.mxu0
        %v4946 = vadd.f32 0.0, %v4945
        %v4947 = vpop.f32.mrf.mxu0
        %v4948 = vadd.f32 0.0, %v4947
        %4949 = vmatmul.bf16.gmra.mxu0 %v4833
        %v4950 = vpop.f32.mrf.mxu0
        %v4951 = vadd.f32 0.0, %v4950
        %v4952 = vpop.f32.mrf.mxu0
        %v4953 = vadd.f32 0.0, %v4952
        %4954 = vmatmul.bf16.gmra.mxu0 %v4834
        %v4955 = vpop.f32.mrf.mxu0
        %v4956 = vadd.f32 0.0, %v4955
        %v4957 = vpop.f32.mrf.mxu0
        %v4958 = vadd.f32 0.0, %v4957
        %4959 = vmatmul.bf16.gmra.mxu0 %v4835
        %v4960 = vpop.f32.mrf.mxu0
        %v4961 = vadd.f32 0.0, %v4960
        %v4962 = vpop.f32.mrf.mxu0
        %v4963 = vadd.f32 0.0, %v4962
        %4964 = vmatmul.bf16.gmra.mxu0 %v4836
        %v4965 = vpop.f32.mrf.mxu0
        %v4966 = vadd.f32 0.0, %v4965
        %v4967 = vpop.f32.mrf.mxu0
        %v4968 = vadd.f32 0.0, %v4967
        %4969 = vmatmul.bf16.gmra.mxu0 %v4837
        %v4970 = vpop.f32.mrf.mxu0
        %v4971 = vadd.f32 0.0, %v4970
        %v4972 = vpop.f32.mrf.mxu0
        %v4973 = vadd.f32 0.0, %v4972
        %4974 = vmatmul.bf16.gmra.mxu0 %v4838
        %v4975 = vpop.f32.mrf.mxu0
        %v4976 = vadd.f32 0.0, %v4975
        %v4977 = vpop.f32.mrf.mxu0
        %v4978 = vadd.f32 0.0, %v4977
        %4979 = vmatmul.bf16.gmra.mxu0 %v4839
        %v4980 = vpop.f32.mrf.mxu0
        %v4981 = vadd.f32 0.0, %v4980
        %v4982 = vpop.f32.mrf.mxu0
        %v4983 = vadd.f32 0.0, %v4982
        %4984 = vmatmul.bf16.gmra.mxu0 %v4840
        %v4985 = vpop.f32.mrf.mxu0
        %v4986 = vadd.f32 0.0, %v4985
        %v4987 = vpop.f32.mrf.mxu0
        %v4988 = vadd.f32 0.0, %v4987
        %4989 = vmatmul.bf16.gmra.mxu0 %v4841
        %v4990 = vpop.f32.mrf.mxu0
        %v4991 = vadd.f32 0.0, %v4990
        %v4992 = vpop.f32.mrf.mxu0
        %v4993 = vadd.f32 0.0, %v4992
        %4994 = vdwg.mxu0
        %v4995 = vadd.f32 %v4314, %v4916
        %v4996 = vadd.f32 %v4315, %v4918
        %v4997 = vadd.f32 %v4316, %v4921
        %v4998 = vadd.f32 %v4317, %v4923
        %v4999 = vadd.f32 %v4318, %v4926
        %v5000 = vadd.f32 %v4319, %v4928
        %v5001 = vadd.f32 %v4320, %v4931
        %v5002 = vadd.f32 %v4321, %v4933
        %v5003 = vadd.f32 %v4322, %v4936
        %v5004 = vadd.f32 %v4323, %v4938
        %v5005 = vadd.f32 %v4324, %v4941
        %v5006 = vadd.f32 %v4325, %v4943
        %v5007 = vadd.f32 %v4326, %v4946
        %v5008 = vadd.f32 %v4327, %v4948
        %v5009 = vadd.f32 %v4328, %v4951
        %v5010 = vadd.f32 %v4329, %v4953
        %v5011 = vadd.f32 %v4330, %v4956
        %v5012 = vadd.f32 %v4331, %v4958
        %v5013 = vadd.f32 %v4332, %v4961
        %v5014 = vadd.f32 %v4333, %v4963
        %v5015 = vadd.f32 %v4334, %v4966
        %v5016 = vadd.f32 %v4335, %v4968
        %v5017 = vadd.f32 %v4336, %v4971
        %v5018 = vadd.f32 %v4337, %v4973
        %v5019 = vadd.f32 %v4338, %v4976
        %v5020 = vadd.f32 %v4339, %v4978
        %v5021 = vadd.f32 %v4340, %v4981
        %v5022 = vadd.f32 %v4341, %v4983
        %v5023 = vadd.f32 %v4342, %v4986
        %v5024 = vadd.f32 %v4343, %v4988
        %v5025 = vadd.f32 %v4344, %v4991
        %v5026 = vadd.f32 %v4345, %v4993
        %v5027 = vld [vmem:[%s4032] sm:$0xe]
        %v5028 = vld [vmem:[%s4032 + $0xc] sm:$0xe]
        %v5029 = vld [vmem:[%s4032 + $0x18] sm:$0xe]
        %v5030 = vld [vmem:[%s4032 + $0x24] sm:$0xe]
        %v5031 = vld [vmem:[%s4032 + $0x30] sm:$0xe]
        %v5032 = vld [vmem:[%s4032 + $0x3c] sm:$0xe]
        %v5033 = vld [vmem:[%s4032 + $0x48] sm:$0xe]
        %v5034 = vld [vmem:[%s4032 + $0x54] sm:$0xe]
        %v5035 = vld [vmem:[%s4032 + $0x60] sm:$0xe]
        %v5036 = vld [vmem:[%s4032 + $0x6c] sm:$0xe]
        %v5037 = vld [vmem:[%s4032 + $0x78] sm:$0xe]
        %v5038 = vld [vmem:[%s4032 + $0x84] sm:$0xe]
        %v5039 = vld [vmem:[%s4032 + $0x90] sm:$0xe]
        %v5040 = vld [vmem:[%s4032 + $0x9c] sm:$0xe]
        %v5041 = vld [vmem:[%s4032 + $0xa8] sm:$0xe]
        %v5042 = vld [vmem:[%s4032 + $0xb4] sm:$0xe]
        %v5091 = vrot.slane %v5027, 5
        %v5092 = vrot.slane %v5091, 4
        %v5093 = vrot.slane %v4347, 5
        %v5094 = vsel %vm2251, %v5092, %v5093
        %v5095 = vrot.slane %v5093, 4
        %v5096 = vrot.slane %v4348, 5
        %v5097 = vsel %vm2251, %v5095, %v5096
        %v5098 = vrot.slane %v5028, 5
        %v5099 = vrot.slane %v5098, 4
        %v5100 = vrot.slane %v4350, 5
        %v5101 = vsel %vm2251, %v5099, %v5100
        %v5102 = vrot.slane %v5100, 4
        %v5103 = vrot.slane %v4351, 5
        %v5104 = vsel %vm2251, %v5102, %v5103
        %v5105 = vrot.slane %v5029, 5
        %v5106 = vrot.slane %v5105, 4
        %v5107 = vrot.slane %v4353, 5
        %v5108 = vsel %vm2251, %v5106, %v5107
        %v5109 = vrot.slane %v5107, 4
        %v5110 = vrot.slane %v4354, 5
        %v5111 = vsel %vm2251, %v5109, %v5110
        %v5112 = vrot.slane %v5030, 5
        %v5113 = vrot.slane %v5112, 4
        %v5114 = vrot.slane %v4356, 5
        %v5115 = vsel %vm2251, %v5113, %v5114
        %v5116 = vrot.slane %v5114, 4
        %v5117 = vrot.slane %v4357, 5
        %v5118 = vsel %vm2251, %v5116, %v5117
        %v5119 = vrot.slane %v5031, 5
        %v5120 = vrot.slane %v5119, 4
        %v5121 = vrot.slane %v4359, 5
        %v5122 = vsel %vm2251, %v5120, %v5121
        %v5123 = vrot.slane %v5121, 4
        %v5124 = vrot.slane %v4360, 5
        %v5125 = vsel %vm2251, %v5123, %v5124
        %v5126 = vrot.slane %v5032, 5
        %v5127 = vrot.slane %v5126, 4
        %v5128 = vrot.slane %v4362, 5
        %v5129 = vsel %vm2251, %v5127, %v5128
        %v5130 = vrot.slane %v5128, 4
        %v5131 = vrot.slane %v4363, 5
        %v5132 = vsel %vm2251, %v5130, %v5131
        %v5133 = vrot.slane %v5033, 5
        %v5134 = vrot.slane %v5133, 4
        %v5135 = vrot.slane %v4365, 5
        %v5136 = vsel %vm2251, %v5134, %v5135
        %v5137 = vrot.slane %v5135, 4
        %v5138 = vrot.slane %v4366, 5
        %v5139 = vsel %vm2251, %v5137, %v5138
        %v5140 = vrot.slane %v5034, 5
        %v5141 = vrot.slane %v5140, 4
        %v5142 = vrot.slane %v4368, 5
        %v5143 = vsel %vm2251, %v5141, %v5142
        %v5144 = vrot.slane %v5142, 4
        %v5145 = vrot.slane %v4369, 5
        %v5146 = vsel %vm2251, %v5144, %v5145
        %v5147 = vrot.slane %v5035, 5
        %v5148 = vrot.slane %v5147, 4
        %v5149 = vrot.slane %v4371, 5
        %v5150 = vsel %vm2251, %v5148, %v5149
        %v5151 = vrot.slane %v5149, 4
        %v5152 = vrot.slane %v4372, 5
        %v5153 = vsel %vm2251, %v5151, %v5152
        %v5154 = vrot.slane %v5036, 5
        %v5155 = vrot.slane %v5154, 4
        %v5156 = vrot.slane %v4374, 5
        %v5157 = vsel %vm2251, %v5155, %v5156
        %v5158 = vrot.slane %v5156, 4
        %v5159 = vrot.slane %v4375, 5
        %v5160 = vsel %vm2251, %v5158, %v5159
        %v5161 = vrot.slane %v5037, 5
        %v5162 = vrot.slane %v5161, 4
        %v5163 = vrot.slane %v4377, 5
        %v5164 = vsel %vm2251, %v5162, %v5163
        %v5165 = vrot.slane %v5163, 4
        %v5166 = vrot.slane %v4378, 5
        %v5167 = vsel %vm2251, %v5165, %v5166
        %v5168 = vrot.slane %v5038, 5
        %v5169 = vrot.slane %v5168, 4
        %v5170 = vrot.slane %v4380, 5
        %v5171 = vsel %vm2251, %v5169, %v5170
        %v5172 = vrot.slane %v5170, 4
        %v5173 = vrot.slane %v4381, 5
        %v5174 = vsel %vm2251, %v5172, %v5173
        %v5175 = vrot.slane %v5039, 5
        %v5176 = vrot.slane %v5175, 4
        %v5177 = vrot.slane %v4383, 5
        %v5178 = vsel %vm2251, %v5176, %v5177
        %v5179 = vrot.slane %v5177, 4
        %v5180 = vrot.slane %v4384, 5
        %v5181 = vsel %vm2251, %v5179, %v5180
        %v5182 = vrot.slane %v5040, 5
        %v5183 = vrot.slane %v5182, 4
        %v5184 = vrot.slane %v4386, 5
        %v5185 = vsel %vm2251, %v5183, %v5184
        %v5186 = vrot.slane %v5184, 4
        %v5187 = vrot.slane %v4387, 5
        %v5188 = vsel %vm2251, %v5186, %v5187
        %v5189 = vrot.slane %v5041, 5
        %v5190 = vrot.slane %v5189, 4
        %v5191 = vrot.slane %v4389, 5
        %v5192 = vsel %vm2251, %v5190, %v5191
        %v5193 = vrot.slane %v5191, 4
        %v5194 = vrot.slane %v4390, 5
        %v5195 = vsel %vm2251, %v5193, %v5194
        %v5196 = vrot.slane %v5042, 5
        %v5197 = vrot.slane %v5196, 4
        %v5198 = vrot.slane %v4392, 5
        %v5199 = vsel %vm2251, %v5197, %v5198
        %v5200 = vrot.slane %v5198, 4
        %v5201 = vrot.slane %v4393, 5
        %v5202 = vsel %vm2251, %v5200, %v5201
        %v5203 = vld [vmem:[#allocation8 + $0x200] sm:$0xf]
        %v5204 = vld [vmem:[#allocation8 + $0x204] sm:$0xf]
        %v5205 = vld [vmem:[#allocation8 + $0x208] sm:$0xf]
        %v5206 = vld [vmem:[#allocation8 + $0x20c] sm:$0xf]
        %v5207 = vld [vmem:[#allocation8 + $0x210] sm:$0xf]
        %v5208 = vld [vmem:[#allocation8 + $0x214] sm:$0xf]
        %v5209 = vld [vmem:[#allocation8 + $0x218] sm:$0xf]
        %v5210 = vld [vmem:[#allocation8 + $0x21c] sm:$0xf]
        %v5211 = vld [vmem:[#allocation8 + $0x220] sm:$0xf]
        %v5212 = vld [vmem:[#allocation8 + $0x224] sm:$0xf]
        %v5213 = vld [vmem:[#allocation8 + $0x228] sm:$0xf]
        %v5214 = vld [vmem:[#allocation8 + $0x22c] sm:$0xf]
        %v5215 = vld [vmem:[#allocation8 + $0x230] sm:$0xf]
        %v5216 = vld [vmem:[#allocation8 + $0x234] sm:$0xf]
        %v5217 = vld [vmem:[#allocation8 + $0x238] sm:$0xf]
        %v5218 = vld [vmem:[#allocation8 + $0x23c] sm:$0xf]
        %v5219 = vunpack.c.l.b16 %v5094
        %v5220 = vunpack.c.l.b16 %v5097
        %v5221 = vunpack.c.l.b16 %v5101
        %v5222 = vunpack.c.l.b16 %v5104
        %v5223 = vunpack.c.l.b16 %v5108
        %v5224 = vunpack.c.l.b16 %v5111
        %v5225 = vunpack.c.l.b16 %v5115
        %v5226 = vunpack.c.l.b16 %v5118
        %v5227 = vunpack.c.l.b16 %v5122
        %v5228 = vunpack.c.l.b16 %v5125
        %v5229 = vunpack.c.l.b16 %v5129
        %v5230 = vunpack.c.l.b16 %v5132
        %v5231 = vunpack.c.l.b16 %v5136
        %v5232 = vunpack.c.l.b16 %v5139
        %v5233 = vunpack.c.l.b16 %v5143
        %v5234 = vunpack.c.l.b16 %v5146
        %v5235 = vunpack.c.l.b16 %v5150
        %v5236 = vunpack.c.l.b16 %v5153
        %v5237 = vunpack.c.l.b16 %v5157
        %v5238 = vunpack.c.l.b16 %v5160
        %v5239 = vunpack.c.l.b16 %v5164
        %v5240 = vunpack.c.l.b16 %v5167
        %v5241 = vunpack.c.l.b16 %v5171
        %v5242 = vunpack.c.l.b16 %v5174
        %v5243 = vunpack.c.l.b16 %v5178
        %v5244 = vunpack.c.l.b16 %v5181
        %v5245 = vunpack.c.l.b16 %v5185
        %v5246 = vunpack.c.l.b16 %v5188
        %v5247 = vunpack.c.l.b16 %v5192
        %v5248 = vunpack.c.l.b16 %v5195
        %v5249 = vunpack.c.l.b16 %v5199
        %v5250 = vunpack.c.l.b16 %v5202
        %v5251 = vpack.c.b16 %v5220, %v5219
        %v5252 = vpack.c.b16 %v5222, %v5221
        %v5253 = vpack.c.b16 %v5224, %v5223
        %v5254 = vpack.c.b16 %v5226, %v5225
        %v5255 = vpack.c.b16 %v5228, %v5227
        %v5256 = vpack.c.b16 %v5230, %v5229
        %v5257 = vpack.c.b16 %v5232, %v5231
        %v5258 = vpack.c.b16 %v5234, %v5233
        %v5259 = vpack.c.b16 %v5236, %v5235
        %v5260 = vpack.c.b16 %v5238, %v5237
        %v5261 = vpack.c.b16 %v5240, %v5239
        %v5262 = vpack.c.b16 %v5242, %v5241
        %v5263 = vpack.c.b16 %v5244, %v5243
        %v5264 = vpack.c.b16 %v5246, %v5245
        %v5265 = vpack.c.b16 %v5248, %v5247
        %v5266 = vpack.c.b16 %v5250, %v5249
        %v5299 = vunpack.c.l.b16 %v5203
        %v5300 = vunpack.c.l.b16 %v5204
        %v5301 = vunpack.c.l.b16 %v5205
        %v5302 = vunpack.c.l.b16 %v5206
        %v5303 = vunpack.c.l.b16 %v5207
        %v5304 = vunpack.c.l.b16 %v5208
        %v5305 = vunpack.c.l.b16 %v5209
        %v5306 = vunpack.c.l.b16 %v5210
        %v5307 = vunpack.c.l.b16 %v5211
        %v5308 = vunpack.c.l.b16 %v5212
        %v5309 = vunpack.c.l.b16 %v5213
        %v5310 = vunpack.c.l.b16 %v5214
        %v5311 = vunpack.c.l.b16 %v5215
        %v5312 = vunpack.c.l.b16 %v5216
        %v5313 = vunpack.c.l.b16 %v5217
        %v5314 = vunpack.c.l.b16 %v5218
        %v5315 = vpack.c.b16 %v5300, %v5299
        %v5316 = vpack.c.b16 %v5302, %v5301
        %v5317 = vpack.c.b16 %v5304, %v5303
        %v5318 = vpack.c.b16 %v5306, %v5305
        %v5319 = vpack.c.b16 %v5308, %v5307
        %v5320 = vpack.c.b16 %v5310, %v5309
        %v5321 = vpack.c.b16 %v5312, %v5311
        %v5322 = vpack.c.b16 %v5314, %v5313
        %5331 = vmatpush.bf16.msra.mxu0 %v5322
        %5332 = vmatpush.bf16.msra.mxu0 %v5321
        %5333 = vmatpush.bf16.msra.mxu0 %v5320
        %5334 = vmatpush.bf16.msra.mxu0 %v5319
        %5335 = vmatpush.bf16.msra.mxu0 %v5318
        %5336 = vmatpush.bf16.msra.mxu0 %v5317
        %5337 = vmatpush.bf16.msra.mxu0 %v5316
        %5338 = vmatpush.bf16.msra.mxu0 %v5315
        %5339 = vmatmul.bf16.gmra.mxu0 %v5251
        %v5340 = vpop.f32.mrf.mxu0
        %v5341 = vadd.f32 0.0, %v5340
        %v5342 = vpop.f32.mrf.mxu0
        %v5343 = vadd.f32 0.0, %v5342
        %5344 = vmatmul.bf16.gmra.mxu0 %v5252
        %v5345 = vpop.f32.mrf.mxu0
        %v5346 = vadd.f32 0.0, %v5345
        %v5347 = vpop.f32.mrf.mxu0
        %v5348 = vadd.f32 0.0, %v5347
        %5349 = vmatmul.bf16.gmra.mxu0 %v5253
        %v5350 = vpop.f32.mrf.mxu0
        %v5351 = vadd.f32 0.0, %v5350
        %v5352 = vpop.f32.mrf.mxu0
        %v5353 = vadd.f32 0.0, %v5352
        %5354 = vmatmul.bf16.gmra.mxu0 %v5254
        %v5355 = vpop.f32.mrf.mxu0
        %v5356 = vadd.f32 0.0, %v5355
        %v5357 = vpop.f32.mrf.mxu0
        %v5358 = vadd.f32 0.0, %v5357
        %5359 = vmatmul.bf16.gmra.mxu0 %v5255
        %v5360 = vpop.f32.mrf.mxu0
        %v5361 = vadd.f32 0.0, %v5360
        %v5362 = vpop.f32.mrf.mxu0
        %v5363 = vadd.f32 0.0, %v5362
        %5364 = vmatmul.bf16.gmra.mxu0 %v5256
        %v5365 = vpop.f32.mrf.mxu0
        %v5366 = vadd.f32 0.0, %v5365
        %v5367 = vpop.f32.mrf.mxu0
        %v5368 = vadd.f32 0.0, %v5367
        %5369 = vmatmul.bf16.gmra.mxu0 %v5257
        %v5370 = vpop.f32.mrf.mxu0
        %v5371 = vadd.f32 0.0, %v5370
        %v5372 = vpop.f32.mrf.mxu0
        %v5373 = vadd.f32 0.0, %v5372
        %5374 = vmatmul.bf16.gmra.mxu0 %v5258
        %v5375 = vpop.f32.mrf.mxu0
        %v5376 = vadd.f32 0.0, %v5375
        %v5377 = vpop.f32.mrf.mxu0
        %v5378 = vadd.f32 0.0, %v5377
        %5379 = vmatmul.bf16.gmra.mxu0 %v5259
        %v5380 = vpop.f32.mrf.mxu0
        %v5381 = vadd.f32 0.0, %v5380
        %v5382 = vpop.f32.mrf.mxu0
        %v5383 = vadd.f32 0.0, %v5382
        %5384 = vmatmul.bf16.gmra.mxu0 %v5260
        %v5385 = vpop.f32.mrf.mxu0
        %v5386 = vadd.f32 0.0, %v5385
        %v5387 = vpop.f32.mrf.mxu0
        %v5388 = vadd.f32 0.0, %v5387
        %5389 = vmatmul.bf16.gmra.mxu0 %v5261
        %v5390 = vpop.f32.mrf.mxu0
        %v5391 = vadd.f32 0.0, %v5390
        %v5392 = vpop.f32.mrf.mxu0
        %v5393 = vadd.f32 0.0, %v5392
        %5394 = vmatmul.bf16.gmra.mxu0 %v5262
        %v5395 = vpop.f32.mrf.mxu0
        %v5396 = vadd.f32 0.0, %v5395
        %v5397 = vpop.f32.mrf.mxu0
        %v5398 = vadd.f32 0.0, %v5397
        %5399 = vmatmul.bf16.gmra.mxu0 %v5263
        %v5400 = vpop.f32.mrf.mxu0
        %v5401 = vadd.f32 0.0, %v5400
        %v5402 = vpop.f32.mrf.mxu0
        %v5403 = vadd.f32 0.0, %v5402
        %5404 = vmatmul.bf16.gmra.mxu0 %v5264
        %v5405 = vpop.f32.mrf.mxu0
        %v5406 = vadd.f32 0.0, %v5405
        %v5407 = vpop.f32.mrf.mxu0
        %v5408 = vadd.f32 0.0, %v5407
        %5409 = vmatmul.bf16.gmra.mxu0 %v5265
        %v5410 = vpop.f32.mrf.mxu0
        %v5411 = vadd.f32 0.0, %v5410
        %v5412 = vpop.f32.mrf.mxu0
        %v5413 = vadd.f32 0.0, %v5412
        %5414 = vmatmul.bf16.gmra.mxu0 %v5266
        %v5415 = vpop.f32.mrf.mxu0
        %v5416 = vadd.f32 0.0, %v5415
        %v5417 = vpop.f32.mrf.mxu0
        %v5418 = vadd.f32 0.0, %v5417
        %5419 = vdwg.mxu0
        %v5420 = vadd.f32 %v4995, %v5341
        %v5421 = vadd.f32 %v4996, %v5343
        %v5422 = vadd.f32 %v4997, %v5346
        %v5423 = vadd.f32 %v4998, %v5348
        %v5424 = vadd.f32 %v4999, %v5351
        %v5425 = vadd.f32 %v5000, %v5353
        %v5426 = vadd.f32 %v5001, %v5356
        %v5427 = vadd.f32 %v5002, %v5358
        %v5428 = vadd.f32 %v5003, %v5361
        %v5429 = vadd.f32 %v5004, %v5363
        %v5430 = vadd.f32 %v5005, %v5366
        %v5431 = vadd.f32 %v5006, %v5368
        %v5432 = vadd.f32 %v5007, %v5371
        %v5433 = vadd.f32 %v5008, %v5373
        %v5434 = vadd.f32 %v5009, %v5376
        %v5435 = vadd.f32 %v5010, %v5378
        %v5436 = vadd.f32 %v5011, %v5381
        %v5437 = vadd.f32 %v5012, %v5383
        %v5438 = vadd.f32 %v5013, %v5386
        %v5439 = vadd.f32 %v5014, %v5388
        %v5440 = vadd.f32 %v5015, %v5391
        %v5441 = vadd.f32 %v5016, %v5393
        %v5442 = vadd.f32 %v5017, %v5396
        %v5443 = vadd.f32 %v5018, %v5398
        %v5444 = vadd.f32 %v5019, %v5401
        %v5445 = vadd.f32 %v5020, %v5403
        %v5446 = vadd.f32 %v5021, %v5406
        %v5447 = vadd.f32 %v5022, %v5408
        %v5448 = vadd.f32 %v5023, %v5411
        %v5449 = vadd.f32 %v5024, %v5413
        %v5450 = vadd.f32 %v5025, %v5416
        %v5451 = vadd.f32 %v5026, %v5418
        %v5452 = vperm.slane %v269, 0
        %v5453 = vmul.f32 %v5420, %v5452
        %v5454 = vmul.f32 %v5421, %v5452
        %v5455 = vmul.f32 %v5422, %v5452
        %v5456 = vmul.f32 %v5423, %v5452
        %v5457 = vmul.f32 %v5424, %v5452
        %v5458 = vmul.f32 %v5425, %v5452
        %v5459 = vmul.f32 %v5426, %v5452
        %v5460 = vmul.f32 %v5427, %v5452
        %v5461 = vmul.f32 %v5428, %v5452
        %v5462 = vmul.f32 %v5429, %v5452
        %v5463 = vmul.f32 %v5430, %v5452
        %v5464 = vmul.f32 %v5431, %v5452
        %v5465 = vmul.f32 %v5432, %v5452
        %v5466 = vmul.f32 %v5433, %v5452
        %v5467 = vmul.f32 %v5434, %v5452
        %v5468 = vmul.f32 %v5435, %v5452
        %v5469 = vmul.f32 %v5436, %v5452
        %v5470 = vmul.f32 %v5437, %v5452
        %v5471 = vmul.f32 %v5438, %v5452
        %v5472 = vmul.f32 %v5439, %v5452
        %v5473 = vmul.f32 %v5440, %v5452
        %v5474 = vmul.f32 %v5441, %v5452
        %v5475 = vmul.f32 %v5442, %v5452
        %v5476 = vmul.f32 %v5443, %v5452
        %v5477 = vmul.f32 %v5444, %v5452
        %v5478 = vmul.f32 %v5445, %v5452
        %v5479 = vmul.f32 %v5446, %v5452
        %v5480 = vmul.f32 %v5447, %v5452
        %v5481 = vmul.f32 %v5448, %v5452
        %v5482 = vmul.f32 %v5449, %v5452
        %v5483 = vmul.f32 %v5450, %v5452
        %v5484 = vmul.f32 %v5451, %v5452
        %v5485 = vperm.slane %v270, 0
        %v5486 = vadd.f32 %v5453, %v5485
        %v5487 = vadd.f32 %v5454, %v5485
        %v5488 = vadd.f32 %v5455, %v5485
        %v5489 = vadd.f32 %v5456, %v5485
        %v5490 = vadd.f32 %v5457, %v5485
        %v5491 = vadd.f32 %v5458, %v5485
        %v5492 = vadd.f32 %v5459, %v5485
        %v5493 = vadd.f32 %v5460, %v5485
        %v5494 = vadd.f32 %v5461, %v5485
        %v5495 = vadd.f32 %v5462, %v5485
        %v5496 = vadd.f32 %v5463, %v5485
        %v5497 = vadd.f32 %v5464, %v5485
        %v5498 = vadd.f32 %v5465, %v5485
        %v5499 = vadd.f32 %v5466, %v5485
        %v5500 = vadd.f32 %v5467, %v5485
        %v5501 = vadd.f32 %v5468, %v5485
        %v5502 = vadd.f32 %v5469, %v5485
        %v5503 = vadd.f32 %v5470, %v5485
        %v5504 = vadd.f32 %v5471, %v5485
        %v5505 = vadd.f32 %v5472, %v5485
        %v5506 = vadd.f32 %v5473, %v5485
        %v5507 = vadd.f32 %v5474, %v5485
        %v5508 = vadd.f32 %v5475, %v5485
        %v5509 = vadd.f32 %v5476, %v5485
        %v5510 = vadd.f32 %v5477, %v5485
        %v5511 = vadd.f32 %v5478, %v5485
        %v5512 = vadd.f32 %v5479, %v5485
        %v5513 = vadd.f32 %v5480, %v5485
        %v5514 = vadd.f32 %v5481, %v5485
        %v5515 = vadd.f32 %v5482, %v5485
        %v5516 = vadd.f32 %v5483, %v5485
        %v5517 = vadd.f32 %v5484, %v5485
        %v5518 = vadd.f32 %v5486, %v701
        %v5519 = vadd.f32 %v5487, %v702
        %v5520 = vadd.f32 %v5488, %v703
        %v5521 = vadd.f32 %v5489, %v704
        %v5522 = vadd.f32 %v5490, %v705
        %v5523 = vadd.f32 %v5491, %v706
        %v5524 = vadd.f32 %v5492, %v707
        %v5525 = vadd.f32 %v5493, %v708
        %v5526 = vadd.f32 %v5494, %v709
        %v5527 = vadd.f32 %v5495, %v710
        %v5528 = vadd.f32 %v5496, %v711
        %v5529 = vadd.f32 %v5497, %v712
        %v5530 = vadd.f32 %v5498, %v713
        %v5531 = vadd.f32 %v5499, %v714
        %v5532 = vadd.f32 %v5500, %v715
        %v5533 = vadd.f32 %v5501, %v716
        %v5534 = vadd.f32 %v5502, %v717
        %v5535 = vadd.f32 %v5503, %v718
        %v5536 = vadd.f32 %v5504, %v719
        %v5537 = vadd.f32 %v5505, %v720
        %v5538 = vadd.f32 %v5506, %v721
        %v5539 = vadd.f32 %v5507, %v722
        %v5540 = vadd.f32 %v5508, %v723
        %v5541 = vadd.f32 %v5509, %v724
        %v5542 = vadd.f32 %v5510, %v725
        %v5543 = vadd.f32 %v5511, %v726
        %v5544 = vadd.f32 %v5512, %v727
        %v5545 = vadd.f32 %v5513, %v728
        %v5546 = vadd.f32 %v5514, %v729
        %v5547 = vadd.f32 %v5515, %v730
        %v5548 = vadd.f32 %v5516, %v731
        %v5549 = vadd.f32 %v5517, %v732
        %v5550 = vmax.f32 %v5518, 0.0
        %v5551 = vmax.f32 %v5519, 0.0
        %v5552 = vmax.f32 %v5520, 0.0
        %v5553 = vmax.f32 %v5521, 0.0
        %v5554 = vmax.f32 %v5522, 0.0
        %v5555 = vmax.f32 %v5523, 0.0
        %v5556 = vmax.f32 %v5524, 0.0
        %v5557 = vmax.f32 %v5525, 0.0
        %v5558 = vmax.f32 %v5526, 0.0
        %v5559 = vmax.f32 %v5527, 0.0
        %v5560 = vmax.f32 %v5528, 0.0
        %v5561 = vmax.f32 %v5529, 0.0
        %v5562 = vmax.f32 %v5530, 0.0
        %v5563 = vmax.f32 %v5531, 0.0
        %v5564 = vmax.f32 %v5532, 0.0
        %v5565 = vmax.f32 %v5533, 0.0
        %v5566 = vmax.f32 %v5534, 0.0
        %v5567 = vmax.f32 %v5535, 0.0
        %v5568 = vmax.f32 %v5536, 0.0
        %v5569 = vmax.f32 %v5537, 0.0
        %v5570 = vmax.f32 %v5538, 0.0
        %v5571 = vmax.f32 %v5539, 0.0
        %v5572 = vmax.f32 %v5540, 0.0
        %v5573 = vmax.f32 %v5541, 0.0
        %v5574 = vmax.f32 %v5542, 0.0
        %v5575 = vmax.f32 %v5543, 0.0
        %v5576 = vmax.f32 %v5544, 0.0
        %v5577 = vmax.f32 %v5545, 0.0
        %v5578 = vmax.f32 %v5546, 0.0
        %v5579 = vmax.f32 %v5547, 0.0
        %v5580 = vmax.f32 %v5548, 0.0
        %v5581 = vmax.f32 %v5549, 0.0
        %v5582 = vpack.c.bf16 %v5550, %v5550
        %v5583 = vpack.c.bf16 %v5551, %v5551
        %v5584 = vpack.c.bf16 %v5552, %v5552
        %v5585 = vpack.c.bf16 %v5553, %v5553
        %v5586 = vpack.c.bf16 %v5554, %v5554
        %v5587 = vpack.c.bf16 %v5555, %v5555
        %v5588 = vpack.c.bf16 %v5556, %v5556
        %v5589 = vpack.c.bf16 %v5557, %v5557
        %v5590 = vpack.c.bf16 %v5558, %v5558
        %v5591 = vpack.c.bf16 %v5559, %v5559
        %v5592 = vpack.c.bf16 %v5560, %v5560
        %v5593 = vpack.c.bf16 %v5561, %v5561
        %v5594 = vpack.c.bf16 %v5562, %v5562
        %v5595 = vpack.c.bf16 %v5563, %v5563
        %v5596 = vpack.c.bf16 %v5564, %v5564
        %v5597 = vpack.c.bf16 %v5565, %v5565
        %v5598 = vpack.c.bf16 %v5566, %v5566
        %v5599 = vpack.c.bf16 %v5567, %v5567
        %v5600 = vpack.c.bf16 %v5568, %v5568
        %v5601 = vpack.c.bf16 %v5569, %v5569
        %v5602 = vpack.c.bf16 %v5570, %v5570
        %v5603 = vpack.c.bf16 %v5571, %v5571
        %v5604 = vpack.c.bf16 %v5572, %v5572
        %v5605 = vpack.c.bf16 %v5573, %v5573
        %v5606 = vpack.c.bf16 %v5574, %v5574
        %v5607 = vpack.c.bf16 %v5575, %v5575
        %v5608 = vpack.c.bf16 %v5576, %v5576
        %v5609 = vpack.c.bf16 %v5577, %v5577
        %v5610 = vpack.c.bf16 %v5578, %v5578
        %v5611 = vpack.c.bf16 %v5579, %v5579
        %v5612 = vpack.c.bf16 %v5580, %v5580
        %v5613 = vpack.c.bf16 %v5581, %v5581
        %5614 = vst [vmem:[%s265] sm:$0xf] %v5582
        %5615 = vst [vmem:[%s265 + $0x4] sm:$0xf] %v5583
        %5616 = vst [vmem:[%s265 + $0x8] sm:$0xf] %v5584
        %5617 = vst [vmem:[%s265 + $0xc] sm:$0xf] %v5585
        %5618 = vst [vmem:[%s265 + $0x10] sm:$0xf] %v5586
        %5619 = vst [vmem:[%s265 + $0x14] sm:$0xf] %v5587
        %5620 = vst [vmem:[%s265 + $0x18] sm:$0xf] %v5588
        %5621 = vst [vmem:[%s265 + $0x1c] sm:$0xf] %v5589
        %5622 = vst [vmem:[%s265 + $0x20] sm:$0xf] %v5590
        %5623 = vst [vmem:[%s265 + $0x24] sm:$0xf] %v5591
        %5624 = vst [vmem:[%s265 + $0x28] sm:$0xf] %v5592
        %5625 = vst [vmem:[%s265 + $0x2c] sm:$0xf] %v5593
        %5626 = vst [vmem:[%s265 + $0x30] sm:$0xf] %v5594
        %5627 = vst [vmem:[%s265 + $0x34] sm:$0xf] %v5595
        %5628 = vst [vmem:[%s265 + $0x38] sm:$0xf] %v5596
        %5629 = vst [vmem:[%s265 + $0x3c] sm:$0xf] %v5597
        %5630 = vst [vmem:[%s265 + $0x40] sm:$0xf] %v5598
        %5631 = vst [vmem:[%s265 + $0x44] sm:$0xf] %v5599
        %5632 = vst [vmem:[%s265 + $0x48] sm:$0xf] %v5600
        %5633 = vst [vmem:[%s265 + $0x4c] sm:$0xf] %v5601
        %5634 = vst [vmem:[%s265 + $0x50] sm:$0xf] %v5602
        %5635 = vst [vmem:[%s265 + $0x54] sm:$0xf] %v5603
        %5636 = vst [vmem:[%s265 + $0x58] sm:$0xf] %v5604
        %5637 = vst [vmem:[%s265 + $0x5c] sm:$0xf] %v5605
        %5638 = vst [vmem:[%s265 + $0x60] sm:$0xf] %v5606
        %5639 = vst [vmem:[%s265 + $0x64] sm:$0xf] %v5607
        %5640 = vst [vmem:[%s265 + $0x68] sm:$0xf] %v5608
        %5641 = vst [vmem:[%s265 + $0x6c] sm:$0xf] %v5609
        %5642 = vst [vmem:[%s265 + $0x70] sm:$0xf] %v5610
        %5643 = vst [vmem:[%s265 + $0x74] sm:$0xf] %v5611
        %5644 = vst [vmem:[%s265 + $0x78] sm:$0xf] %v5612
        %5645 = vst [vmem:[%s265 + $0x7c] sm:$0xf] %v5613
        %s5646 = sand.u32 %s120, 1
        %s5647 = scalar_lea.sflag [#allocation5], %s5646
        %s5648 = sand.u32 %s120, 1
        %s5649 = smul.addr %s5648, 128
        %s5650 = scalar_lea.vmem [#allocation11], %s5649
        // Predicated region
        $region53: #{tpu_custom_call.1} parent=35 // pred_check
          %p5651 = pneg %p130
        $region54: #{tpu_custom_call.1} parent=35 // pred_check_branch
          %5653 = sbr.rel (%p5651) target = $region56
        $region55: #{tpu_custom_call.1} parent=35 // pred_region
          %5655 = vsyncadd %s5647, 0
          %s5656 = smul.addr %s23, 32
          %s5657 = smul.addr %s5656, 4
          %s5658 = scalar_lea.hbm %s4, %s5657
          %s5659 = sshll.u32 %s5650, 4
          %s5660 = int_to_ptr.vmem [resolvable:$true] %s5659
          %s5661 = sshll.u32 %s5658, 4
          %s5662 = int_to_ptr.hbm [resolvable:$true] %s5661
          %5667 = dma.vmem_to_hbm [thread:$0]  %s5660, 2048, %s5662, %s5647, 64, 64, 4
        $region56: #{tpu_custom_call.1} parent=35 // pred_fallthru
          _
      $region36: #{tpu_custom_call.1} parent=5 // pred_fallthru
        _
      %p5668 = scmp.le.s32.totalorder 2, %s18
      // Predicated region
      $region57: #{tpu_custom_call.1} parent=5 // pred_check
        %p5669 = pneg %p5668
      $region58: #{tpu_custom_call.1} parent=5 // pred_check_branch
        %5671 = sbr.rel (%p5669) target = $region60
      $region59: #{tpu_custom_call.1} parent=5 // pred_region
        %s5672 = ssub.s32 %s18, 2
        // Predicated region
        $region61: #{tpu_custom_call.1} parent=59 // pred_check
          %p5673 = pneg %p136
        $region62: #{tpu_custom_call.1} parent=59 // pred_check_branch
          %5675 = sbr.rel (%p5673) target = $region64
        $region63: #{tpu_custom_call.1} parent=59 // pred_region
          %s5676 = sand.u32 %s121, 1
          %s5677 = scalar_lea.sflag [#allocation5], %s5676
          %s5678 = sand.u32 %s121, 1
          %s5679 = smul.addr %s5678, 128
          %s5680 = scalar_lea.vmem [#allocation11], %s5679
          %5682 = dma.done %s5677, 2048
        $region64: #{tpu_custom_call.1} parent=59 // pred_fallthru
          _
      $region60: #{tpu_custom_call.1} parent=5 // pred_fallthru
        _
    $region6: #{tpu_custom_call.1} parent=1 // loop_footer
      %s22 = sadd.s32 1, %s18
    $region7: #{tpu_custom_call.1} parent=1 // loop_footer_branch
      %17 = sbr.rel target = $region3
    $region8: #{tpu_custom_call.1} parent=1 // loop_exit
      _
    %5683 = vsyncpa [#allocation4], 1
    %s5684 = scalar_lea.sflag [#allocation4], 1
    %5685 = vsyncpa %s5684, 1
    %5686 = vsyncpa [#allocation7], 1
    %5687 = vsyncpa [#allocation10], 1
    %5688 = vsyncpa [#allocation5], 1
    %s5689 = scalar_lea.sflag [#allocation5], 1
    %5690 = vsyncpa %s5689, 1

</llo_original>
